<compile_context>
chip_gen: v7x
topology: tpu7x:2x2x1
jax: 0.10.0
libtpu: 0.0.40
codegen_flags: <defaults>
</compile_context>

<pallas_src>
import functools

import jax
import jax.numpy as jnp
from jax import lax
from jax.experimental import pallas as pl
from jax.experimental.pallas import tpu as pltpu

_MIB = 1024 * 1024


def _layernorm(x, w, b, eps=1e-5):
    mu = jnp.mean(x, axis=-1, keepdims=True)
    var = jnp.mean((x - mu) ** 2, axis=-1, keepdims=True)
    return (x - mu) * lax.rsqrt(var + eps) * w + b


def _gelu_exact(x):
    # torch nn.GELU() default = exact erf formulation
    return 0.5 * x * (1.0 + lax.erf(x * 0.7071067811865476))


def co_atten_kernel(q_ref, v_ref,
                    wq_ref, bq_ref, wk_ref, bk_ref, wv_ref, bv_ref,
                    wo_ref, bo_ref, ln1w_ref, ln1b_ref,
                    fc1w_ref, fc1b_ref, fc2w_ref, fc2b_ref,
                    ln2w_ref, ln2b_ref, out_ref, acc_ref,
                    *, num_heads, seq_len):
    bf = jnp.bfloat16
    xq = q_ref[...]                    # (R, D) f32, R = TB * S (batch folded into M)
    xv = v_ref[...]                    # (R, D) f32
    R, D = xq.shape
    S = seq_len
    TB = R // S
    hd = D // num_heads
    scale = jnp.float32(1.0 / (hd ** 0.5))

    xq_b = xq.astype(bf)
    xv_b = xv.astype(bf)

    # ---- QKV projections: bf16 MXU operands, f32 accumulation, batch folded in M.
    # The f32 dot results feed the bf16 cast directly (no duplicate f32 Q/K/V stay
    # live); the 1/sqrt(head_dim) scale is folded into Q once, not per score tile.
    q3 = ((jnp.dot(xq_b, wq_ref[...], preferred_element_type=jnp.float32)
           + bq_ref[...]) * scale).reshape(TB, S, D).astype(bf)
    k3 = (jnp.dot(xv_b, wk_ref[...], preferred_element_type=jnp.float32)
          + bk_ref[...]).reshape(TB, S, D).astype(bf)
    v3 = (jnp.dot(xv_b, wv_ref[...], preferred_element_type=jnp.float32)
          + bv_ref[...]).reshape(TB, S, D).astype(bf)

    wo_b = wo_ref[...]                 # (D, D) bf16, hoisted out of the head loop

    # ---- Attention.  One batched einsum per head covers every folded batch (no
    # per-batch Python loop, no concatenate copy).  Each head's (R, hd) output
    # accumulates straight into the output projection via a sublane slice of W_O;
    # the running sum lives in VMEM scratch so the unrolled head loop does not
    # widen the vreg live set.
    acc_ref[...] = jnp.zeros_like(acc_ref)
    for h in range(num_heads):         # small static trip count -> unrolled
        c0 = h * hd
        qh = q3[:, :, c0:c0 + hd]
        kh = k3[:, :, c0:c0 + hd]
        vh = v3[:, :, c0:c0 + hd]
        s = jnp.einsum('bqd,bkd->bqk', qh, kh,
                       preferred_element_type=jnp.float32)     # (TB, S, S)
        s = s - jnp.max(s, axis=-1, keepdims=True)
        p = jnp.exp(s)
        p = p * pl.reciprocal(jnp.sum(p, axis=-1, keepdims=True), approx=True)
        oh = jnp.einsum('bqk,bkd->bqd', p.astype(bf), vh,
                        preferred_element_type=jnp.float32)    # (TB, S, hd)
        acc_ref[...] += jnp.dot(oh.reshape(R, hd).astype(bf),
                                wo_b[c0:c0 + hd, :],
                                preferred_element_type=jnp.float32)
    attn = acc_ref[...] + bo_ref[...]

    # ---- addNorm1: LayerNorm(q + attn)   (f32 VPU/EUP work; v5e-safe)
    x1 = _layernorm(xq + attn, ln1w_ref[...], ln1b_ref[...])

    # ---- feedForward: fc1 -> exact-erf GELU -> fc2  (bf16 MXU, f32 elsewhere)
    h1 = (jnp.dot(x1.astype(bf), fc1w_ref[...], preferred_element_type=jnp.float32)
          + fc1b_ref[...])
    g = _gelu_exact(h1)
    h2 = (jnp.dot(g.astype(bf), fc2w_ref[...], preferred_element_type=jnp.float32)
          + fc2b_ref[...])

    # ---- addNorm2: LayerNorm(x1 + ff(x1))
    out_ref[...] = _layernorm(x1 + h2, ln2w_ref[...], ln2b_ref[...])


def _vmem_capacity_bytes():
    """Chip VMEM capacity; falls back to the v7x-safe 64 MiB if the query fails."""
    try:
        return int(pltpu.get_tpu_info().vmem_capacity_bytes)
    except Exception:
        return 64 * _MIB


def _pick_batch_tile(B, S, *, target_rows, min_programs):
    """Batch rows folded into one grid step: keep TB*S near target_rows so the big
    GEMMs see a deep M dimension, keep >= min_programs grid steps (v7x: 2 TCs),
    require TB | B, and keep the in-kernel (R,D)->(TB,S,D) reshape tile-aligned."""
    if B <= 1:
        return max(B, 1)
    if S % 8 != 0:
        # Non-sublane-aligned S: a (TB*S, D) row block with TB < B is illegal and
        # the in-kernel reshape would need a relayout -> use the full-array block.
        # TODO(synk): per-batch row-slicing path for S % 8 != 0 at large B.
        return B
    tb = max(1, min(B, max(1, target_rows // S)))
    if min_programs > 1 and B >= min_programs:
        tb = min(tb, B // min_programs)
    while tb > 1 and B % tb != 0:
        tb -= 1
    return max(tb, 1)


def _estimate_vmem_bytes(R, D, S, TB, num_heads, weight_buffers):
    """Rough per-step VMEM working set (pipeline buffers + live intermediates)."""
    hd = D // num_heads
    lane_d = max(D, 128)
    weights = 6 * D * lane_d * 2 * weight_buffers            # six (D,D) bf16 mats
    small = 10 * 8 * lane_d * 4 * 2                          # (1,D) rows pad to (8,·)
    io = 3 * R * lane_d * 4 * 2                              # q, v, out (double-buffered)
    scratch = R * lane_d * 4                                 # attention accumulator
    inter = 3 * R * lane_d * 2 + 5 * R * lane_d * 4          # bf16 Q/K/V + f32 temps
    attn_tmp = 2 * TB * S * max(S, 128) * 4 + TB * S * max(hd, 128) * 4
    return weights + small + io + scratch + inter + attn_tmp


def co_atten_transformer_block(q, v, params, num_heads):
    B, S, D = q.shape
    (wq, bq, wk, bk, wv, bv, wo, bo,
     ln1w, ln1b, fc1w, fc1b, fc2w, fc2b, ln2w, ln2b) = params

    # bf16 weights for the MXU (halves weight VMEM/DMA); accumulation stays f32.
    # Biases and LayerNorm params stay f32 (element-wise work kept in f32; v5e-safe).
    bf = jnp.bfloat16
    wq, wk, wv, wo, fc1w, fc2w = (w.astype(bf) for w in (wq, wk, wv, wo, fc1w, fc2w))

    # Fold batch into the matmul M dimension: (B, S, D) -> (B*S, D).
    q2 = q.reshape(B * S, D)
    v2 = v.reshape(B * S, D)

    vmem_cap = _vmem_capacity_bytes()
    if vmem_cap >= 100 * _MIB:
        # v5e / v6e: 128 MiB VMEM, one TensorCore -> maximize rows per step.
        target_rows, min_programs = 512, 1
    else:
        # v7x-like: 64 MiB VMEM, two TensorCores -> keep >= 2 parallel programs.
        target_rows, min_programs = 256, 2

    TB = _pick_batch_tile(B, S, target_rows=target_rows, min_programs=min_programs)
    R = TB * S
    grid = (B // TB,)

    # Explicit scoped-VMEM budget (conservative: assumes double-buffered weights),
    # clamped under the chip capacity so the 16/32 MiB defaults never silently
    # reject the kernel and v7x's 64 MiB is respected.
    est = _estimate_vmem_bytes(R, D, S, TB, num_heads, weight_buffers=2)
    vmem_limit = int(min(max(2 * est, 32 * _MIB), (vmem_cap * 9) // 10))

    cost = pl.CostEstimate(
        flops=int(12 * B * S * D * D + 4 * B * S * S * D),
        transcendentals=int(B * num_heads * S * S + B * S * D),
        bytes_accessed=int(3 * B * S * D * 4 + 6 * D * D * 2 + 10 * D * 4),
    )

    kernel = functools.partial(co_atten_kernel, num_heads=num_heads, seq_len=S)
    args = (q2, v2, wq, bq, wk, bk, wv, bv, wo, bo,
            ln1w, ln1b, fc1w, fc1b, fc2w, fc2b, ln2w, ln2b)

    def build(single_buffer_weights):
        row_spec = pl.BlockSpec((R, D), lambda i: (i, 0))
        if single_buffer_weights:
            # Grid-invariant blocks: one pipeline buffer is enough; the second one
            # only burned VMEM (6 x D^2 bf16 weights resident twice).
            w_spec = pl.BlockSpec((D, D), lambda i: (0, 0), pipeline_mode=pl.Buffered(1))
            b_spec = pl.BlockSpec((1, D), lambda i: (0, 0), pipeline_mode=pl.Buffered(1))
        else:
            w_spec = pl.BlockSpec((D, D), lambda i: (0, 0))
            b_spec = pl.BlockSpec((1, D), lambda i: (0, 0))
        in_specs = [row_spec, row_spec,
                    w_spec, b_spec,   # WQ
                    w_spec, b_spec,   # WK
                    w_spec, b_spec,   # WV
                    w_spec, b_spec,   # attention output projection (fc)
                    b_spec, b_spec,   # norm1 weight, bias
                    w_spec, b_spec,   # fc1
                    w_spec, b_spec,   # fc2
                    b_spec, b_spec]   # norm2 weight, bias
        return pl.pallas_call(
            kernel,
            out_shape=jax.ShapeDtypeStruct((B * S, D), jnp.float32),
            grid_spec=pltpu.PrefetchScalarGridSpec(
                num_scalar_prefetch=0,
                grid=grid,
                in_specs=in_specs,
                out_specs=row_spec,
                scratch_shapes=[pltpu.VMEM((R, D), jnp.float32)],
            ),
            compiler_params=pltpu.CompilerParams(
                dimension_semantics=("parallel",),
                vmem_limit_bytes=vmem_limit),
            cost_estimate=cost,
        )

    try:
        out2 = jax.block_until_ready(build(single_buffer_weights=True)(*args))
    except Exception:
        # pipeline_mode=pl.Buffered(1) not supported by this jax/libtpu combination:
        # fall back to default (double-buffered) pipelining — a VMEM-footprint
        # regression only, never a correctness one.
        out2 = build(single_buffer_weights=False)(*args)
    return out2.reshape(B, S, D)


# ---------------- pure-JAX f32 reference (mirrors the PyTorch forward) ----------------
def reference_block(q, v, p, num_heads):
    (wq, bq, wk, bk, wv, bv, wo, bo,
     ln1w, ln1b, fc1w, fc1b, fc2w, fc2b, ln2w, ln2b) = p
    D = q.shape[-1]
    hd = D // num_heads

    Q = q @ wq + bq
    K = v @ wk + bk
    V = v @ wv + bv

    outs = []
    for h in range(num_heads):
        qh = Q[..., h * hd:(h + 1) * hd]
        kh = K[..., h * hd:(h + 1) * hd]
        vh = V[..., h * hd:(h + 1) * hd]
        s = jnp.einsum('bqd,bkd->bqk', qh, kh) / (hd ** 0.5)
        w = jax.nn.softmax(s, axis=-1)
        outs.append(jnp.einsum('bqk,bkd->bqd', w, vh))
    attn = jnp.concatenate(outs, axis=-1) @ wo + bo

    def ln(x, w_, b_, eps=1e-5):
        mu = jnp.mean(x, axis=-1, keepdims=True)
        var = jnp.mean((x - mu) ** 2, axis=-1, keepdims=True)
        return (x - mu) / jnp.sqrt(var + eps) * w_ + b_

    x = ln(q + attn, ln1w, ln1b)
    ff = jax.nn.gelu(x @ fc1w + fc1b, approximate=False) @ fc2w + fc2b
    return ln(x + ff, ln2w, ln2b)


def make_params(key, D):
    keys = jax.random.split(key, 12)
    s = 0.1

    def w(k):
        return jax.random.normal(k, (D, D), jnp.float32) * s

    def b(k):
        return jax.random.normal(k, (1, D), jnp.float32) * s

    wq, bq = w(keys[0]), b(keys[1])
    wk, bk = w(keys[2]), b(keys[3])
    wv, bv = w(keys[4]), b(keys[5])
    wo, bo = w(keys[6]), b(keys[7])
    fc1w, fc1b = w(keys[8]), b(keys[9])
    fc2w, fc2b = w(keys[10]), b(keys[11])
    ln1w = jnp.ones((1, D), jnp.float32)
    ln1b = jnp.zeros((1, D), jnp.float32)
    ln2w = jnp.ones((1, D), jnp.float32)
    ln2b = jnp.zeros((1, D), jnp.float32)
    return (wq, bq, wk, bk, wv, bv, wo, bo,
            ln1w, ln1b, fc1w, fc1b, fc2w, fc2b, ln2w, ln2b)


if __name__ == "__main__":
    B, S, D, H = 2, 8, 32, 4   # batch, seq, embed_dim, num_heads (small demo shapes)
    key = jax.random.PRNGKey(0)
    kq, kv, kp = jax.random.split(key, 3)
    q = jax.random.normal(kq, (B, S, D), jnp.float32)
    v = jax.random.normal(kv, (B, S, D), jnp.float32)
    params = make_params(kp, D)

    out = co_atten_transformer_block(q, v, params, H)
    out = jax.block_until_ready(out)

    ref = reference_block(q, v, params, H)
    assert out.shape == (B, S, D)
    # bf16 MXU operands (f32 accumulation) + approx reciprocal vs f32 reference:
    # allow bf16-level tolerance; structural errors would be O(1).
    err = float(jnp.max(jnp.abs(out - ref)))
    assert jnp.allclose(out, ref, atol=5e-2, rtol=5e-2), f"mismatch vs reference, max|err|={err}"
    print("KERNEL_OK")
</pallas_src>

<mosaic_0001>
module attributes {stable_mosaic.version = 11 : i64} {
  func.func @co_atten_kernel(%arg0: i32, %arg1: memref<8x32xf32, #tpu.memory_space<vmem>>, %arg2: memref<8x32xf32, #tpu.memory_space<vmem>>, %arg3: memref<32x32xbf16, #tpu.memory_space<vmem>>, %arg4: memref<1x32xf32, #tpu.memory_space<vmem>>, %arg5: memref<32x32xbf16, #tpu.memory_space<vmem>>, %arg6: memref<1x32xf32, #tpu.memory_space<vmem>>, %arg7: memref<32x32xbf16, #tpu.memory_space<vmem>>, %arg8: memref<1x32xf32, #tpu.memory_space<vmem>>, %arg9: memref<32x32xbf16, #tpu.memory_space<vmem>>, %arg10: memref<1x32xf32, #tpu.memory_space<vmem>>, %arg11: memref<1x32xf32, #tpu.memory_space<vmem>>, %arg12: memref<1x32xf32, #tpu.memory_space<vmem>>, %arg13: memref<32x32xbf16, #tpu.memory_space<vmem>>, %arg14: memref<1x32xf32, #tpu.memory_space<vmem>>, %arg15: memref<32x32xbf16, #tpu.memory_space<vmem>>, %arg16: memref<1x32xf32, #tpu.memory_space<vmem>>, %arg17: memref<1x32xf32, #tpu.memory_space<vmem>>, %arg18: memref<1x32xf32, #tpu.memory_space<vmem>>, %arg19: memref<8x32xf32, #tpu.memory_space<vmem>>, %arg20: memref<8x32xf32, #tpu.memory_space<vmem>>) attributes {dimension_semantics = [#tpu.dimension_semantics<parallel>], iteration_bounds = array<i64: 2>, scalar_prefetch = 0 : i64, scratch_operands = 1 : i64, tpu.core_type = #tpu.core_type<tc>, window_params = [{transform_indices = @transform_0, window_bounds = array<i64: 8, 32>}, {transform_indices = @transform_1, window_bounds = array<i64: 8, 32>}, {pipeline_mode = #tpu.pipeline_mode<synchronous>, transform_indices = @transform_2, window_bounds = array<i64: 32, 32>}, {pipeline_mode = #tpu.pipeline_mode<synchronous>, transform_indices = @transform_3, window_bounds = array<i64: 1, 32>}, {pipeline_mode = #tpu.pipeline_mode<synchronous>, transform_indices = @transform_4, window_bounds = array<i64: 32, 32>}, {pipeline_mode = #tpu.pipeline_mode<synchronous>, transform_indices = @transform_5, window_bounds = array<i64: 1, 32>}, {pipeline_mode = #tpu.pipeline_mode<synchronous>, transform_indices = @transform_6, window_bounds = array<i64: 32, 32>}, {pipeline_mode = #tpu.pipeline_mode<synchronous>, transform_indices = @transform_7, window_bounds = array<i64: 1, 32>}, {pipeline_mode = #tpu.pipeline_mode<synchronous>, transform_indices = @transform_8, window_bounds = array<i64: 32, 32>}, {pipeline_mode = #tpu.pipeline_mode<synchronous>, transform_indices = @transform_9, window_bounds = array<i64: 1, 32>}, {pipeline_mode = #tpu.pipeline_mode<synchronous>, transform_indices = @transform_10, window_bounds = array<i64: 1, 32>}, {pipeline_mode = #tpu.pipeline_mode<synchronous>, transform_indices = @transform_11, window_bounds = array<i64: 1, 32>}, {pipeline_mode = #tpu.pipeline_mode<synchronous>, transform_indices = @transform_12, window_bounds = array<i64: 32, 32>}, {pipeline_mode = #tpu.pipeline_mode<synchronous>, transform_indices = @transform_13, window_bounds = array<i64: 1, 32>}, {pipeline_mode = #tpu.pipeline_mode<synchronous>, transform_indices = @transform_14, window_bounds = array<i64: 32, 32>}, {pipeline_mode = #tpu.pipeline_mode<synchronous>, transform_indices = @transform_15, window_bounds = array<i64: 1, 32>}, {pipeline_mode = #tpu.pipeline_mode<synchronous>, transform_indices = @transform_16, window_bounds = array<i64: 1, 32>}, {pipeline_mode = #tpu.pipeline_mode<synchronous>, transform_indices = @transform_17, window_bounds = array<i64: 1, 32>}, {transform_indices = @transform_18, window_bounds = array<i64: 8, 32>}]} {
    %c0 = arith.constant 0 : index
    %c0_0 = arith.constant 0 : index
    %0 = vector.load %arg1[%c0, %c0_0] : memref<8x32xf32, #tpu.memory_space<vmem>>, vector<8x32xf32>
    %c0_1 = arith.constant 0 : index
    %c0_2 = arith.constant 0 : index
    %1 = vector.load %arg2[%c0_1, %c0_2] : memref<8x32xf32, #tpu.memory_space<vmem>>, vector<8x32xf32>
    %2 = arith.truncf %0 : vector<8x32xf32> to vector<8x32xbf16>
    %3 = arith.truncf %1 : vector<8x32xf32> to vector<8x32xbf16>
    %c0_3 = arith.constant 0 : index
    %c0_4 = arith.constant 0 : index
    %4 = vector.load %arg3[%c0_3, %c0_4] : memref<32x32xbf16, #tpu.memory_space<vmem>>, vector<32x32xbf16>
    %cst = arith.constant dense<0.000000e+00> : vector<8x32xf32>
    %5 = tpu.matmul %2, %4, %cst {dimension_numbers = #tpu.dot_dimension_numbers<[1], [0], [0], [1], [0, 0, 1, 1], [], []>} : vector<8x32xbf16>, vector<32x32xbf16>, vector<8x32xf32> -> vector<8x32xf32>
    %c0_5 = arith.constant 0 : index
    %c0_6 = arith.constant 0 : index
    %6 = vector.load %arg4[%c0_5, %c0_6] : memref<1x32xf32, #tpu.memory_space<vmem>>, vector<1x32xf32>
    %7 = vector.broadcast %6 : vector<1x32xf32> to vector<8x32xf32>
    %8 = arith.addf %5, %7 : vector<8x32xf32>
    %cst_7 = arith.constant 0.353553385 : f32
    %9 = vector.broadcast %cst_7 : f32 to vector<8x32xf32>
    %10 = arith.mulf %8, %9 : vector<8x32xf32>
    %11 = vector.shape_cast %10 : vector<8x32xf32> to vector<1x8x32xf32>
    %12 = arith.truncf %11 : vector<1x8x32xf32> to vector<1x8x32xbf16>
    %c0_8 = arith.constant 0 : index
    %c0_9 = arith.constant 0 : index
    %13 = vector.load %arg5[%c0_8, %c0_9] : memref<32x32xbf16, #tpu.memory_space<vmem>>, vector<32x32xbf16>
    %cst_10 = arith.constant dense<0.000000e+00> : vector<8x32xf32>
    %14 = tpu.matmul %3, %13, %cst_10 {dimension_numbers = #tpu.dot_dimension_numbers<[1], [0], [0], [1], [0, 0, 1, 1], [], []>} : vector<8x32xbf16>, vector<32x32xbf16>, vector<8x32xf32> -> vector<8x32xf32>
    %c0_11 = arith.constant 0 : index
    %c0_12 = arith.constant 0 : index
    %15 = vector.load %arg6[%c0_11, %c0_12] : memref<1x32xf32, #tpu.memory_space<vmem>>, vector<1x32xf32>
    %16 = vector.broadcast %15 : vector<1x32xf32> to vector<8x32xf32>
    %17 = arith.addf %14, %16 : vector<8x32xf32>
    %18 = vector.shape_cast %17 : vector<8x32xf32> to vector<1x8x32xf32>
    %19 = arith.truncf %18 : vector<1x8x32xf32> to vector<1x8x32xbf16>
    %c0_13 = arith.constant 0 : index
    %c0_14 = arith.constant 0 : index
    %20 = vector.load %arg7[%c0_13, %c0_14] : memref<32x32xbf16, #tpu.memory_space<vmem>>, vector<32x32xbf16>
    %cst_15 = arith.constant dense<0.000000e+00> : vector<8x32xf32>
    %21 = tpu.matmul %3, %20, %cst_15 {dimension_numbers = #tpu.dot_dimension_numbers<[1], [0], [0], [1], [0, 0, 1, 1], [], []>} : vector<8x32xbf16>, vector<32x32xbf16>, vector<8x32xf32> -> vector<8x32xf32>
    %c0_16 = arith.constant 0 : index
    %c0_17 = arith.constant 0 : index
    %22 = vector.load %arg8[%c0_16, %c0_17] : memref<1x32xf32, #tpu.memory_space<vmem>>, vector<1x32xf32>
    %23 = vector.broadcast %22 : vector<1x32xf32> to vector<8x32xf32>
    %24 = arith.addf %21, %23 : vector<8x32xf32>
    %25 = vector.shape_cast %24 : vector<8x32xf32> to vector<1x8x32xf32>
    %26 = arith.truncf %25 : vector<1x8x32xf32> to vector<1x8x32xbf16>
    %c0_18 = arith.constant 0 : index
    %c0_19 = arith.constant 0 : index
    %27 = vector.load %arg9[%c0_18, %c0_19] : memref<32x32xbf16, #tpu.memory_space<vmem>>, vector<32x32xbf16>
    %cst_20 = arith.constant 0.000000e+00 : f32
    %28 = vector.broadcast %cst_20 : f32 to vector<8x32xf32>
    %c0_21 = arith.constant 0 : index
    %c0_22 = arith.constant 0 : index
    %29 = vector.load %arg20[%c0_21, %c0_22] : memref<8x32xf32, #tpu.memory_space<vmem>>, vector<8x32xf32>
    tpu.vector_store %arg20[%c0_21, %c0_22], %28 {strides = array<i32>} : memref<8x32xf32, #tpu.memory_space<vmem>>, vector<8x32xf32>,
    %30 = vector.extract_strided_slice %12 {offsets = [0, 0, 0], sizes = [1, 8, 8], strides = [1, 1, 1]} : vector<1x8x32xbf16> to vector<1x8x8xbf16>
    %31 = vector.extract_strided_slice %19 {offsets = [0, 0, 0], sizes = [1, 8, 8], strides = [1, 1, 1]} : vector<1x8x32xbf16> to vector<1x8x8xbf16>
    %32 = vector.extract_strided_slice %26 {offsets = [0, 0, 0], sizes = [1, 8, 8], strides = [1, 1, 1]} : vector<1x8x32xbf16> to vector<1x8x8xbf16>
    "tpu.trace_start"() <{level = 10 : i32, message = "bqd,bkd->bqk"}> : () -> ()
    %cst_23 = arith.constant dense<0.000000e+00> : vector<1x8x8xf32>
    %33 = tpu.matmul %30, %31, %cst_23 {dimension_numbers = #tpu.dot_dimension_numbers<[2], [2], [1], [1], [0, 0, 0, 1, 1, 1], [0], [0]>} : vector<1x8x8xbf16>, vector<1x8x8xbf16>, vector<1x8x8xf32> -> vector<1x8x8xf32>
    "tpu.trace_stop"() : () -> ()
    %cst_24 = arith.constant dense<0xFF800000> : vector<1x8xf32>
    %34 = vector.multi_reduction <maximumf>, %33, %cst_24 [2] : vector<1x8x8xf32> to vector<1x8xf32>
    %35 = vector.shape_cast %34 : vector<1x8xf32> to vector<1x8x1xf32>
    %36 = vector.broadcast %35 : vector<1x8x1xf32> to vector<1x8x8xf32>
    %37 = arith.subf %33, %36 : vector<1x8x8xf32>
    %38 = math.exp %37 : vector<1x8x8xf32>
    %cst_25 = arith.constant dense<0.000000e+00> : vector<1x8xf32>
    %39 = vector.multi_reduction <add>, %38, %cst_25 [2] : vector<1x8x8xf32> to vector<1x8xf32>
    %40 = vector.shape_cast %39 : vector<1x8xf32> to vector<1x8x1xf32>
    %41 = tpu.reciprocal %40 {approx = true} : vector<1x8x1xf32> -> vector<1x8x1xf32>
    %42 = vector.broadcast %41 : vector<1x8x1xf32> to vector<1x8x8xf32>
    %43 = arith.mulf %38, %42 : vector<1x8x8xf32>
    %44 = arith.truncf %43 : vector<1x8x8xf32> to vector<1x8x8xbf16>
    "tpu.trace_start"() <{level = 10 : i32, message = "bqk,bkd->bqd"}> : () -> ()
    %cst_26 = arith.constant dense<0.000000e+00> : vector<1x8x8xf32>
    %45 = tpu.matmul %44, %32, %cst_26 {dimension_numbers = #tpu.dot_dimension_numbers<[2], [1], [1], [2], [0, 0, 0, 1, 1, 2], [0], [0]>} : vector<1x8x8xbf16>, vector<1x8x8xbf16>, vector<1x8x8xf32> -> vector<1x8x8xf32>
    "tpu.trace_stop"() : () -> ()
    %c0_27 = arith.constant 0 : index
    %c0_28 = arith.constant 0 : index
    %46 = vector.load %arg20[%c0_27, %c0_28] : memref<8x32xf32, #tpu.memory_space<vmem>>, vector<8x32xf32>
    %47 = vector.shape_cast %45 : vector<1x8x8xf32> to vector<8x8xf32>
    %48 = arith.truncf %47 : vector<8x8xf32> to vector<8x8xbf16>
    %49 = vector.extract_strided_slice %27 {offsets = [0, 0], sizes = [8, 32], strides = [1, 1]} : vector<32x32xbf16> to vector<8x32xbf16>
    %cst_29 = arith.constant dense<0.000000e+00> : vector<8x32xf32>
    %50 = tpu.matmul %48, %49, %cst_29 {dimension_numbers = #tpu.dot_dimension_numbers<[1], [0], [0], [1], [0, 0, 1, 1], [], []>} : vector<8x8xbf16>, vector<8x32xbf16>, vector<8x32xf32> -> vector<8x32xf32>
    %51 = arith.addf %46, %50 : vector<8x32xf32>
    %c0_30 = arith.constant 0 : index
    %c0_31 = arith.constant 0 : index
    %52 = vector.load %arg20[%c0_30, %c0_31] : memref<8x32xf32, #tpu.memory_space<vmem>>, vector<8x32xf32>
    tpu.vector_store %arg20[%c0_30, %c0_31], %51 {strides = array<i32>} : memref<8x32xf32, #tpu.memory_space<vmem>>, vector<8x32xf32>,
    %53 = vector.extract_strided_slice %12 {offsets = [0, 0, 8], sizes = [1, 8, 8], strides = [1, 1, 1]} : vector<1x8x32xbf16> to vector<1x8x8xbf16>
    %54 = vector.extract_strided_slice %19 {offsets = [0, 0, 8], sizes = [1, 8, 8], strides = [1, 1, 1]} : vector<1x8x32xbf16> to vector<1x8x8xbf16>
    %55 = vector.extract_strided_slice %26 {offsets = [0, 0, 8], sizes = [1, 8, 8], strides = [1, 1, 1]} : vector<1x8x32xbf16> to vector<1x8x8xbf16>
    "tpu.trace_start"() <{level = 10 : i32, message = "bqd,bkd->bqk"}> : () -> ()
    %cst_32 = arith.constant dense<0.000000e+00> : vector<1x8x8xf32>
    %56 = tpu.matmul %53, %54, %cst_32 {dimension_numbers = #tpu.dot_dimension_numbers<[2], [2], [1], [1], [0, 0, 0, 1, 1, 1], [0], [0]>} : vector<1x8x8xbf16>, vector<1x8x8xbf16>, vector<1x8x8xf32> -> vector<1x8x8xf32>
    "tpu.trace_stop"() : () -> ()
    %cst_33 = arith.constant dense<0xFF800000> : vector<1x8xf32>
    %57 = vector.multi_reduction <maximumf>, %56, %cst_33 [2] : vector<1x8x8xf32> to vector<1x8xf32>
    %58 = vector.shape_cast %57 : vector<1x8xf32> to vector<1x8x1xf32>
    %59 = vector.broadcast %58 : vector<1x8x1xf32> to vector<1x8x8xf32>
    %60 = arith.subf %56, %59 : vector<1x8x8xf32>
    %61 = math.exp %60 : vector<1x8x8xf32>
    %cst_34 = arith.constant dense<0.000000e+00> : vector<1x8xf32>
    %62 = vector.multi_reduction <add>, %61, %cst_34 [2] : vector<1x8x8xf32> to vector<1x8xf32>
    %63 = vector.shape_cast %62 : vector<1x8xf32> to vector<1x8x1xf32>
    %64 = tpu.reciprocal %63 {approx = true} : vector<1x8x1xf32> -> vector<1x8x1xf32>
    %65 = vector.broadcast %64 : vector<1x8x1xf32> to vector<1x8x8xf32>
    %66 = arith.mulf %61, %65 : vector<1x8x8xf32>
    %67 = arith.truncf %66 : vector<1x8x8xf32> to vector<1x8x8xbf16>
    "tpu.trace_start"() <{level = 10 : i32, message = "bqk,bkd->bqd"}> : () -> ()
    %cst_35 = arith.constant dense<0.000000e+00> : vector<1x8x8xf32>
    %68 = tpu.matmul %67, %55, %cst_35 {dimension_numbers = #tpu.dot_dimension_numbers<[2], [1], [1], [2], [0, 0, 0, 1, 1, 2], [0], [0]>} : vector<1x8x8xbf16>, vector<1x8x8xbf16>, vector<1x8x8xf32> -> vector<1x8x8xf32>
    "tpu.trace_stop"() : () -> ()
    %c0_36 = arith.constant 0 : index
    %c0_37 = arith.constant 0 : index
    %69 = vector.load %arg20[%c0_36, %c0_37] : memref<8x32xf32, #tpu.memory_space<vmem>>, vector<8x32xf32>
    %70 = vector.shape_cast %68 : vector<1x8x8xf32> to vector<8x8xf32>
    %71 = arith.truncf %70 : vector<8x8xf32> to vector<8x8xbf16>
    %72 = vector.extract_strided_slice %27 {offsets = [8, 0], sizes = [8, 32], strides = [1, 1]} : vector<32x32xbf16> to vector<8x32xbf16>
    %cst_38 = arith.constant dense<0.000000e+00> : vector<8x32xf32>
    %73 = tpu.matmul %71, %72, %cst_38 {dimension_numbers = #tpu.dot_dimension_numbers<[1], [0], [0], [1], [0, 0, 1, 1], [], []>} : vector<8x8xbf16>, vector<8x32xbf16>, vector<8x32xf32> -> vector<8x32xf32>
    %74 = arith.addf %69, %73 : vector<8x32xf32>
    %c0_39 = arith.constant 0 : index
    %c0_40 = arith.constant 0 : index
    %75 = vector.load %arg20[%c0_39, %c0_40] : memref<8x32xf32, #tpu.memory_space<vmem>>, vector<8x32xf32>
    tpu.vector_store %arg20[%c0_39, %c0_40], %74 {strides = array<i32>} : memref<8x32xf32, #tpu.memory_space<vmem>>, vector<8x32xf32>,
    %76 = vector.extract_strided_slice %12 {offsets = [0, 0, 16], sizes = [1, 8, 8], strides = [1, 1, 1]} : vector<1x8x32xbf16> to vector<1x8x8xbf16>
    %77 = vector.extract_strided_slice %19 {offsets = [0, 0, 16], sizes = [1, 8, 8], strides = [1, 1, 1]} : vector<1x8x32xbf16> to vector<1x8x8xbf16>
    %78 = vector.extract_strided_slice %26 {offsets = [0, 0, 16], sizes = [1, 8, 8], strides = [1, 1, 1]} : vector<1x8x32xbf16> to vector<1x8x8xbf16>
    "tpu.trace_start"() <{level = 10 : i32, message = "bqd,bkd->bqk"}> : () -> ()
    %cst_41 = arith.constant dense<0.000000e+00> : vector<1x8x8xf32>
    %79 = tpu.matmul %76, %77, %cst_41 {dimension_numbers = #tpu.dot_dimension_numbers<[2], [2], [1], [1], [0, 0, 0, 1, 1, 1], [0], [0]>} : vector<1x8x8xbf16>, vector<1x8x8xbf16>, vector<1x8x8xf32> -> vector<1x8x8xf32>
    "tpu.trace_stop"() : () -> ()
    %cst_42 = arith.constant dense<0xFF800000> : vector<1x8xf32>
    %80 = vector.multi_reduction <maximumf>, %79, %cst_42 [2] : vector<1x8x8xf32> to vector<1x8xf32>
    %81 = vector.shape_cast %80 : vector<1x8xf32> to vector<1x8x1xf32>
    %82 = vector.broadcast %81 : vector<1x8x1xf32> to vector<1x8x8xf32>
    %83 = arith.subf %79, %82 : vector<1x8x8xf32>
    %84 = math.exp %83 : vector<1x8x8xf32>
    %cst_43 = arith.constant dense<0.000000e+00> : vector<1x8xf32>
    %85 = vector.multi_reduction <add>, %84, %cst_43 [2] : vector<1x8x8xf32> to vector<1x8xf32>
    %86 = vector.shape_cast %85 : vector<1x8xf32> to vector<1x8x1xf32>
    %87 = tpu.reciprocal %86 {approx = true} : vector<1x8x1xf32> -> vector<1x8x1xf32>
    %88 = vector.broadcast %87 : vector<1x8x1xf32> to vector<1x8x8xf32>
    %89 = arith.mulf %84, %88 : vector<1x8x8xf32>
    %90 = arith.truncf %89 : vector<1x8x8xf32> to vector<1x8x8xbf16>
    "tpu.trace_start"() <{level = 10 : i32, message = "bqk,bkd->bqd"}> : () -> ()
    %cst_44 = arith.constant dense<0.000000e+00> : vector<1x8x8xf32>
    %91 = tpu.matmul %90, %78, %cst_44 {dimension_numbers = #tpu.dot_dimension_numbers<[2], [1], [1], [2], [0, 0, 0, 1, 1, 2], [0], [0]>} : vector<1x8x8xbf16>, vector<1x8x8xbf16>, vector<1x8x8xf32> -> vector<1x8x8xf32>
    "tpu.trace_stop"() : () -> ()
    %c0_45 = arith.constant 0 : index
    %c0_46 = arith.constant 0 : index
    %92 = vector.load %arg20[%c0_45, %c0_46] : memref<8x32xf32, #tpu.memory_space<vmem>>, vector<8x32xf32>
    %93 = vector.shape_cast %91 : vector<1x8x8xf32> to vector<8x8xf32>
    %94 = arith.truncf %93 : vector<8x8xf32> to vector<8x8xbf16>
    %95 = vector.extract_strided_slice %27 {offsets = [16, 0], sizes = [8, 32], strides = [1, 1]} : vector<32x32xbf16> to vector<8x32xbf16>
    %cst_47 = arith.constant dense<0.000000e+00> : vector<8x32xf32>
    %96 = tpu.matmul %94, %95, %cst_47 {dimension_numbers = #tpu.dot_dimension_numbers<[1], [0], [0], [1], [0, 0, 1, 1], [], []>} : vector<8x8xbf16>, vector<8x32xbf16>, vector<8x32xf32> -> vector<8x32xf32>
    %97 = arith.addf %92, %96 : vector<8x32xf32>
    %c0_48 = arith.constant 0 : index
    %c0_49 = arith.constant 0 : index
    %98 = vector.load %arg20[%c0_48, %c0_49] : memref<8x32xf32, #tpu.memory_space<vmem>>, vector<8x32xf32>
    tpu.vector_store %arg20[%c0_48, %c0_49], %97 {strides = array<i32>} : memref<8x32xf32, #tpu.memory_space<vmem>>, vector<8x32xf32>,
    %99 = vector.extract_strided_slice %12 {offsets = [0, 0, 24], sizes = [1, 8, 8], strides = [1, 1, 1]} : vector<1x8x32xbf16> to vector<1x8x8xbf16>
    %100 = vector.extract_strided_slice %19 {offsets = [0, 0, 24], sizes = [1, 8, 8], strides = [1, 1, 1]} : vector<1x8x32xbf16> to vector<1x8x8xbf16>
    %101 = vector.extract_strided_slice %26 {offsets = [0, 0, 24], sizes = [1, 8, 8], strides = [1, 1, 1]} : vector<1x8x32xbf16> to vector<1x8x8xbf16>
    "tpu.trace_start"() <{level = 10 : i32, message = "bqd,bkd->bqk"}> : () -> ()
    %cst_50 = arith.constant dense<0.000000e+00> : vector<1x8x8xf32>
    %102 = tpu.matmul %99, %100, %cst_50 {dimension_numbers = #tpu.dot_dimension_numbers<[2], [2], [1], [1], [0, 0, 0, 1, 1, 1], [0], [0]>} : vector<1x8x8xbf16>, vector<1x8x8xbf16>, vector<1x8x8xf32> -> vector<1x8x8xf32>
    "tpu.trace_stop"() : () -> ()
    %cst_51 = arith.constant dense<0xFF800000> : vector<1x8xf32>
    %103 = vector.multi_reduction <maximumf>, %102, %cst_51 [2] : vector<1x8x8xf32> to vector<1x8xf32>
    %104 = vector.shape_cast %103 : vector<1x8xf32> to vector<1x8x1xf32>
    %105 = vector.broadcast %104 : vector<1x8x1xf32> to vector<1x8x8xf32>
    %106 = arith.subf %102, %105 : vector<1x8x8xf32>
    %107 = math.exp %106 : vector<1x8x8xf32>
    %cst_52 = arith.constant dense<0.000000e+00> : vector<1x8xf32>
    %108 = vector.multi_reduction <add>, %107, %cst_52 [2] : vector<1x8x8xf32> to vector<1x8xf32>
    %109 = vector.shape_cast %108 : vector<1x8xf32> to vector<1x8x1xf32>
    %110 = tpu.reciprocal %109 {approx = true} : vector<1x8x1xf32> -> vector<1x8x1xf32>
    %111 = vector.broadcast %110 : vector<1x8x1xf32> to vector<1x8x8xf32>
    %112 = arith.mulf %107, %111 : vector<1x8x8xf32>
    %113 = arith.truncf %112 : vector<1x8x8xf32> to vector<1x8x8xbf16>
    "tpu.trace_start"() <{level = 10 : i32, message = "bqk,bkd->bqd"}> : () -> ()
    %cst_53 = arith.constant dense<0.000000e+00> : vector<1x8x8xf32>
    %114 = tpu.matmul %113, %101, %cst_53 {dimension_numbers = #tpu.dot_dimension_numbers<[2], [1], [1], [2], [0, 0, 0, 1, 1, 2], [0], [0]>} : vector<1x8x8xbf16>, vector<1x8x8xbf16>, vector<1x8x8xf32> -> vector<1x8x8xf32>
    "tpu.trace_stop"() : () -> ()
    %c0_54 = arith.constant 0 : index
    %c0_55 = arith.constant 0 : index
    %115 = vector.load %arg20[%c0_54, %c0_55] : memref<8x32xf32, #tpu.memory_space<vmem>>, vector<8x32xf32>
    %116 = vector.shape_cast %114 : vector<1x8x8xf32> to vector<8x8xf32>
    %117 = arith.truncf %116 : vector<8x8xf32> to vector<8x8xbf16>
    %118 = vector.extract_strided_slice %27 {offsets = [24, 0], sizes = [8, 32], strides = [1, 1]} : vector<32x32xbf16> to vector<8x32xbf16>
    %cst_56 = arith.constant dense<0.000000e+00> : vector<8x32xf32>
    %119 = tpu.matmul %117, %118, %cst_56 {dimension_numbers = #tpu.dot_dimension_numbers<[1], [0], [0], [1], [0, 0, 1, 1], [], []>} : vector<8x8xbf16>, vector<8x32xbf16>, vector<8x32xf32> -> vector<8x32xf32>
    %120 = arith.addf %115, %119 : vector<8x32xf32>
    %c0_57 = arith.constant 0 : index
    %c0_58 = arith.constant 0 : index
    %121 = vector.load %arg20[%c0_57, %c0_58] : memref<8x32xf32, #tpu.memory_space<vmem>>, vector<8x32xf32>
    tpu.vector_store %arg20[%c0_57, %c0_58], %120 {strides = array<i32>} : memref<8x32xf32, #tpu.memory_space<vmem>>, vector<8x32xf32>,
    %c0_59 = arith.constant 0 : index
    %c0_60 = arith.constant 0 : index
    %122 = vector.load %arg20[%c0_59, %c0_60] : memref<8x32xf32, #tpu.memory_space<vmem>>, vector<8x32xf32>
    %c0_61 = arith.constant 0 : index
    %c0_62 = arith.constant 0 : index
    %123 = vector.load %arg10[%c0_61, %c0_62] : memref<1x32xf32, #tpu.memory_space<vmem>>, vector<1x32xf32>
    %124 = vector.broadcast %123 : vector<1x32xf32> to vector<8x32xf32>
    %125 = arith.addf %122, %124 : vector<8x32xf32>
    %126 = arith.addf %0, %125 : vector<8x32xf32>
    %c0_63 = arith.constant 0 : index
    %c0_64 = arith.constant 0 : index
    %127 = vector.load %arg11[%c0_63, %c0_64] : memref<1x32xf32, #tpu.memory_space<vmem>>, vector<1x32xf32>
    %c0_65 = arith.constant 0 : index
    %c0_66 = arith.constant 0 : index
    %128 = vector.load %arg12[%c0_65, %c0_66] : memref<1x32xf32, #tpu.memory_space<vmem>>, vector<1x32xf32>
    %cst_67 = arith.constant dense<0.000000e+00> : vector<8xf32>
    %129 = vector.multi_reduction <add>, %126, %cst_67 [1] : vector<8x32xf32> to vector<8xf32>
    %130 = vector.shape_cast %129 : vector<8xf32> to vector<8x1xf32>
    %cst_68 = arith.constant 3.200000e+01 : f32
    %131 = vector.broadcast %cst_68 : f32 to vector<8x1xf32>
    %132 = arith.divf %130, %131 : vector<8x1xf32>
    %133 = vector.broadcast %132 : vector<8x1xf32> to vector<8x32xf32>
    %134 = arith.subf %126, %133 : vector<8x32xf32>
    %135 = arith.mulf %134, %134 : vector<8x32xf32>
    %cst_69 = arith.constant dense<0.000000e+00> : vector<8xf32>
    %136 = vector.multi_reduction <add>, %135, %cst_69 [1] : vector<8x32xf32> to vector<8xf32>
    %137 = vector.shape_cast %136 : vector<8xf32> to vector<8x1xf32>
    %cst_70 = arith.constant 3.200000e+01 : f32
    %138 = vector.broadcast %cst_70 : f32 to vector<8x1xf32>
    %139 = arith.divf %137, %138 : vector<8x1xf32>
    %140 = vector.broadcast %132 : vector<8x1xf32> to vector<8x32xf32>
    %141 = arith.subf %126, %140 : vector<8x32xf32>
    %cst_71 = arith.constant 9.99999974E-6 : f32
    %142 = vector.broadcast %cst_71 : f32 to vector<8x1xf32>
    %143 = arith.addf %139, %142 : vector<8x1xf32>
    %144 = math.rsqrt %143 : vector<8x1xf32>
    %145 = vector.broadcast %144 : vector<8x1xf32> to vector<8x32xf32>
    %146 = arith.mulf %141, %145 : vector<8x32xf32>
    %147 = vector.broadcast %127 : vector<1x32xf32> to vector<8x32xf32>
    %148 = arith.mulf %146, %147 : vector<8x32xf32>
    %149 = vector.broadcast %128 : vector<1x32xf32> to vector<8x32xf32>
    %150 = arith.addf %148, %149 : vector<8x32xf32>
    %151 = arith.truncf %150 : vector<8x32xf32> to vector<8x32xbf16>
    %c0_72 = arith.constant 0 : index
    %c0_73 = arith.constant 0 : index
    %152 = vector.load %arg13[%c0_72, %c0_73] : memref<32x32xbf16, #tpu.memory_space<vmem>>, vector<32x32xbf16>
    %cst_74 = arith.constant dense<0.000000e+00> : vector<8x32xf32>
    %153 = tpu.matmul %151, %152, %cst_74 {dimension_numbers = #tpu.dot_dimension_numbers<[1], [0], [0], [1], [0, 0, 1, 1], [], []>} : vector<8x32xbf16>, vector<32x32xbf16>, vector<8x32xf32> -> vector<8x32xf32>
    %c0_75 = arith.constant 0 : index
    %c0_76 = arith.constant 0 : index
    %154 = vector.load %arg14[%c0_75, %c0_76] : memref<1x32xf32, #tpu.memory_space<vmem>>, vector<1x32xf32>
    %155 = vector.broadcast %154 : vector<1x32xf32> to vector<8x32xf32>
    %156 = arith.addf %153, %155 : vector<8x32xf32>
    %cst_77 = arith.constant 5.000000e-01 : f32
    %157 = vector.broadcast %cst_77 : f32 to vector<8x32xf32>
    %158 = arith.mulf %157, %156 : vector<8x32xf32>
    %cst_78 = arith.constant 0.707106769 : f32
    %159 = vector.broadcast %cst_78 : f32 to vector<8x32xf32>
    %160 = arith.mulf %156, %159 : vector<8x32xf32>
    %161 = math.erf %160 : vector<8x32xf32>
    %cst_79 = arith.constant 1.000000e+00 : f32
    %162 = vector.broadcast %cst_79 : f32 to vector<8x32xf32>
    %163 = arith.addf %162, %161 : vector<8x32xf32>
    %164 = arith.mulf %158, %163 : vector<8x32xf32>
    %165 = arith.truncf %164 : vector<8x32xf32> to vector<8x32xbf16>
    %c0_80 = arith.constant 0 : index
    %c0_81 = arith.constant 0 : index
    %166 = vector.load %arg15[%c0_80, %c0_81] : memref<32x32xbf16, #tpu.memory_space<vmem>>, vector<32x32xbf16>
    %cst_82 = arith.constant dense<0.000000e+00> : vector<8x32xf32>
    %167 = tpu.matmul %165, %166, %cst_82 {dimension_numbers = #tpu.dot_dimension_numbers<[1], [0], [0], [1], [0, 0, 1, 1], [], []>} : vector<8x32xbf16>, vector<32x32xbf16>, vector<8x32xf32> -> vector<8x32xf32>
    %c0_83 = arith.constant 0 : index
    %c0_84 = arith.constant 0 : index
    %168 = vector.load %arg16[%c0_83, %c0_84] : memref<1x32xf32, #tpu.memory_space<vmem>>, vector<1x32xf32>
    %169 = vector.broadcast %168 : vector<1x32xf32> to vector<8x32xf32>
    %170 = arith.addf %167, %169 : vector<8x32xf32>
    %171 = arith.addf %150, %170 : vector<8x32xf32>
    %c0_85 = arith.constant 0 : index
    %c0_86 = arith.constant 0 : index
    %172 = vector.load %arg17[%c0_85, %c0_86] : memref<1x32xf32, #tpu.memory_space<vmem>>, vector<1x32xf32>
    %c0_87 = arith.constant 0 : index
    %c0_88 = arith.constant 0 : index
    %173 = vector.load %arg18[%c0_87, %c0_88] : memref<1x32xf32, #tpu.memory_space<vmem>>, vector<1x32xf32>
    %cst_89 = arith.constant dense<0.000000e+00> : vector<8xf32>
    %174 = vector.multi_reduction <add>, %171, %cst_89 [1] : vector<8x32xf32> to vector<8xf32>
    %175 = vector.shape_cast %174 : vector<8xf32> to vector<8x1xf32>
    %cst_90 = arith.constant 3.200000e+01 : f32
    %176 = vector.broadcast %cst_90 : f32 to vector<8x1xf32>
    %177 = arith.divf %175, %176 : vector<8x1xf32>
    %178 = vector.broadcast %177 : vector<8x1xf32> to vector<8x32xf32>
    %179 = arith.subf %171, %178 : vector<8x32xf32>
    %180 = arith.mulf %179, %179 : vector<8x32xf32>
    %cst_91 = arith.constant dense<0.000000e+00> : vector<8xf32>
    %181 = vector.multi_reduction <add>, %180, %cst_91 [1] : vector<8x32xf32> to vector<8xf32>
    %182 = vector.shape_cast %181 : vector<8xf32> to vector<8x1xf32>
    %cst_92 = arith.constant 3.200000e+01 : f32
    %183 = vector.broadcast %cst_92 : f32 to vector<8x1xf32>
    %184 = arith.divf %182, %183 : vector<8x1xf32>
    %185 = vector.broadcast %177 : vector<8x1xf32> to vector<8x32xf32>
    %186 = arith.subf %171, %185 : vector<8x32xf32>
    %cst_93 = arith.constant 9.99999974E-6 : f32
    %187 = vector.broadcast %cst_93 : f32 to vector<8x1xf32>
    %188 = arith.addf %184, %187 : vector<8x1xf32>
    %189 = math.rsqrt %188 : vector<8x1xf32>
    %190 = vector.broadcast %189 : vector<8x1xf32> to vector<8x32xf32>
    %191 = arith.mulf %186, %190 : vector<8x32xf32>
    %192 = vector.broadcast %172 : vector<1x32xf32> to vector<8x32xf32>
    %193 = arith.mulf %191, %192 : vector<8x32xf32>
    %194 = vector.broadcast %173 : vector<1x32xf32> to vector<8x32xf32>
    %195 = arith.addf %193, %194 : vector<8x32xf32>
    %c0_94 = arith.constant 0 : index
    %c0_95 = arith.constant 0 : index
    %196 = vector.load %arg19[%c0_94, %c0_95] : memref<8x32xf32, #tpu.memory_space<vmem>>, vector<8x32xf32>
    tpu.vector_store %arg19[%c0_94, %c0_95], %195 {strides = array<i32>} : memref<8x32xf32, #tpu.memory_space<vmem>>, vector<8x32xf32>,
    return
  }
  func.func @transform_0(%arg0: i32) -> (i32, i32) {
    %c0_i32 = arith.constant 0 : i32
    %c0_i32_0 = arith.constant 0 : i32
    return %arg0, %c0_i32 : i32, i32
  }
  func.func @transform_1(%arg0: i32) -> (i32, i32) {
    %c0_i32 = arith.constant 0 : i32
    %c0_i32_0 = arith.constant 0 : i32
    return %arg0, %c0_i32 : i32, i32
  }
  func.func @transform_2(%arg0: i32) -> (i32, i32) {
    %c0_i32 = arith.constant 0 : i32
    %c0_i32_0 = arith.constant 0 : i32
    %c0_i32_1 = arith.constant 0 : i32
    return %c0_i32, %c0_i32_0 : i32, i32
  }
  func.func @transform_3(%arg0: i32) -> (i32, i32) {
    %c0_i32 = arith.constant 0 : i32
    %c0_i32_0 = arith.constant 0 : i32
    %c0_i32_1 = arith.constant 0 : i32
    return %c0_i32, %c0_i32_0 : i32, i32
  }
  func.func @transform_4(%arg0: i32) -> (i32, i32) {
    %c0_i32 = arith.constant 0 : i32
    %c0_i32_0 = arith.constant 0 : i32
    %c0_i32_1 = arith.constant 0 : i32
    return %c0_i32, %c0_i32_0 : i32, i32
  }
  func.func @transform_5(%arg0: i32) -> (i32, i32) {
    %c0_i32 = arith.constant 0 : i32
    %c0_i32_0 = arith.constant 0 : i32
    %c0_i32_1 = arith.constant 0 : i32
    return %c0_i32, %c0_i32_0 : i32, i32
  }
  func.func @transform_6(%arg0: i32) -> (i32, i32) {
    %c0_i32 = arith.constant 0 : i32
    %c0_i32_0 = arith.constant 0 : i32
    %c0_i32_1 = arith.constant 0 : i32
    return %c0_i32, %c0_i32_0 : i32, i32
  }
  func.func @transform_7(%arg0: i32) -> (i32, i32) {
    %c0_i32 = arith.constant 0 : i32
    %c0_i32_0 = arith.constant 0 : i32
    %c0_i32_1 = arith.constant 0 : i32
    return %c0_i32, %c0_i32_0 : i32, i32
  }
  func.func @transform_8(%arg0: i32) -> (i32, i32) {
    %c0_i32 = arith.constant 0 : i32
    %c0_i32_0 = arith.constant 0 : i32
    %c0_i32_1 = arith.constant 0 : i32
    return %c0_i32, %c0_i32_0 : i32, i32
  }
  func.func @transform_9(%arg0: i32) -> (i32, i32) {
    %c0_i32 = arith.constant 0 : i32
    %c0_i32_0 = arith.constant 0 : i32
    %c0_i32_1 = arith.constant 0 : i32
    return %c0_i32, %c0_i32_0 : i32, i32
  }
  func.func @transform_10(%arg0: i32) -> (i32, i32) {
    %c0_i32 = arith.constant 0 : i32
    %c0_i32_0 = arith.constant 0 : i32
    %c0_i32_1 = arith.constant 0 : i32
    return %c0_i32, %c0_i32_0 : i32, i32
  }
  func.func @transform_11(%arg0: i32) -> (i32, i32) {
    %c0_i32 = arith.constant 0 : i32
    %c0_i32_0 = arith.constant 0 : i32
    %c0_i32_1 = arith.constant 0 : i32
    return %c0_i32, %c0_i32_0 : i32, i32
  }
  func.func @transform_12(%arg0: i32) -> (i32, i32) {
    %c0_i32 = arith.constant 0 : i32
    %c0_i32_0 = arith.constant 0 : i32
    %c0_i32_1 = arith.constant 0 : i32
    return %c0_i32, %c0_i32_0 : i32, i32
  }
  func.func @transform_13(%arg0: i32) -> (i32, i32) {
    %c0_i32 = arith.constant 0 : i32
    %c0_i32_0 = arith.constant 0 : i32
    %c0_i32_1 = arith.constant 0 : i32
    return %c0_i32, %c0_i32_0 : i32, i32
  }
  func.func @transform_14(%arg0: i32) -> (i32, i32) {
    %c0_i32 = arith.constant 0 : i32
    %c0_i32_0 = arith.constant 0 : i32
    %c0_i32_1 = arith.constant 0 : i32
    return %c0_i32, %c0_i32_0 : i32, i32
  }
  func.func @transform_15(%arg0: i32) -> (i32, i32) {
    %c0_i32 = arith.constant 0 : i32
    %c0_i32_0 = arith.constant 0 : i32
    %c0_i32_1 = arith.constant 0 : i32
    return %c0_i32, %c0_i32_0 : i32, i32
  }
  func.func @transform_16(%arg0: i32) -> (i32, i32) {
    %c0_i32 = arith.constant 0 : i32
    %c0_i32_0 = arith.constant 0 : i32
    %c0_i32_1 = arith.constant 0 : i32
    return %c0_i32, %c0_i32_0 : i32, i32
  }
  func.func @transform_17(%arg0: i32) -> (i32, i32) {
    %c0_i32 = arith.constant 0 : i32
    %c0_i32_0 = arith.constant 0 : i32
    %c0_i32_1 = arith.constant 0 : i32
    return %c0_i32, %c0_i32_0 : i32, i32
  }
  func.func @transform_18(%arg0: i32) -> (i32, i32) {
    %c0_i32 = arith.constant 0 : i32
    %c0_i32_0 = arith.constant 0 : i32
    return %arg0, %c0_i32 : i32, i32
  }
}

module attributes {stable_mosaic.version = 11 : i64} {
  func.func @co_atten_kernel(%arg0: i32, %arg1: memref<8x32xf32, #tpu.memory_space<vmem>>, %arg2: memref<8x32xf32, #tpu.memory_space<vmem>>, %arg3: memref<32x32xbf16, #tpu.memory_space<vmem>>, %arg4: memref<1x32xf32, #tpu.memory_space<vmem>>, %arg5: memref<32x32xbf16, #tpu.memory_space<vmem>>, %arg6: memref<1x32xf32, #tpu.memory_space<vmem>>, %arg7: memref<32x32xbf16, #tpu.memory_space<vmem>>, %arg8: memref<1x32xf32, #tpu.memory_space<vmem>>, %arg9: memref<32x32xbf16, #tpu.memory_space<vmem>>, %arg10: memref<1x32xf32, #tpu.memory_space<vmem>>, %arg11: memref<1x32xf32, #tpu.memory_space<vmem>>, %arg12: memref<1x32xf32, #tpu.memory_space<vmem>>, %arg13: memref<32x32xbf16, #tpu.memory_space<vmem>>, %arg14: memref<1x32xf32, #tpu.memory_space<vmem>>, %arg15: memref<32x32xbf16, #tpu.memory_space<vmem>>, %arg16: memref<1x32xf32, #tpu.memory_space<vmem>>, %arg17: memref<1x32xf32, #tpu.memory_space<vmem>>, %arg18: memref<1x32xf32, #tpu.memory_space<vmem>>, %arg19: memref<8x32xf32, #tpu.memory_space<vmem>>, %arg20: memref<8x32xf32, #tpu.memory_space<vmem>>) attributes {dimension_semantics = [#tpu.dimension_semantics<parallel>], iteration_bounds = array<i64: 2>, scalar_prefetch = 0 : i64, scratch_operands = 1 : i64, tpu.core_type = #tpu.core_type<tc>, window_params = [{transform_indices = @transform_0, window_bounds = array<i64: 8, 32>}, {transform_indices = @transform_1, window_bounds = array<i64: 8, 32>}, {pipeline_mode = #tpu.pipeline_mode<synchronous>, transform_indices = @transform_2, window_bounds = array<i64: 32, 32>}, {pipeline_mode = #tpu.pipeline_mode<synchronous>, transform_indices = @transform_3, window_bounds = array<i64: 1, 32>}, {pipeline_mode = #tpu.pipeline_mode<synchronous>, transform_indices = @transform_4, window_bounds = array<i64: 32, 32>}, {pipeline_mode = #tpu.pipeline_mode<synchronous>, transform_indices = @transform_5, window_bounds = array<i64: 1, 32>}, {pipeline_mode = #tpu.pipeline_mode<synchronous>, transform_indices = @transform_6, window_bounds = array<i64: 32, 32>}, {pipeline_mode = #tpu.pipeline_mode<synchronous>, transform_indices = @transform_7, window_bounds = array<i64: 1, 32>}, {pipeline_mode = #tpu.pipeline_mode<synchronous>, transform_indices = @transform_8, window_bounds = array<i64: 32, 32>}, {pipeline_mode = #tpu.pipeline_mode<synchronous>, transform_indices = @transform_9, window_bounds = array<i64: 1, 32>}, {pipeline_mode = #tpu.pipeline_mode<synchronous>, transform_indices = @transform_10, window_bounds = array<i64: 1, 32>}, {pipeline_mode = #tpu.pipeline_mode<synchronous>, transform_indices = @transform_11, window_bounds = array<i64: 1, 32>}, {pipeline_mode = #tpu.pipeline_mode<synchronous>, transform_indices = @transform_12, window_bounds = array<i64: 32, 32>}, {pipeline_mode = #tpu.pipeline_mode<synchronous>, transform_indices = @transform_13, window_bounds = array<i64: 1, 32>}, {pipeline_mode = #tpu.pipeline_mode<synchronous>, transform_indices = @transform_14, window_bounds = array<i64: 32, 32>}, {pipeline_mode = #tpu.pipeline_mode<synchronous>, transform_indices = @transform_15, window_bounds = array<i64: 1, 32>}, {pipeline_mode = #tpu.pipeline_mode<synchronous>, transform_indices = @transform_16, window_bounds = array<i64: 1, 32>}, {pipeline_mode = #tpu.pipeline_mode<synchronous>, transform_indices = @transform_17, window_bounds = array<i64: 1, 32>}, {transform_indices = @transform_18, window_bounds = array<i64: 8, 32>}]} {
    %c0 = arith.constant 0 : index
    %c0_0 = arith.constant 0 : index
    %0 = vector.load %arg1[%c0, %c0_0] : memref<8x32xf32, #tpu.memory_space<vmem>>, vector<8x32xf32>
    %c0_1 = arith.constant 0 : index
    %c0_2 = arith.constant 0 : index
    %1 = vector.load %arg2[%c0_1, %c0_2] : memref<8x32xf32, #tpu.memory_space<vmem>>, vector<8x32xf32>
    %2 = arith.truncf %0 : vector<8x32xf32> to vector<8x32xbf16>
    %3 = arith.truncf %1 : vector<8x32xf32> to vector<8x32xbf16>
    %c0_3 = arith.constant 0 : index
    %c0_4 = arith.constant 0 : index
    %4 = vector.load %arg3[%c0_3, %c0_4] : memref<32x32xbf16, #tpu.memory_space<vmem>>, vector<32x32xbf16>
    %cst = arith.constant dense<0.000000e+00> : vector<8x32xf32>
    %5 = tpu.matmul %2, %4, %cst {dimension_numbers = #tpu.dot_dimension_numbers<[1], [0], [0], [1], [0, 0, 1, 1], [], []>} : vector<8x32xbf16>, vector<32x32xbf16>, vector<8x32xf32> -> vector<8x32xf32>
    %c0_5 = arith.constant 0 : index
    %c0_6 = arith.constant 0 : index
    %6 = vector.load %arg4[%c0_5, %c0_6] : memref<1x32xf32, #tpu.memory_space<vmem>>, vector<1x32xf32>
    %7 = vector.broadcast %6 : vector<1x32xf32> to vector<8x32xf32>
    %8 = arith.addf %5, %7 : vector<8x32xf32>
    %cst_7 = arith.constant 0.353553385 : f32
    %9 = vector.broadcast %cst_7 : f32 to vector<8x32xf32>
    %10 = arith.mulf %8, %9 : vector<8x32xf32>
    %11 = vector.shape_cast %10 : vector<8x32xf32> to vector<1x8x32xf32>
    %12 = arith.truncf %11 : vector<1x8x32xf32> to vector<1x8x32xbf16>
    %c0_8 = arith.constant 0 : index
    %c0_9 = arith.constant 0 : index
    %13 = vector.load %arg5[%c0_8, %c0_9] : memref<32x32xbf16, #tpu.memory_space<vmem>>, vector<32x32xbf16>
    %cst_10 = arith.constant dense<0.000000e+00> : vector<8x32xf32>
    %14 = tpu.matmul %3, %13, %cst_10 {dimension_numbers = #tpu.dot_dimension_numbers<[1], [0], [0], [1], [0, 0, 1, 1], [], []>} : vector<8x32xbf16>, vector<32x32xbf16>, vector<8x32xf32> -> vector<8x32xf32>
    %c0_11 = arith.constant 0 : index
    %c0_12 = arith.constant 0 : index
    %15 = vector.load %arg6[%c0_11, %c0_12] : memref<1x32xf32, #tpu.memory_space<vmem>>, vector<1x32xf32>
    %16 = vector.broadcast %15 : vector<1x32xf32> to vector<8x32xf32>
    %17 = arith.addf %14, %16 : vector<8x32xf32>
    %18 = vector.shape_cast %17 : vector<8x32xf32> to vector<1x8x32xf32>
    %19 = arith.truncf %18 : vector<1x8x32xf32> to vector<1x8x32xbf16>
    %c0_13 = arith.constant 0 : index
    %c0_14 = arith.constant 0 : index
    %20 = vector.load %arg7[%c0_13, %c0_14] : memref<32x32xbf16, #tpu.memory_space<vmem>>, vector<32x32xbf16>
    %cst_15 = arith.constant dense<0.000000e+00> : vector<8x32xf32>
    %21 = tpu.matmul %3, %20, %cst_15 {dimension_numbers = #tpu.dot_dimension_numbers<[1], [0], [0], [1], [0, 0, 1, 1], [], []>} : vector<8x32xbf16>, vector<32x32xbf16>, vector<8x32xf32> -> vector<8x32xf32>
    %c0_16 = arith.constant 0 : index
    %c0_17 = arith.constant 0 : index
    %22 = vector.load %arg8[%c0_16, %c0_17] : memref<1x32xf32, #tpu.memory_space<vmem>>, vector<1x32xf32>
    %23 = vector.broadcast %22 : vector<1x32xf32> to vector<8x32xf32>
    %24 = arith.addf %21, %23 : vector<8x32xf32>
    %25 = vector.shape_cast %24 : vector<8x32xf32> to vector<1x8x32xf32>
    %26 = arith.truncf %25 : vector<1x8x32xf32> to vector<1x8x32xbf16>
    %c0_18 = arith.constant 0 : index
    %c0_19 = arith.constant 0 : index
    %27 = vector.load %arg9[%c0_18, %c0_19] : memref<32x32xbf16, #tpu.memory_space<vmem>>, vector<32x32xbf16>
    %cst_20 = arith.constant 0.000000e+00 : f32
    %28 = vector.broadcast %cst_20 : f32 to vector<8x32xf32>
    %c0_21 = arith.constant 0 : index
    %c0_22 = arith.constant 0 : index
    %29 = vector.load %arg20[%c0_21, %c0_22] : memref<8x32xf32, #tpu.memory_space<vmem>>, vector<8x32xf32>
    tpu.vector_store %arg20[%c0_21, %c0_22], %28 {strides = array<i32>} : memref<8x32xf32, #tpu.memory_space<vmem>>, vector<8x32xf32>,
    %30 = vector.extract_strided_slice %12 {offsets = [0, 0, 0], sizes = [1, 8, 8], strides = [1, 1, 1]} : vector<1x8x32xbf16> to vector<1x8x8xbf16>
    %31 = vector.extract_strided_slice %19 {offsets = [0, 0, 0], sizes = [1, 8, 8], strides = [1, 1, 1]} : vector<1x8x32xbf16> to vector<1x8x8xbf16>
    %32 = vector.extract_strided_slice %26 {offsets = [0, 0, 0], sizes = [1, 8, 8], strides = [1, 1, 1]} : vector<1x8x32xbf16> to vector<1x8x8xbf16>
    "tpu.trace_start"() <{level = 10 : i32, message = "bqd,bkd->bqk"}> : () -> ()
    %cst_23 = arith.constant dense<0.000000e+00> : vector<1x8x8xf32>
    %33 = tpu.matmul %30, %31, %cst_23 {dimension_numbers = #tpu.dot_dimension_numbers<[2], [2], [1], [1], [0, 0, 0, 1, 1, 1], [0], [0]>} : vector<1x8x8xbf16>, vector<1x8x8xbf16>, vector<1x8x8xf32> -> vector<1x8x8xf32>
    "tpu.trace_stop"() : () -> ()
    %cst_24 = arith.constant dense<0xFF800000> : vector<1x8xf32>
    %34 = vector.multi_reduction <maximumf>, %33, %cst_24 [2] : vector<1x8x8xf32> to vector<1x8xf32>
    %35 = vector.shape_cast %34 : vector<1x8xf32> to vector<1x8x1xf32>
    %36 = vector.broadcast %35 : vector<1x8x1xf32> to vector<1x8x8xf32>
    %37 = arith.subf %33, %36 : vector<1x8x8xf32>
    %38 = math.exp %37 : vector<1x8x8xf32>
    %cst_25 = arith.constant dense<0.000000e+00> : vector<1x8xf32>
    %39 = vector.multi_reduction <add>, %38, %cst_25 [2] : vector<1x8x8xf32> to vector<1x8xf32>
    %40 = vector.shape_cast %39 : vector<1x8xf32> to vector<1x8x1xf32>
    %41 = tpu.reciprocal %40 {approx = true} : vector<1x8x1xf32> -> vector<1x8x1xf32>
    %42 = vector.broadcast %41 : vector<1x8x1xf32> to vector<1x8x8xf32>
    %43 = arith.mulf %38, %42 : vector<1x8x8xf32>
    %44 = arith.truncf %43 : vector<1x8x8xf32> to vector<1x8x8xbf16>
    "tpu.trace_start"() <{level = 10 : i32, message = "bqk,bkd->bqd"}> : () -> ()
    %cst_26 = arith.constant dense<0.000000e+00> : vector<1x8x8xf32>
    %45 = tpu.matmul %44, %32, %cst_26 {dimension_numbers = #tpu.dot_dimension_numbers<[2], [1], [1], [2], [0, 0, 0, 1, 1, 2], [0], [0]>} : vector<1x8x8xbf16>, vector<1x8x8xbf16>, vector<1x8x8xf32> -> vector<1x8x8xf32>
    "tpu.trace_stop"() : () -> ()
    %c0_27 = arith.constant 0 : index
    %c0_28 = arith.constant 0 : index
    %46 = vector.load %arg20[%c0_27, %c0_28] : memref<8x32xf32, #tpu.memory_space<vmem>>, vector<8x32xf32>
    %47 = vector.shape_cast %45 : vector<1x8x8xf32> to vector<8x8xf32>
    %48 = arith.truncf %47 : vector<8x8xf32> to vector<8x8xbf16>
    %49 = vector.extract_strided_slice %27 {offsets = [0, 0], sizes = [8, 32], strides = [1, 1]} : vector<32x32xbf16> to vector<8x32xbf16>
    %cst_29 = arith.constant dense<0.000000e+00> : vector<8x32xf32>
    %50 = tpu.matmul %48, %49, %cst_29 {dimension_numbers = #tpu.dot_dimension_numbers<[1], [0], [0], [1], [0, 0, 1, 1], [], []>} : vector<8x8xbf16>, vector<8x32xbf16>, vector<8x32xf32> -> vector<8x32xf32>
    %51 = arith.addf %46, %50 : vector<8x32xf32>
    %c0_30 = arith.constant 0 : index
    %c0_31 = arith.constant 0 : index
    %52 = vector.load %arg20[%c0_30, %c0_31] : memref<8x32xf32, #tpu.memory_space<vmem>>, vector<8x32xf32>
    tpu.vector_store %arg20[%c0_30, %c0_31], %51 {strides = array<i32>} : memref<8x32xf32, #tpu.memory_space<vmem>>, vector<8x32xf32>,
    %53 = vector.extract_strided_slice %12 {offsets = [0, 0, 8], sizes = [1, 8, 8], strides = [1, 1, 1]} : vector<1x8x32xbf16> to vector<1x8x8xbf16>
    %54 = vector.extract_strided_slice %19 {offsets = [0, 0, 8], sizes = [1, 8, 8], strides = [1, 1, 1]} : vector<1x8x32xbf16> to vector<1x8x8xbf16>
    %55 = vector.extract_strided_slice %26 {offsets = [0, 0, 8], sizes = [1, 8, 8], strides = [1, 1, 1]} : vector<1x8x32xbf16> to vector<1x8x8xbf16>
    "tpu.trace_start"() <{level = 10 : i32, message = "bqd,bkd->bqk"}> : () -> ()
    %cst_32 = arith.constant dense<0.000000e+00> : vector<1x8x8xf32>
    %56 = tpu.matmul %53, %54, %cst_32 {dimension_numbers = #tpu.dot_dimension_numbers<[2], [2], [1], [1], [0, 0, 0, 1, 1, 1], [0], [0]>} : vector<1x8x8xbf16>, vector<1x8x8xbf16>, vector<1x8x8xf32> -> vector<1x8x8xf32>
    "tpu.trace_stop"() : () -> ()
    %cst_33 = arith.constant dense<0xFF800000> : vector<1x8xf32>
    %57 = vector.multi_reduction <maximumf>, %56, %cst_33 [2] : vector<1x8x8xf32> to vector<1x8xf32>
    %58 = vector.shape_cast %57 : vector<1x8xf32> to vector<1x8x1xf32>
    %59 = vector.broadcast %58 : vector<1x8x1xf32> to vector<1x8x8xf32>
    %60 = arith.subf %56, %59 : vector<1x8x8xf32>
    %61 = math.exp %60 : vector<1x8x8xf32>
    %cst_34 = arith.constant dense<0.000000e+00> : vector<1x8xf32>
    %62 = vector.multi_reduction <add>, %61, %cst_34 [2] : vector<1x8x8xf32> to vector<1x8xf32>
    %63 = vector.shape_cast %62 : vector<1x8xf32> to vector<1x8x1xf32>
    %64 = tpu.reciprocal %63 {approx = true} : vector<1x8x1xf32> -> vector<1x8x1xf32>
    %65 = vector.broadcast %64 : vector<1x8x1xf32> to vector<1x8x8xf32>
    %66 = arith.mulf %61, %65 : vector<1x8x8xf32>
    %67 = arith.truncf %66 : vector<1x8x8xf32> to vector<1x8x8xbf16>
    "tpu.trace_start"() <{level = 10 : i32, message = "bqk,bkd->bqd"}> : () -> ()
    %cst_35 = arith.constant dense<0.000000e+00> : vector<1x8x8xf32>
    %68 = tpu.matmul %67, %55, %cst_35 {dimension_numbers = #tpu.dot_dimension_numbers<[2], [1], [1], [2], [0, 0, 0, 1, 1, 2], [0], [0]>} : vector<1x8x8xbf16>, vector<1x8x8xbf16>, vector<1x8x8xf32> -> vector<1x8x8xf32>
    "tpu.trace_stop"() : () -> ()
    %c0_36 = arith.constant 0 : index
    %c0_37 = arith.constant 0 : index
    %69 = vector.load %arg20[%c0_36, %c0_37] : memref<8x32xf32, #tpu.memory_space<vmem>>, vector<8x32xf32>
    %70 = vector.shape_cast %68 : vector<1x8x8xf32> to vector<8x8xf32>
    %71 = arith.truncf %70 : vector<8x8xf32> to vector<8x8xbf16>
    %72 = vector.extract_strided_slice %27 {offsets = [8, 0], sizes = [8, 32], strides = [1, 1]} : vector<32x32xbf16> to vector<8x32xbf16>
    %cst_38 = arith.constant dense<0.000000e+00> : vector<8x32xf32>
    %73 = tpu.matmul %71, %72, %cst_38 {dimension_numbers = #tpu.dot_dimension_numbers<[1], [0], [0], [1], [0, 0, 1, 1], [], []>} : vector<8x8xbf16>, vector<8x32xbf16>, vector<8x32xf32> -> vector<8x32xf32>
    %74 = arith.addf %69, %73 : vector<8x32xf32>
    %c0_39 = arith.constant 0 : index
    %c0_40 = arith.constant 0 : index
    %75 = vector.load %arg20[%c0_39, %c0_40] : memref<8x32xf32, #tpu.memory_space<vmem>>, vector<8x32xf32>
    tpu.vector_store %arg20[%c0_39, %c0_40], %74 {strides = array<i32>} : memref<8x32xf32, #tpu.memory_space<vmem>>, vector<8x32xf32>,
    %76 = vector.extract_strided_slice %12 {offsets = [0, 0, 16], sizes = [1, 8, 8], strides = [1, 1, 1]} : vector<1x8x32xbf16> to vector<1x8x8xbf16>
    %77 = vector.extract_strided_slice %19 {offsets = [0, 0, 16], sizes = [1, 8, 8], strides = [1, 1, 1]} : vector<1x8x32xbf16> to vector<1x8x8xbf16>
    %78 = vector.extract_strided_slice %26 {offsets = [0, 0, 16], sizes = [1, 8, 8], strides = [1, 1, 1]} : vector<1x8x32xbf16> to vector<1x8x8xbf16>
    "tpu.trace_start"() <{level = 10 : i32, message = "bqd,bkd->bqk"}> : () -> ()
    %cst_41 = arith.constant dense<0.000000e+00> : vector<1x8x8xf32>
    %79 = tpu.matmul %76, %77, %cst_41 {dimension_numbers = #tpu.dot_dimension_numbers<[2], [2], [1], [1], [0, 0, 0, 1, 1, 1], [0], [0]>} : vector<1x8x8xbf16>, vector<1x8x8xbf16>, vector<1x8x8xf32> -> vector<1x8x8xf32>
    "tpu.trace_stop"() : () -> ()
    %cst_42 = arith.constant dense<0xFF800000> : vector<1x8xf32>
    %80 = vector.multi_reduction <maximumf>, %79, %cst_42 [2] : vector<1x8x8xf32> to vector<1x8xf32>
    %81 = vector.shape_cast %80 : vector<1x8xf32> to vector<1x8x1xf32>
    %82 = vector.broadcast %81 : vector<1x8x1xf32> to vector<1x8x8xf32>
    %83 = arith.subf %79, %82 : vector<1x8x8xf32>
    %84 = math.exp %83 : vector<1x8x8xf32>
    %cst_43 = arith.constant dense<0.000000e+00> : vector<1x8xf32>
    %85 = vector.multi_reduction <add>, %84, %cst_43 [2] : vector<1x8x8xf32> to vector<1x8xf32>
    %86 = vector.shape_cast %85 : vector<1x8xf32> to vector<1x8x1xf32>
    %87 = tpu.reciprocal %86 {approx = true} : vector<1x8x1xf32> -> vector<1x8x1xf32>
    %88 = vector.broadcast %87 : vector<1x8x1xf32> to vector<1x8x8xf32>
    %89 = arith.mulf %84, %88 : vector<1x8x8xf32>
    %90 = arith.truncf %89 : vector<1x8x8xf32> to vector<1x8x8xbf16>
    "tpu.trace_start"() <{level = 10 : i32, message = "bqk,bkd->bqd"}> : () -> ()
    %cst_44 = arith.constant dense<0.000000e+00> : vector<1x8x8xf32>
    %91 = tpu.matmul %90, %78, %cst_44 {dimension_numbers = #tpu.dot_dimension_numbers<[2], [1], [1], [2], [0, 0, 0, 1, 1, 2], [0], [0]>} : vector<1x8x8xbf16>, vector<1x8x8xbf16>, vector<1x8x8xf32> -> vector<1x8x8xf32>
    "tpu.trace_stop"() : () -> ()
    %c0_45 = arith.constant 0 : index
    %c0_46 = arith.constant 0 : index
    %92 = vector.load %arg20[%c0_45, %c0_46] : memref<8x32xf32, #tpu.memory_space<vmem>>, vector<8x32xf32>
    %93 = vector.shape_cast %91 : vector<1x8x8xf32> to vector<8x8xf32>
    %94 = arith.truncf %93 : vector<8x8xf32> to vector<8x8xbf16>
    %95 = vector.extract_strided_slice %27 {offsets = [16, 0], sizes = [8, 32], strides = [1, 1]} : vector<32x32xbf16> to vector<8x32xbf16>
    %cst_47 = arith.constant dense<0.000000e+00> : vector<8x32xf32>
    %96 = tpu.matmul %94, %95, %cst_47 {dimension_numbers = #tpu.dot_dimension_numbers<[1], [0], [0], [1], [0, 0, 1, 1], [], []>} : vector<8x8xbf16>, vector<8x32xbf16>, vector<8x32xf32> -> vector<8x32xf32>
    %97 = arith.addf %92, %96 : vector<8x32xf32>
    %c0_48 = arith.constant 0 : index
    %c0_49 = arith.constant 0 : index
    %98 = vector.load %arg20[%c0_48, %c0_49] : memref<8x32xf32, #tpu.memory_space<vmem>>, vector<8x32xf32>
    tpu.vector_store %arg20[%c0_48, %c0_49], %97 {strides = array<i32>} : memref<8x32xf32, #tpu.memory_space<vmem>>, vector<8x32xf32>,
    %99 = vector.extract_strided_slice %12 {offsets = [0, 0, 24], sizes = [1, 8, 8], strides = [1, 1, 1]} : vector<1x8x32xbf16> to vector<1x8x8xbf16>
    %100 = vector.extract_strided_slice %19 {offsets = [0, 0, 24], sizes = [1, 8, 8], strides = [1, 1, 1]} : vector<1x8x32xbf16> to vector<1x8x8xbf16>
    %101 = vector.extract_strided_slice %26 {offsets = [0, 0, 24], sizes = [1, 8, 8], strides = [1, 1, 1]} : vector<1x8x32xbf16> to vector<1x8x8xbf16>
    "tpu.trace_start"() <{level = 10 : i32, message = "bqd,bkd->bqk"}> : () -> ()
    %cst_50 = arith.constant dense<0.000000e+00> : vector<1x8x8xf32>
    %102 = tpu.matmul %99, %100, %cst_50 {dimension_numbers = #tpu.dot_dimension_numbers<[2], [2], [1], [1], [0, 0, 0, 1, 1, 1], [0], [0]>} : vector<1x8x8xbf16>, vector<1x8x8xbf16>, vector<1x8x8xf32> -> vector<1x8x8xf32>
    "tpu.trace_stop"() : () -> ()
    %cst_51 = arith.constant dense<0xFF800000> : vector<1x8xf32>
    %103 = vector.multi_reduction <maximumf>, %102, %cst_51 [2] : vector<1x8x8xf32> to vector<1x8xf32>
    %104 = vector.shape_cast %103 : vector<1x8xf32> to vector<1x8x1xf32>
    %105 = vector.broadcast %104 : vector<1x8x1xf32> to vector<1x8x8xf32>
    %106 = arith.subf %102, %105 : vector<1x8x8xf32>
    %107 = math.exp %106 : vector<1x8x8xf32>
    %cst_52 = arith.constant dense<0.000000e+00> : vector<1x8xf32>
    %108 = vector.multi_reduction <add>, %107, %cst_52 [2] : vector<1x8x8xf32> to vector<1x8xf32>
    %109 = vector.shape_cast %108 : vector<1x8xf32> to vector<1x8x1xf32>
    %110 = tpu.reciprocal %109 {approx = true} : vector<1x8x1xf32> -> vector<1x8x1xf32>
    %111 = vector.broadcast %110 : vector<1x8x1xf32> to vector<1x8x8xf32>
    %112 = arith.mulf %107, %111 : vector<1x8x8xf32>
    %113 = arith.truncf %112 : vector<1x8x8xf32> to vector<1x8x8xbf16>
    "tpu.trace_start"() <{level = 10 : i32, message = "bqk,bkd->bqd"}> : () -> ()
    %cst_53 = arith.constant dense<0.000000e+00> : vector<1x8x8xf32>
    %114 = tpu.matmul %113, %101, %cst_53 {dimension_numbers = #tpu.dot_dimension_numbers<[2], [1], [1], [2], [0, 0, 0, 1, 1, 2], [0], [0]>} : vector<1x8x8xbf16>, vector<1x8x8xbf16>, vector<1x8x8xf32> -> vector<1x8x8xf32>
    "tpu.trace_stop"() : () -> ()
    %c0_54 = arith.constant 0 : index
    %c0_55 = arith.constant 0 : index
    %115 = vector.load %arg20[%c0_54, %c0_55] : memref<8x32xf32, #tpu.memory_space<vmem>>, vector<8x32xf32>
    %116 = vector.shape_cast %114 : vector<1x8x8xf32> to vector<8x8xf32>
    %117 = arith.truncf %116 : vector<8x8xf32> to vector<8x8xbf16>
    %118 = vector.extract_strided_slice %27 {offsets = [24, 0], sizes = [8, 32], strides = [1, 1]} : vector<32x32xbf16> to vector<8x32xbf16>
    %cst_56 = arith.constant dense<0.000000e+00> : vector<8x32xf32>
    %119 = tpu.matmul %117, %118, %cst_56 {dimension_numbers = #tpu.dot_dimension_numbers<[1], [0], [0], [1], [0, 0, 1, 1], [], []>} : vector<8x8xbf16>, vector<8x32xbf16>, vector<8x32xf32> -> vector<8x32xf32>
    %120 = arith.addf %115, %119 : vector<8x32xf32>
    %c0_57 = arith.constant 0 : index
    %c0_58 = arith.constant 0 : index
    %121 = vector.load %arg20[%c0_57, %c0_58] : memref<8x32xf32, #tpu.memory_space<vmem>>, vector<8x32xf32>
    tpu.vector_store %arg20[%c0_57, %c0_58], %120 {strides = array<i32>} : memref<8x32xf32, #tpu.memory_space<vmem>>, vector<8x32xf32>,
    %c0_59 = arith.constant 0 : index
    %c0_60 = arith.constant 0 : index
    %122 = vector.load %arg20[%c0_59, %c0_60] : memref<8x32xf32, #tpu.memory_space<vmem>>, vector<8x32xf32>
    %c0_61 = arith.constant 0 : index
    %c0_62 = arith.constant 0 : index
    %123 = vector.load %arg10[%c0_61, %c0_62] : memref<1x32xf32, #tpu.memory_space<vmem>>, vector<1x32xf32>
    %124 = vector.broadcast %123 : vector<1x32xf32> to vector<8x32xf32>
    %125 = arith.addf %122, %124 : vector<8x32xf32>
    %126 = arith.addf %0, %125 : vector<8x32xf32>
    %c0_63 = arith.constant 0 : index
    %c0_64 = arith.constant 0 : index
    %127 = vector.load %arg11[%c0_63, %c0_64] : memref<1x32xf32, #tpu.memory_space<vmem>>, vector<1x32xf32>
    %c0_65 = arith.constant 0 : index
    %c0_66 = arith.constant 0 : index
    %128 = vector.load %arg12[%c0_65, %c0_66] : memref<1x32xf32, #tpu.memory_space<vmem>>, vector<1x32xf32>
    %cst_67 = arith.constant dense<0.000000e+00> : vector<8xf32>
    %129 = vector.multi_reduction <add>, %126, %cst_67 [1] : vector<8x32xf32> to vector<8xf32>
    %130 = vector.shape_cast %129 : vector<8xf32> to vector<8x1xf32>
    %cst_68 = arith.constant 3.200000e+01 : f32
    %131 = vector.broadcast %cst_68 : f32 to vector<8x1xf32>
    %132 = arith.divf %130, %131 : vector<8x1xf32>
    %133 = vector.broadcast %132 : vector<8x1xf32> to vector<8x32xf32>
    %134 = arith.subf %126, %133 : vector<8x32xf32>
    %135 = arith.mulf %134, %134 : vector<8x32xf32>
    %cst_69 = arith.constant dense<0.000000e+00> : vector<8xf32>
    %136 = vector.multi_reduction <add>, %135, %cst_69 [1] : vector<8x32xf32> to vector<8xf32>
    %137 = vector.shape_cast %136 : vector<8xf32> to vector<8x1xf32>
    %cst_70 = arith.constant 3.200000e+01 : f32
    %138 = vector.broadcast %cst_70 : f32 to vector<8x1xf32>
    %139 = arith.divf %137, %138 : vector<8x1xf32>
    %140 = vector.broadcast %132 : vector<8x1xf32> to vector<8x32xf32>
    %141 = arith.subf %126, %140 : vector<8x32xf32>
    %cst_71 = arith.constant 9.99999974E-6 : f32
    %142 = vector.broadcast %cst_71 : f32 to vector<8x1xf32>
    %143 = arith.addf %139, %142 : vector<8x1xf32>
    %144 = math.rsqrt %143 : vector<8x1xf32>
    %145 = vector.broadcast %144 : vector<8x1xf32> to vector<8x32xf32>
    %146 = arith.mulf %141, %145 : vector<8x32xf32>
    %147 = vector.broadcast %127 : vector<1x32xf32> to vector<8x32xf32>
    %148 = arith.mulf %146, %147 : vector<8x32xf32>
    %149 = vector.broadcast %128 : vector<1x32xf32> to vector<8x32xf32>
    %150 = arith.addf %148, %149 : vector<8x32xf32>
    %151 = arith.truncf %150 : vector<8x32xf32> to vector<8x32xbf16>
    %c0_72 = arith.constant 0 : index
    %c0_73 = arith.constant 0 : index
    %152 = vector.load %arg13[%c0_72, %c0_73] : memref<32x32xbf16, #tpu.memory_space<vmem>>, vector<32x32xbf16>
    %cst_74 = arith.constant dense<0.000000e+00> : vector<8x32xf32>
    %153 = tpu.matmul %151, %152, %cst_74 {dimension_numbers = #tpu.dot_dimension_numbers<[1], [0], [0], [1], [0, 0, 1, 1], [], []>} : vector<8x32xbf16>, vector<32x32xbf16>, vector<8x32xf32> -> vector<8x32xf32>
    %c0_75 = arith.constant 0 : index
    %c0_76 = arith.constant 0 : index
    %154 = vector.load %arg14[%c0_75, %c0_76] : memref<1x32xf32, #tpu.memory_space<vmem>>, vector<1x32xf32>
    %155 = vector.broadcast %154 : vector<1x32xf32> to vector<8x32xf32>
    %156 = arith.addf %153, %155 : vector<8x32xf32>
    %cst_77 = arith.constant 5.000000e-01 : f32
    %157 = vector.broadcast %cst_77 : f32 to vector<8x32xf32>
    %158 = arith.mulf %157, %156 : vector<8x32xf32>
    %cst_78 = arith.constant 0.707106769 : f32
    %159 = vector.broadcast %cst_78 : f32 to vector<8x32xf32>
    %160 = arith.mulf %156, %159 : vector<8x32xf32>
    %161 = math.erf %160 : vector<8x32xf32>
    %cst_79 = arith.constant 1.000000e+00 : f32
    %162 = vector.broadcast %cst_79 : f32 to vector<8x32xf32>
    %163 = arith.addf %162, %161 : vector<8x32xf32>
    %164 = arith.mulf %158, %163 : vector<8x32xf32>
    %165 = arith.truncf %164 : vector<8x32xf32> to vector<8x32xbf16>
    %c0_80 = arith.constant 0 : index
    %c0_81 = arith.constant 0 : index
    %166 = vector.load %arg15[%c0_80, %c0_81] : memref<32x32xbf16, #tpu.memory_space<vmem>>, vector<32x32xbf16>
    %cst_82 = arith.constant dense<0.000000e+00> : vector<8x32xf32>
    %167 = tpu.matmul %165, %166, %cst_82 {dimension_numbers = #tpu.dot_dimension_numbers<[1], [0], [0], [1], [0, 0, 1, 1], [], []>} : vector<8x32xbf16>, vector<32x32xbf16>, vector<8x32xf32> -> vector<8x32xf32>
    %c0_83 = arith.constant 0 : index
    %c0_84 = arith.constant 0 : index
    %168 = vector.load %arg16[%c0_83, %c0_84] : memref<1x32xf32, #tpu.memory_space<vmem>>, vector<1x32xf32>
    %169 = vector.broadcast %168 : vector<1x32xf32> to vector<8x32xf32>
    %170 = arith.addf %167, %169 : vector<8x32xf32>
    %171 = arith.addf %150, %170 : vector<8x32xf32>
    %c0_85 = arith.constant 0 : index
    %c0_86 = arith.constant 0 : index
    %172 = vector.load %arg17[%c0_85, %c0_86] : memref<1x32xf32, #tpu.memory_space<vmem>>, vector<1x32xf32>
    %c0_87 = arith.constant 0 : index
    %c0_88 = arith.constant 0 : index
    %173 = vector.load %arg18[%c0_87, %c0_88] : memref<1x32xf32, #tpu.memory_space<vmem>>, vector<1x32xf32>
    %cst_89 = arith.constant dense<0.000000e+00> : vector<8xf32>
    %174 = vector.multi_reduction <add>, %171, %cst_89 [1] : vector<8x32xf32> to vector<8xf32>
    %175 = vector.shape_cast %174 : vector<8xf32> to vector<8x1xf32>
    %cst_90 = arith.constant 3.200000e+01 : f32
    %176 = vector.broadcast %cst_90 : f32 to vector<8x1xf32>
    %177 = arith.divf %175, %176 : vector<8x1xf32>
    %178 = vector.broadcast %177 : vector<8x1xf32> to vector<8x32xf32>
    %179 = arith.subf %171, %178 : vector<8x32xf32>
    %180 = arith.mulf %179, %179 : vector<8x32xf32>
    %cst_91 = arith.constant dense<0.000000e+00> : vector<8xf32>
    %181 = vector.multi_reduction <add>, %180, %cst_91 [1] : vector<8x32xf32> to vector<8xf32>
    %182 = vector.shape_cast %181 : vector<8xf32> to vector<8x1xf32>
    %cst_92 = arith.constant 3.200000e+01 : f32
    %183 = vector.broadcast %cst_92 : f32 to vector<8x1xf32>
    %184 = arith.divf %182, %183 : vector<8x1xf32>
    %185 = vector.broadcast %177 : vector<8x1xf32> to vector<8x32xf32>
    %186 = arith.subf %171, %185 : vector<8x32xf32>
    %cst_93 = arith.constant 9.99999974E-6 : f32
    %187 = vector.broadcast %cst_93 : f32 to vector<8x1xf32>
    %188 = arith.addf %184, %187 : vector<8x1xf32>
    %189 = math.rsqrt %188 : vector<8x1xf32>
    %190 = vector.broadcast %189 : vector<8x1xf32> to vector<8x32xf32>
    %191 = arith.mulf %186, %190 : vector<8x32xf32>
    %192 = vector.broadcast %172 : vector<1x32xf32> to vector<8x32xf32>
    %193 = arith.mulf %191, %192 : vector<8x32xf32>
    %194 = vector.broadcast %173 : vector<1x32xf32> to vector<8x32xf32>
    %195 = arith.addf %193, %194 : vector<8x32xf32>
    %c0_94 = arith.constant 0 : index
    %c0_95 = arith.constant 0 : index
    %196 = vector.load %arg19[%c0_94, %c0_95] : memref<8x32xf32, #tpu.memory_space<vmem>>, vector<8x32xf32>
    tpu.vector_store %arg19[%c0_94, %c0_95], %195 {strides = array<i32>} : memref<8x32xf32, #tpu.memory_space<vmem>>, vector<8x32xf32>,
    return
  }
  func.func @transform_0(%arg0: i32) -> (i32, i32) {
    %c0_i32 = arith.constant 0 : i32
    %c0_i32_0 = arith.constant 0 : i32
    return %arg0, %c0_i32 : i32, i32
  }
  func.func @transform_1(%arg0: i32) -> (i32, i32) {
    %c0_i32 = arith.constant 0 : i32
    %c0_i32_0 = arith.constant 0 : i32
    return %arg0, %c0_i32 : i32, i32
  }
  func.func @transform_2(%arg0: i32) -> (i32, i32) {
    %c0_i32 = arith.constant 0 : i32
    %c0_i32_0 = arith.constant 0 : i32
    %c0_i32_1 = arith.constant 0 : i32
    return %c0_i32, %c0_i32_0 : i32, i32
  }
  func.func @transform_3(%arg0: i32) -> (i32, i32) {
    %c0_i32 = arith.constant 0 : i32
    %c0_i32_0 = arith.constant 0 : i32
    %c0_i32_1 = arith.constant 0 : i32
    return %c0_i32, %c0_i32_0 : i32, i32
  }
  func.func @transform_4(%arg0: i32) -> (i32, i32) {
    %c0_i32 = arith.constant 0 : i32
    %c0_i32_0 = arith.constant 0 : i32
    %c0_i32_1 = arith.constant 0 : i32
    return %c0_i32, %c0_i32_0 : i32, i32
  }
  func.func @transform_5(%arg0: i32) -> (i32, i32) {
    %c0_i32 = arith.constant 0 : i32
    %c0_i32_0 = arith.constant 0 : i32
    %c0_i32_1 = arith.constant 0 : i32
    return %c0_i32, %c0_i32_0 : i32, i32
  }
  func.func @transform_6(%arg0: i32) -> (i32, i32) {
    %c0_i32 = arith.constant 0 : i32
    %c0_i32_0 = arith.constant 0 : i32
    %c0_i32_1 = arith.constant 0 : i32
    return %c0_i32, %c0_i32_0 : i32, i32
  }
  func.func @transform_7(%arg0: i32) -> (i32, i32) {
    %c0_i32 = arith.constant 0 : i32
    %c0_i32_0 = arith.constant 0 : i32
    %c0_i32_1 = arith.constant 0 : i32
    return %c0_i32, %c0_i32_0 : i32, i32
  }
  func.func @transform_8(%arg0: i32) -> (i32, i32) {
    %c0_i32 = arith.constant 0 : i32
    %c0_i32_0 = arith.constant 0 : i32
    %c0_i32_1 = arith.constant 0 : i32
    return %c0_i32, %c0_i32_0 : i32, i32
  }
  func.func @transform_9(%arg0: i32) -> (i32, i32) {
    %c0_i32 = arith.constant 0 : i32
    %c0_i32_0 = arith.constant 0 : i32
    %c0_i32_1 = arith.constant 0 : i32
    return %c0_i32, %c0_i32_0 : i32, i32
  }
  func.func @transform_10(%arg0: i32) -> (i32, i32) {
    %c0_i32 = arith.constant 0 : i32
    %c0_i32_0 = arith.constant 0 : i32
    %c0_i32_1 = arith.constant 0 : i32
    return %c0_i32, %c0_i32_0 : i32, i32
  }
  func.func @transform_11(%arg0: i32) -> (i32, i32) {
    %c0_i32 = arith.constant 0 : i32
    %c0_i32_0 = arith.constant 0 : i32
    %c0_i32_1 = arith.constant 0 : i32
    return %c0_i32, %c0_i32_0 : i32, i32
  }
  func.func @transform_12(%arg0: i32) -> (i32, i32) {
    %c0_i32 = arith.constant 0 : i32
    %c0_i32_0 = arith.constant 0 : i32
    %c0_i32_1 = arith.constant 0 : i32
    return %c0_i32, %c0_i32_0 : i32, i32
  }
  func.func @transform_13(%arg0: i32) -> (i32, i32) {
    %c0_i32 = arith.constant 0 : i32
    %c0_i32_0 = arith.constant 0 : i32
    %c0_i32_1 = arith.constant 0 : i32
    return %c0_i32, %c0_i32_0 : i32, i32
  }
  func.func @transform_14(%arg0: i32) -> (i32, i32) {
    %c0_i32 = arith.constant 0 : i32
    %c0_i32_0 = arith.constant 0 : i32
    %c0_i32_1 = arith.constant 0 : i32
    return %c0_i32, %c0_i32_0 : i32, i32
  }
  func.func @transform_15(%arg0: i32) -> (i32, i32) {
    %c0_i32 = arith.constant 0 : i32
    %c0_i32_0 = arith.constant 0 : i32
    %c0_i32_1 = arith.constant 0 : i32
    return %c0_i32, %c0_i32_0 : i32, i32
  }
  func.func @transform_16(%arg0: i32) -> (i32, i32) {
    %c0_i32 = arith.constant 0 : i32
    %c0_i32_0 = arith.constant 0 : i32
    %c0_i32_1 = arith.constant 0 : i32
    return %c0_i32, %c0_i32_0 : i32, i32
  }
  func.func @transform_17(%arg0: i32) -> (i32, i32) {
    %c0_i32 = arith.constant 0 : i32
    %c0_i32_0 = arith.constant 0 : i32
    %c0_i32_1 = arith.constant 0 : i32
    return %c0_i32, %c0_i32_0 : i32, i32
  }
  func.func @transform_18(%arg0: i32) -> (i32, i32) {
    %c0_i32 = arith.constant 0 : i32
    %c0_i32_0 = arith.constant 0 : i32
    return %arg0, %c0_i32 : i32, i32
  }
}

</mosaic_0001>

<llo_original>
// kernel: tpu_custom_call.1
$region0: #{tpu_custom_call.1}
  #allocation0 [shape = 'u32[]', space=smem, size = 0x4, offset = 0x4, fixed_abs, tag = 'smem constant byte address 0x4 - core index']
  #allocation1 [shape = 'u32[144,128]{1,0:T(1,128)}', space=vmem, size = 0x12000, scoped, tag = 'internal scratch']
  #allocation2 [shape = 'f32[8,32]{1,0:T(8,128)}', space=vmem, size = 0x1000, scoped, tag = 'scratch operand']
  %s0 = inlined_call_operand.hbm [shape: f32[16,32], index: 0, kind: input, shape index: {}]
  %s1 = inlined_call_operand.hbm [shape: f32[16,32], index: 1, kind: input, shape index: {}]
  %s2 = inlined_call_operand.hbm [shape: bf16[32,32], index: 2, kind: input, shape index: {}]
  %s3 = inlined_call_operand.vmem [shape: f32[1,32], index: 3, kind: input, shape index: {}]
  %s4 = inlined_call_operand.hbm [shape: bf16[32,32], index: 4, kind: input, shape index: {}]
  %s5 = inlined_call_operand.hbm [shape: f32[1,32], index: 5, kind: input, shape index: {}]
  %s6 = inlined_call_operand.vmem [shape: bf16[32,32], index: 6, kind: input, shape index: {}]
  %s7 = inlined_call_operand.hbm [shape: f32[1,32], index: 7, kind: input, shape index: {}]
  %s8 = inlined_call_operand.hbm [shape: bf16[32,32], index: 8, kind: input, shape index: {}]
  %s9 = inlined_call_operand.hbm [shape: f32[1,32], index: 9, kind: input, shape index: {}]
  %s10 = inlined_call_operand.hbm [shape: f32[1,32], index: 10, kind: input, shape index: {}]
  %s11 = inlined_call_operand.hbm [shape: f32[1,32], index: 11, kind: input, shape index: {}]
  %s12 = inlined_call_operand.vmem [shape: bf16[32,32], index: 12, kind: input, shape index: {}]
  %s13 = inlined_call_operand.hbm [shape: f32[1,32], index: 13, kind: input, shape index: {}]
  %s14 = inlined_call_operand.vmem [shape: bf16[32,32], index: 14, kind: input, shape index: {}]
  %s15 = inlined_call_operand.vmem [shape: f32[1,32], index: 15, kind: input, shape index: {}]
  %s16 = inlined_call_operand.vmem [shape: f32[1,32], index: 16, kind: input, shape index: {}]
  %s17 = inlined_call_operand.vmem [shape: f32[1,32], index: 17, kind: input, shape index: {}]
  %s18 = inlined_call_operand.hbm [shape: f32[16,32], index: 18, kind: output, shape index: {}]
  %s19 = sld [smem:[#allocation0]]
  $region149: #{tpu_custom_call.1} parent=0
    _
  %s21 = ssub.s32 1, %s19
  %s22 = scalar_select 0, %s21, %s19
  $region1: #{tpu_custom_call.1} parent=0
    #allocation3 [shape = 'u8[8192]{0}', space=vmem, size = 0x2000, scoped, tag = 'input window, operand 0']
    #allocation4 [shape = 's32[2]{0}', space=sflag, size = 0x8, scoped, tag = 'scoped memory for tpu_custom_call.1']
    #allocation5 [shape = 's32[2]{0}', space=sflag, size = 0x8, scoped, tag = 'scoped memory for tpu_custom_call.1']
    #allocation6 [shape = 'u8[8192]{0}', space=vmem, size = 0x2000, scoped, tag = 'input window, operand 1']
    #allocation7 [shape = 's32[2]{0}', space=sflag, size = 0x8, scoped, tag = 'scoped memory for tpu_custom_call.1']
    #allocation8 [shape = 'u8[8192]{0}', space=vmem, size = 0x2000, scoped, tag = 'input window, operand 2, single buffered']
    #allocation9 [shape = 'u8[8192]{0}', space=vmem, size = 0x2000, scoped, tag = 'input window, operand 4, single buffered']
    #allocation10 [shape = 's32[1]{0}', space=sflag, size = 0x4, scoped, tag = 'scoped memory for tpu_custom_call.1']
    #allocation11 [shape = 'u8[512]{0}', space=vmem, size = 0x400, scoped, tag = 'input window, operand 5, single buffered']
    #allocation12 [shape = 'u8[512]{0}', space=vmem, size = 0x400, scoped, tag = 'input window, operand 7, single buffered']
    #allocation13 [shape = 's32[1]{0}', space=sflag, size = 0x4, scoped, tag = 'scoped memory for tpu_custom_call.1']
    #allocation14 [shape = 'u8[8192]{0}', space=vmem, size = 0x2000, scoped, tag = 'input window, operand 8, single buffered']
    #allocation15 [shape = 'u8[512]{0}', space=vmem, size = 0x400, scoped, tag = 'input window, operand 9, single buffered']
    #allocation16 [shape = 's32[1]{0}', space=sflag, size = 0x4, scoped, tag = 'scoped memory for tpu_custom_call.1']
    #allocation17 [shape = 'u8[512]{0}', space=vmem, size = 0x400, scoped, tag = 'input window, operand 10, single buffered']
    #allocation18 [shape = 'u8[512]{0}', space=vmem, size = 0x400, scoped, tag = 'input window, operand 11, single buffered']
    #allocation19 [shape = 's32[1]{0}', space=sflag, size = 0x4, scoped, tag = 'scoped memory for tpu_custom_call.1']
    #allocation20 [shape = 'u8[512]{0}', space=vmem, size = 0x400, scoped, tag = 'input window, operand 13, single buffered']
    #allocation21 [shape = 'u8[8192]{0}', space=vmem, size = 0x2000, scoped, tag = 'output window, operand 0']
    %23 = vsyncpa [#allocation4], 0
    %s24 = scalar_lea.sflag [#allocation4], 1
    %25 = vsyncpa %s24, 0
    %26 = vsyncpa [#allocation7], 0
    %s27 = scalar_lea.sflag [#allocation7], 1
    %28 = vsyncpa %s27, 0
    %29 = vsyncpa [#allocation10], 0
    %30 = vsyncpa [#allocation13], 0
    %31 = vsyncpa [#allocation16], 0
    %32 = vsyncpa [#allocation19], 0
    %33 = vsyncpa [#allocation5], 0
    %s34 = scalar_lea.sflag [#allocation5], 1
    %35 = vsyncpa %s34, 0
    loop: start=0, step=1, limit=4
    $region2: #{tpu_custom_call.1} parent=1 // loop_pre_header
      _
    $region3: #{tpu_custom_call.1} parent=1 // loop_header
      %s37 = sphi 0, %s41
      %p38 = scmp.ge.s32.totalorder %s37, 4
      %s47 = sphi 0, %s49
      %s50 = sphi 0, %s47
      %s51 = sphi 0, %s50
      %s67 = sphi 0, %s51
      %s73 = sphi 0, %s75
      %s76 = sphi 0, %s73
      %s77 = sphi 0, %s76
      %s93 = sphi 0, %s77
      %s97 = sphi 0, %s97
      %s99 = sphi 0, %s97
      %s100 = sphi 0, %s99
      %s114 = sphi 0, %s100
      %s118 = sphi 0, %s118
      %s120 = sphi 0, %s118
      %s121 = sphi 0, %s120
      %s135 = sphi 0, %s121
      %s139 = sphi 0, %s139
      %s141 = sphi 0, %s139
      %s142 = sphi 0, %s141
      %s156 = sphi 0, %s142
      %s160 = sphi 0, %s160
      %s162 = sphi 0, %s160
      %s163 = sphi 0, %s162
      %s177 = sphi 0, %s163
      %s181 = sphi 0, %s181
      %s183 = sphi 0, %s181
      %s184 = sphi 0, %s183
      %s198 = sphi 0, %s184
      %s202 = sphi 0, %s202
      %s204 = sphi 0, %s202
      %s205 = sphi 0, %s204
      %s219 = sphi 0, %s205
      %s223 = sphi 0, %s223
      %s225 = sphi 0, %s223
      %s226 = sphi 0, %s225
      %s240 = sphi 0, %s226
      %s244 = sphi 0, %s244
      %s246 = sphi 0, %s244
      %s247 = sphi 0, %s246
      %s261 = sphi 0, %s247
      %s265 = sphi 0, %s265
      %s267 = sphi 0, %s265
      %s268 = sphi 0, %s267
      %s282 = sphi 0, %s268
      %s286 = sphi 0, %s286
      %s288 = sphi 0, %s286
      %s289 = sphi 0, %s288
      %s303 = sphi 0, %s289
      %s307 = sphi 0, %s307
      %s309 = sphi 0, %s307
      %s310 = sphi 0, %s309
      %s324 = sphi 0, %s310
      %s328 = sphi 0, %s328
      %s330 = sphi 0, %s328
      %s331 = sphi 0, %s330
      %s345 = sphi 0, %s331
      %s349 = sphi 0, %s349
      %s351 = sphi 0, %s349
      %s352 = sphi 0, %s351
      %s366 = sphi 0, %s352
      %s370 = sphi 0, %s370
      %s372 = sphi 0, %s370
      %s373 = sphi 0, %s372
      %s387 = sphi 0, %s373
      %s391 = sphi 0, %s391
      %s393 = sphi 0, %s391
      %s394 = sphi 0, %s393
      %s408 = sphi 0, %s394
      %s412 = sphi 0, %s412
      %s414 = sphi 0, %s412
      %s415 = sphi 0, %s414
      %s429 = sphi 0, %s415
      %s435 = sphi 0, %s437
      %s438 = sphi 0, %s435
      %s439 = sphi 0, %s438
      %s455 = sphi 0, %s439
    $region4: #{tpu_custom_call.1} parent=1 // loop_header_branch
      %40 = sbr.rel (%p38) target = $region8
    $region5: #{tpu_custom_call.1} parent=1 // loop_body
      %s42 = ssub.s32 %s37, 1
      %s43 = ssub.s32 %s37, 2
      %s44 = sadd.s32 %s37, 1
      %s45 = ssub.s32 %s37, %s44
      %p46 = scmp.eq.s32.totalorder %s45, 0
      %s48 = sadd.s32 %s47, 1
      %s49 = scalar_select %p46, %s47, %s48
      %p52 = pneg %p46
      %p53 = scmp.eq.s32.totalorder %s37, 1
      %p54 = por %p52, %p53
      %p55 = scmp.ne.s32.totalorder %s47, %s50
      %p56 = scmp.eq.s32.totalorder %s37, 0
      %p57 = por %p55, %p56
      %p58 = scmp.ne.s32.totalorder %s47, %s50
      %p59 = scmp.eq.s32.totalorder %s42, 1
      %p60 = por %p58, %p59
      %p61 = scmp.ne.s32.totalorder %s50, %s51
      %p62 = scmp.eq.s32.totalorder %s42, 0
      %p63 = por %p61, %p62
      %p64 = scmp.ne.s32.totalorder %s50, %s51
      %p65 = scmp.eq.s32.totalorder %s43, 1
      %p66 = por %p64, %p65
      %p68 = scmp.ne.s32.totalorder %s51, %s67
      %p69 = scmp.eq.s32.totalorder %s43, 0
      %p70 = por %p68, %p69
      %s71 = ssub.s32 %s37, %s44
      %p72 = scmp.eq.s32.totalorder %s71, 0
      %s74 = sadd.s32 %s73, 1
      %s75 = scalar_select %p72, %s73, %s74
      %p78 = pneg %p72
      %p79 = scmp.eq.s32.totalorder %s37, 1
      %p80 = por %p78, %p79
      %p81 = scmp.ne.s32.totalorder %s73, %s76
      %p82 = scmp.eq.s32.totalorder %s37, 0
      %p83 = por %p81, %p82
      %p84 = scmp.ne.s32.totalorder %s73, %s76
      %p85 = scmp.eq.s32.totalorder %s42, 1
      %p86 = por %p84, %p85
      %p87 = scmp.ne.s32.totalorder %s76, %s77
      %p88 = scmp.eq.s32.totalorder %s42, 0
      %p89 = por %p87, %p88
      %p90 = scmp.ne.s32.totalorder %s76, %s77
      %p91 = scmp.eq.s32.totalorder %s43, 1
      %p92 = por %p90, %p91
      %p94 = scmp.ne.s32.totalorder %s77, %s93
      %p95 = scmp.eq.s32.totalorder %s43, 0
      %p96 = por %p94, %p95
      %s98 = sadd.s32 %s97, 1
      %p101 = scmp.eq.s32.totalorder %s37, 1
      %p102 = scmp.ne.s32.totalorder %s97, %s99
      %p103 = scmp.eq.s32.totalorder %s37, 0
      %p104 = por %p102, %p103
      %p105 = scmp.ne.s32.totalorder %s97, %s99
      %p106 = scmp.eq.s32.totalorder %s42, 1
      %p107 = por %p105, %p106
      %p108 = scmp.ne.s32.totalorder %s99, %s100
      %p109 = scmp.eq.s32.totalorder %s42, 0
      %p110 = por %p108, %p109
      %p111 = scmp.ne.s32.totalorder %s99, %s100
      %p112 = scmp.eq.s32.totalorder %s43, 1
      %p113 = por %p111, %p112
      %p115 = scmp.ne.s32.totalorder %s100, %s114
      %p116 = scmp.eq.s32.totalorder %s43, 0
      %p117 = por %p115, %p116
      %s119 = sadd.s32 %s118, 1
      %p122 = scmp.eq.s32.totalorder %s37, 1
      %p123 = scmp.ne.s32.totalorder %s118, %s120
      %p124 = scmp.eq.s32.totalorder %s37, 0
      %p125 = por %p123, %p124
      %p126 = scmp.ne.s32.totalorder %s118, %s120
      %p127 = scmp.eq.s32.totalorder %s42, 1
      %p128 = por %p126, %p127
      %p129 = scmp.ne.s32.totalorder %s120, %s121
      %p130 = scmp.eq.s32.totalorder %s42, 0
      %p131 = por %p129, %p130
      %p132 = scmp.ne.s32.totalorder %s120, %s121
      %p133 = scmp.eq.s32.totalorder %s43, 1
      %p134 = por %p132, %p133
      %p136 = scmp.ne.s32.totalorder %s121, %s135
      %p137 = scmp.eq.s32.totalorder %s43, 0
      %p138 = por %p136, %p137
      %s140 = sadd.s32 %s139, 1
      %p143 = scmp.eq.s32.totalorder %s37, 1
      %p144 = scmp.ne.s32.totalorder %s139, %s141
      %p145 = scmp.eq.s32.totalorder %s37, 0
      %p146 = por %p144, %p145
      %p147 = scmp.ne.s32.totalorder %s139, %s141
      %p148 = scmp.eq.s32.totalorder %s42, 1
      %p149 = por %p147, %p148
      %p150 = scmp.ne.s32.totalorder %s141, %s142
      %p151 = scmp.eq.s32.totalorder %s42, 0
      %p152 = por %p150, %p151
      %p153 = scmp.ne.s32.totalorder %s141, %s142
      %p154 = scmp.eq.s32.totalorder %s43, 1
      %p155 = por %p153, %p154
      %p157 = scmp.ne.s32.totalorder %s142, %s156
      %p158 = scmp.eq.s32.totalorder %s43, 0
      %p159 = por %p157, %p158
      %s161 = sadd.s32 %s160, 1
      %p164 = scmp.eq.s32.totalorder %s37, 1
      %p165 = scmp.ne.s32.totalorder %s160, %s162
      %p166 = scmp.eq.s32.totalorder %s37, 0
      %p167 = por %p165, %p166
      %p168 = scmp.ne.s32.totalorder %s160, %s162
      %p169 = scmp.eq.s32.totalorder %s42, 1
      %p170 = por %p168, %p169
      %p171 = scmp.ne.s32.totalorder %s162, %s163
      %p172 = scmp.eq.s32.totalorder %s42, 0
      %p173 = por %p171, %p172
      %p174 = scmp.ne.s32.totalorder %s162, %s163
      %p175 = scmp.eq.s32.totalorder %s43, 1
      %p176 = por %p174, %p175
      %p178 = scmp.ne.s32.totalorder %s163, %s177
      %p179 = scmp.eq.s32.totalorder %s43, 0
      %p180 = por %p178, %p179
      %s182 = sadd.s32 %s181, 1
      %p185 = scmp.eq.s32.totalorder %s37, 1
      %p186 = scmp.ne.s32.totalorder %s181, %s183
      %p187 = scmp.eq.s32.totalorder %s37, 0
      %p188 = por %p186, %p187
      %p189 = scmp.ne.s32.totalorder %s181, %s183
      %p190 = scmp.eq.s32.totalorder %s42, 1
      %p191 = por %p189, %p190
      %p192 = scmp.ne.s32.totalorder %s183, %s184
      %p193 = scmp.eq.s32.totalorder %s42, 0
      %p194 = por %p192, %p193
      %p195 = scmp.ne.s32.totalorder %s183, %s184
      %p196 = scmp.eq.s32.totalorder %s43, 1
      %p197 = por %p195, %p196
      %p199 = scmp.ne.s32.totalorder %s184, %s198
      %p200 = scmp.eq.s32.totalorder %s43, 0
      %p201 = por %p199, %p200
      %s203 = sadd.s32 %s202, 1
      %p206 = scmp.eq.s32.totalorder %s37, 1
      %p207 = scmp.ne.s32.totalorder %s202, %s204
      %p208 = scmp.eq.s32.totalorder %s37, 0
      %p209 = por %p207, %p208
      %p210 = scmp.ne.s32.totalorder %s202, %s204
      %p211 = scmp.eq.s32.totalorder %s42, 1
      %p212 = por %p210, %p211
      %p213 = scmp.ne.s32.totalorder %s204, %s205
      %p214 = scmp.eq.s32.totalorder %s42, 0
      %p215 = por %p213, %p214
      %p216 = scmp.ne.s32.totalorder %s204, %s205
      %p217 = scmp.eq.s32.totalorder %s43, 1
      %p218 = por %p216, %p217
      %p220 = scmp.ne.s32.totalorder %s205, %s219
      %p221 = scmp.eq.s32.totalorder %s43, 0
      %p222 = por %p220, %p221
      %s224 = sadd.s32 %s223, 1
      %p227 = scmp.eq.s32.totalorder %s37, 1
      %p228 = scmp.ne.s32.totalorder %s223, %s225
      %p229 = scmp.eq.s32.totalorder %s37, 0
      %p230 = por %p228, %p229
      %p231 = scmp.ne.s32.totalorder %s223, %s225
      %p232 = scmp.eq.s32.totalorder %s42, 1
      %p233 = por %p231, %p232
      %p234 = scmp.ne.s32.totalorder %s225, %s226
      %p235 = scmp.eq.s32.totalorder %s42, 0
      %p236 = por %p234, %p235
      %p237 = scmp.ne.s32.totalorder %s225, %s226
      %p238 = scmp.eq.s32.totalorder %s43, 1
      %p239 = por %p237, %p238
      %p241 = scmp.ne.s32.totalorder %s226, %s240
      %p242 = scmp.eq.s32.totalorder %s43, 0
      %p243 = por %p241, %p242
      %s245 = sadd.s32 %s244, 1
      %p248 = scmp.eq.s32.totalorder %s37, 1
      %p249 = scmp.ne.s32.totalorder %s244, %s246
      %p250 = scmp.eq.s32.totalorder %s37, 0
      %p251 = por %p249, %p250
      %p252 = scmp.ne.s32.totalorder %s244, %s246
      %p253 = scmp.eq.s32.totalorder %s42, 1
      %p254 = por %p252, %p253
      %p255 = scmp.ne.s32.totalorder %s246, %s247
      %p256 = scmp.eq.s32.totalorder %s42, 0
      %p257 = por %p255, %p256
      %p258 = scmp.ne.s32.totalorder %s246, %s247
      %p259 = scmp.eq.s32.totalorder %s43, 1
      %p260 = por %p258, %p259
      %p262 = scmp.ne.s32.totalorder %s247, %s261
      %p263 = scmp.eq.s32.totalorder %s43, 0
      %p264 = por %p262, %p263
      %s266 = sadd.s32 %s265, 1
      %p269 = scmp.eq.s32.totalorder %s37, 1
      %p270 = scmp.ne.s32.totalorder %s265, %s267
      %p271 = scmp.eq.s32.totalorder %s37, 0
      %p272 = por %p270, %p271
      %p273 = scmp.ne.s32.totalorder %s265, %s267
      %p274 = scmp.eq.s32.totalorder %s42, 1
      %p275 = por %p273, %p274
      %p276 = scmp.ne.s32.totalorder %s267, %s268
      %p277 = scmp.eq.s32.totalorder %s42, 0
      %p278 = por %p276, %p277
      %p279 = scmp.ne.s32.totalorder %s267, %s268
      %p280 = scmp.eq.s32.totalorder %s43, 1
      %p281 = por %p279, %p280
      %p283 = scmp.ne.s32.totalorder %s268, %s282
      %p284 = scmp.eq.s32.totalorder %s43, 0
      %p285 = por %p283, %p284
      %s287 = sadd.s32 %s286, 1
      %p290 = scmp.eq.s32.totalorder %s37, 1
      %p291 = scmp.ne.s32.totalorder %s286, %s288
      %p292 = scmp.eq.s32.totalorder %s37, 0
      %p293 = por %p291, %p292
      %p294 = scmp.ne.s32.totalorder %s286, %s288
      %p295 = scmp.eq.s32.totalorder %s42, 1
      %p296 = por %p294, %p295
      %p297 = scmp.ne.s32.totalorder %s288, %s289
      %p298 = scmp.eq.s32.totalorder %s42, 0
      %p299 = por %p297, %p298
      %p300 = scmp.ne.s32.totalorder %s288, %s289
      %p301 = scmp.eq.s32.totalorder %s43, 1
      %p302 = por %p300, %p301
      %p304 = scmp.ne.s32.totalorder %s289, %s303
      %p305 = scmp.eq.s32.totalorder %s43, 0
      %p306 = por %p304, %p305
      %s308 = sadd.s32 %s307, 1
      %p311 = scmp.eq.s32.totalorder %s37, 1
      %p312 = scmp.ne.s32.totalorder %s307, %s309
      %p313 = scmp.eq.s32.totalorder %s37, 0
      %p314 = por %p312, %p313
      %p315 = scmp.ne.s32.totalorder %s307, %s309
      %p316 = scmp.eq.s32.totalorder %s42, 1
      %p317 = por %p315, %p316
      %p318 = scmp.ne.s32.totalorder %s309, %s310
      %p319 = scmp.eq.s32.totalorder %s42, 0
      %p320 = por %p318, %p319
      %p321 = scmp.ne.s32.totalorder %s309, %s310
      %p322 = scmp.eq.s32.totalorder %s43, 1
      %p323 = por %p321, %p322
      %p325 = scmp.ne.s32.totalorder %s310, %s324
      %p326 = scmp.eq.s32.totalorder %s43, 0
      %p327 = por %p325, %p326
      %s329 = sadd.s32 %s328, 1
      %p332 = scmp.eq.s32.totalorder %s37, 1
      %p333 = scmp.ne.s32.totalorder %s328, %s330
      %p334 = scmp.eq.s32.totalorder %s37, 0
      %p335 = por %p333, %p334
      %p336 = scmp.ne.s32.totalorder %s328, %s330
      %p337 = scmp.eq.s32.totalorder %s42, 1
      %p338 = por %p336, %p337
      %p339 = scmp.ne.s32.totalorder %s330, %s331
      %p340 = scmp.eq.s32.totalorder %s42, 0
      %p341 = por %p339, %p340
      %p342 = scmp.ne.s32.totalorder %s330, %s331
      %p343 = scmp.eq.s32.totalorder %s43, 1
      %p344 = por %p342, %p343
      %p346 = scmp.ne.s32.totalorder %s331, %s345
      %p347 = scmp.eq.s32.totalorder %s43, 0
      %p348 = por %p346, %p347
      %s350 = sadd.s32 %s349, 1
      %p353 = scmp.eq.s32.totalorder %s37, 1
      %p354 = scmp.ne.s32.totalorder %s349, %s351
      %p355 = scmp.eq.s32.totalorder %s37, 0
      %p356 = por %p354, %p355
      %p357 = scmp.ne.s32.totalorder %s349, %s351
      %p358 = scmp.eq.s32.totalorder %s42, 1
      %p359 = por %p357, %p358
      %p360 = scmp.ne.s32.totalorder %s351, %s352
      %p361 = scmp.eq.s32.totalorder %s42, 0
      %p362 = por %p360, %p361
      %p363 = scmp.ne.s32.totalorder %s351, %s352
      %p364 = scmp.eq.s32.totalorder %s43, 1
      %p365 = por %p363, %p364
      %p367 = scmp.ne.s32.totalorder %s352, %s366
      %p368 = scmp.eq.s32.totalorder %s43, 0
      %p369 = por %p367, %p368
      %s371 = sadd.s32 %s370, 1
      %p374 = scmp.eq.s32.totalorder %s37, 1
      %p375 = scmp.ne.s32.totalorder %s370, %s372
      %p376 = scmp.eq.s32.totalorder %s37, 0
      %p377 = por %p375, %p376
      %p378 = scmp.ne.s32.totalorder %s370, %s372
      %p379 = scmp.eq.s32.totalorder %s42, 1
      %p380 = por %p378, %p379
      %p381 = scmp.ne.s32.totalorder %s372, %s373
      %p382 = scmp.eq.s32.totalorder %s42, 0
      %p383 = por %p381, %p382
      %p384 = scmp.ne.s32.totalorder %s372, %s373
      %p385 = scmp.eq.s32.totalorder %s43, 1
      %p386 = por %p384, %p385
      %p388 = scmp.ne.s32.totalorder %s373, %s387
      %p389 = scmp.eq.s32.totalorder %s43, 0
      %p390 = por %p388, %p389
      %s392 = sadd.s32 %s391, 1
      %p395 = scmp.eq.s32.totalorder %s37, 1
      %p396 = scmp.ne.s32.totalorder %s391, %s393
      %p397 = scmp.eq.s32.totalorder %s37, 0
      %p398 = por %p396, %p397
      %p399 = scmp.ne.s32.totalorder %s391, %s393
      %p400 = scmp.eq.s32.totalorder %s42, 1
      %p401 = por %p399, %p400
      %p402 = scmp.ne.s32.totalorder %s393, %s394
      %p403 = scmp.eq.s32.totalorder %s42, 0
      %p404 = por %p402, %p403
      %p405 = scmp.ne.s32.totalorder %s393, %s394
      %p406 = scmp.eq.s32.totalorder %s43, 1
      %p407 = por %p405, %p406
      %p409 = scmp.ne.s32.totalorder %s394, %s408
      %p410 = scmp.eq.s32.totalorder %s43, 0
      %p411 = por %p409, %p410
      %s413 = sadd.s32 %s412, 1
      %p416 = scmp.eq.s32.totalorder %s37, 1
      %p417 = scmp.ne.s32.totalorder %s412, %s414
      %p418 = scmp.eq.s32.totalorder %s37, 0
      %p419 = por %p417, %p418
      %p420 = scmp.ne.s32.totalorder %s412, %s414
      %p421 = scmp.eq.s32.totalorder %s42, 1
      %p422 = por %p420, %p421
      %p423 = scmp.ne.s32.totalorder %s414, %s415
      %p424 = scmp.eq.s32.totalorder %s42, 0
      %p425 = por %p423, %p424
      %p426 = scmp.ne.s32.totalorder %s414, %s415
      %p427 = scmp.eq.s32.totalorder %s43, 1
      %p428 = por %p426, %p427
      %p430 = scmp.ne.s32.totalorder %s415, %s429
      %p431 = scmp.eq.s32.totalorder %s43, 0
      %p432 = por %p430, %p431
      %s433 = ssub.s32 %s37, %s44
      %p434 = scmp.eq.s32.totalorder %s433, 0
      %s436 = sadd.s32 %s435, 1
      %s437 = scalar_select %p434, %s435, %s436
      %p440 = pneg %p434
      %p441 = scmp.eq.s32.totalorder %s37, 1
      %p442 = por %p440, %p441
      %p443 = scmp.ne.s32.totalorder %s435, %s438
      %p444 = scmp.eq.s32.totalorder %s37, 0
      %p445 = por %p443, %p444
      %p446 = scmp.ne.s32.totalorder %s435, %s438
      %p447 = scmp.eq.s32.totalorder %s42, 1
      %p448 = por %p446, %p447
      %p449 = scmp.ne.s32.totalorder %s438, %s439
      %p450 = scmp.eq.s32.totalorder %s42, 0
      %p451 = por %p449, %p450
      %p452 = scmp.ne.s32.totalorder %s438, %s439
      %p453 = scmp.eq.s32.totalorder %s43, 1
      %p454 = por %p452, %p453
      %p456 = scmp.ne.s32.totalorder %s439, %s455
      %p457 = scmp.eq.s32.totalorder %s43, 0
      %p458 = por %p456, %p457
      %p459 = scmp.le.s32.totalorder 1, %s37
      %p460 = scmp.lt.s32.totalorder %s37, 3
      %p461 = pnand %p459, %p460
      %p462 = pneg %p461
      // Predicated region
      $region9: #{tpu_custom_call.1} parent=5 // pred_check
        _
      $region10: #{tpu_custom_call.1} parent=5 // pred_check_branch
        %464 = sbr.rel (%p461) target = $region12
      $region11: #{tpu_custom_call.1} parent=5 // pred_region
        %s465 = ssub.s32 %s37, 1
        // Predicated region
        $region13: #{tpu_custom_call.1} parent=11 // pred_check
          %p466 = pneg %p110
        $region14: #{tpu_custom_call.1} parent=11 // pred_check_branch
          %468 = sbr.rel (%p466) target = $region16
        $region15: #{tpu_custom_call.1} parent=11 // pred_region
          %s470 = ssub.s32 256, 256
          %471 = vsyncadd [#allocation7], %s470
          %s472 = sshll.u32 [#allocation8], 4
          %s473 = int_to_ptr.vmem [resolvable:$true] %s472
          %478 = dma.hbm_to_vmem [thread:$0]  %s2, 256, %s473, [#allocation7], 64, 64, 4
        $region16: #{tpu_custom_call.1} parent=11 // pred_fallthru
          _
        // Predicated region
        $region17: #{tpu_custom_call.1} parent=11 // pred_check
          %p479 = pneg %p131
        $region18: #{tpu_custom_call.1} parent=11 // pred_check_branch
          %481 = sbr.rel (%p479) target = $region20
        $region19: #{tpu_custom_call.1} parent=11 // pred_region
          _
        $region20: #{tpu_custom_call.1} parent=11 // pred_fallthru
          _
        // Predicated region
        $region21: #{tpu_custom_call.1} parent=11 // pred_check
          %p482 = pneg %p152
        $region22: #{tpu_custom_call.1} parent=11 // pred_check_branch
          %484 = sbr.rel (%p482) target = $region24
        $region23: #{tpu_custom_call.1} parent=11 // pred_region
          %s486 = ssub.s32 256, 256
          %487 = vsyncadd [#allocation10], %s486
          %s488 = sshll.u32 [#allocation9], 4
          %s489 = int_to_ptr.vmem [resolvable:$true] %s488
          %494 = dma.hbm_to_vmem [thread:$0]  %s4, 256, %s489, [#allocation10], 64, 64, 4
        $region24: #{tpu_custom_call.1} parent=11 // pred_fallthru
          _
        // Predicated region
        $region25: #{tpu_custom_call.1} parent=11 // pred_check
          %p495 = pneg %p173
        $region26: #{tpu_custom_call.1} parent=11 // pred_check_branch
          %497 = sbr.rel (%p495) target = $region28
        $region27: #{tpu_custom_call.1} parent=11 // pred_region
          %s499 = ssub.s32 16, 16
          %500 = vsyncadd [#allocation10], %s499
          %s502 = sshll.u32 [#allocation11], 4
          %s503 = int_to_ptr.vmem [resolvable:$true] %s502
          %505 = dma.hbm_to_vmem [thread:$0]  %s5, 16, %s503, [#allocation10]
        $region28: #{tpu_custom_call.1} parent=11 // pred_fallthru
          _
        // Predicated region
        $region29: #{tpu_custom_call.1} parent=11 // pred_check
          %p506 = pneg %p194
        $region30: #{tpu_custom_call.1} parent=11 // pred_check_branch
          %508 = sbr.rel (%p506) target = $region32
        $region31: #{tpu_custom_call.1} parent=11 // pred_region
          _
        $region32: #{tpu_custom_call.1} parent=11 // pred_fallthru
          _
        // Predicated region
        $region33: #{tpu_custom_call.1} parent=11 // pred_check
          %p509 = pneg %p215
        $region34: #{tpu_custom_call.1} parent=11 // pred_check_branch
          %511 = sbr.rel (%p509) target = $region36
        $region35: #{tpu_custom_call.1} parent=11 // pred_region
          %s513 = ssub.s32 16, 16
          %514 = vsyncadd [#allocation13], %s513
          %s516 = sshll.u32 [#allocation12], 4
          %s517 = int_to_ptr.vmem [resolvable:$true] %s516
          %519 = dma.hbm_to_vmem [thread:$0]  %s7, 16, %s517, [#allocation13]
        $region36: #{tpu_custom_call.1} parent=11 // pred_fallthru
          _
        // Predicated region
        $region37: #{tpu_custom_call.1} parent=11 // pred_check
          %p520 = pneg %p236
        $region38: #{tpu_custom_call.1} parent=11 // pred_check_branch
          %522 = sbr.rel (%p520) target = $region40
        $region39: #{tpu_custom_call.1} parent=11 // pred_region
          %s524 = ssub.s32 256, 256
          %525 = vsyncadd [#allocation13], %s524
          %s526 = sshll.u32 [#allocation14], 4
          %s527 = int_to_ptr.vmem [resolvable:$true] %s526
          %532 = dma.hbm_to_vmem [thread:$0]  %s8, 256, %s527, [#allocation13], 64, 64, 4
        $region40: #{tpu_custom_call.1} parent=11 // pred_fallthru
          _
        // Predicated region
        $region41: #{tpu_custom_call.1} parent=11 // pred_check
          %p533 = pneg %p257
        $region42: #{tpu_custom_call.1} parent=11 // pred_check_branch
          %535 = sbr.rel (%p533) target = $region44
        $region43: #{tpu_custom_call.1} parent=11 // pred_region
          %s537 = ssub.s32 16, 16
          %538 = vsyncadd [#allocation16], %s537
          %s540 = sshll.u32 [#allocation15], 4
          %s541 = int_to_ptr.vmem [resolvable:$true] %s540
          %543 = dma.hbm_to_vmem [thread:$0]  %s9, 16, %s541, [#allocation16]
        $region44: #{tpu_custom_call.1} parent=11 // pred_fallthru
          _
        // Predicated region
        $region45: #{tpu_custom_call.1} parent=11 // pred_check
          %p544 = pneg %p278
        $region46: #{tpu_custom_call.1} parent=11 // pred_check_branch
          %546 = sbr.rel (%p544) target = $region48
        $region47: #{tpu_custom_call.1} parent=11 // pred_region
          %s548 = ssub.s32 16, 16
          %549 = vsyncadd [#allocation16], %s548
          %s551 = sshll.u32 [#allocation17], 4
          %s552 = int_to_ptr.vmem [resolvable:$true] %s551
          %554 = dma.hbm_to_vmem [thread:$0]  %s10, 16, %s552, [#allocation16]
        $region48: #{tpu_custom_call.1} parent=11 // pred_fallthru
          _
        // Predicated region
        $region49: #{tpu_custom_call.1} parent=11 // pred_check
          %p555 = pneg %p299
        $region50: #{tpu_custom_call.1} parent=11 // pred_check_branch
          %557 = sbr.rel (%p555) target = $region52
        $region51: #{tpu_custom_call.1} parent=11 // pred_region
          %s559 = ssub.s32 16, 16
          %560 = vsyncadd [#allocation19], %s559
          %s562 = sshll.u32 [#allocation18], 4
          %s563 = int_to_ptr.vmem [resolvable:$true] %s562
          %565 = dma.hbm_to_vmem [thread:$0]  %s11, 16, %s563, [#allocation19]
        $region52: #{tpu_custom_call.1} parent=11 // pred_fallthru
          _
        // Predicated region
        $region53: #{tpu_custom_call.1} parent=11 // pred_check
          %p566 = pneg %p320
        $region54: #{tpu_custom_call.1} parent=11 // pred_check_branch
          %568 = sbr.rel (%p566) target = $region56
        $region55: #{tpu_custom_call.1} parent=11 // pred_region
          _
        $region56: #{tpu_custom_call.1} parent=11 // pred_fallthru
          _
        // Predicated region
        $region57: #{tpu_custom_call.1} parent=11 // pred_check
          %p569 = pneg %p341
        $region58: #{tpu_custom_call.1} parent=11 // pred_check_branch
          %571 = sbr.rel (%p569) target = $region60
        $region59: #{tpu_custom_call.1} parent=11 // pred_region
          %s573 = ssub.s32 16, 16
          %574 = vsyncadd [#allocation19], %s573
          %s576 = sshll.u32 [#allocation20], 4
          %s577 = int_to_ptr.vmem [resolvable:$true] %s576
          %579 = dma.hbm_to_vmem [thread:$0]  %s13, 16, %s577, [#allocation19]
        $region60: #{tpu_custom_call.1} parent=11 // pred_fallthru
          _
        // Predicated region
        $region61: #{tpu_custom_call.1} parent=11 // pred_check
          %p580 = pneg %p362
        $region62: #{tpu_custom_call.1} parent=11 // pred_check_branch
          %582 = sbr.rel (%p580) target = $region64
        $region63: #{tpu_custom_call.1} parent=11 // pred_region
          _
        $region64: #{tpu_custom_call.1} parent=11 // pred_fallthru
          _
        // Predicated region
        $region65: #{tpu_custom_call.1} parent=11 // pred_check
          %p583 = pneg %p383
        $region66: #{tpu_custom_call.1} parent=11 // pred_check_branch
          %585 = sbr.rel (%p583) target = $region68
        $region67: #{tpu_custom_call.1} parent=11 // pred_region
          _
        $region68: #{tpu_custom_call.1} parent=11 // pred_fallthru
          _
        // Predicated region
        $region69: #{tpu_custom_call.1} parent=11 // pred_check
          %p586 = pneg %p404
        $region70: #{tpu_custom_call.1} parent=11 // pred_check_branch
          %588 = sbr.rel (%p586) target = $region72
        $region71: #{tpu_custom_call.1} parent=11 // pred_region
          _
        $region72: #{tpu_custom_call.1} parent=11 // pred_fallthru
          _
        // Predicated region
        $region73: #{tpu_custom_call.1} parent=11 // pred_check
          %p589 = pneg %p425
        $region74: #{tpu_custom_call.1} parent=11 // pred_check_branch
          %591 = sbr.rel (%p589) target = $region76
        $region75: #{tpu_custom_call.1} parent=11 // pred_region
          _
        $region76: #{tpu_custom_call.1} parent=11 // pred_fallthru
          _
      $region12: #{tpu_custom_call.1} parent=5 // pred_fallthru
        _
      %p592 = scmp.lt.s32.totalorder %s37, 2
      // Predicated region
      $region77: #{tpu_custom_call.1} parent=5 // pred_check
        %p593 = pneg %p592
      $region78: #{tpu_custom_call.1} parent=5 // pred_check_branch
        %595 = sbr.rel (%p593) target = $region80
      $region79: #{tpu_custom_call.1} parent=5 // pred_region
        // Predicated region
        $region81: #{tpu_custom_call.1} parent=79 // pred_check
          %p596 = pneg %p57
        $region82: #{tpu_custom_call.1} parent=79 // pred_check_branch
          %598 = sbr.rel (%p596) target = $region84
        $region83: #{tpu_custom_call.1} parent=79 // pred_region
          %s599 = sand.u32 %s47, 1
          %s600 = scalar_lea.sflag [#allocation4], %s599
          %s601 = sand.u32 %s47, 1
          %s602 = smul.addr %s601, 8
          %s603 = scalar_lea.vmem [#allocation3], %s602
          %s605 = ssub.s32 128, 128
          %606 = vsyncadd %s600, %s605
          %s607 = smul.addr %s37, 128
          %s608 = scalar_lea.hbm %s0, %s607
          %s610 = sshll.u32 %s603, 4
          %s611 = int_to_ptr.vmem [resolvable:$true] %s610
          %613 = dma.hbm_to_vmem [thread:$0]  %s608, 128, %s611, %s600
        $region84: #{tpu_custom_call.1} parent=79 // pred_fallthru
          _
        // Predicated region
        $region85: #{tpu_custom_call.1} parent=79 // pred_check
          %p614 = pneg %p83
        $region86: #{tpu_custom_call.1} parent=79 // pred_check_branch
          %616 = sbr.rel (%p614) target = $region88
        $region87: #{tpu_custom_call.1} parent=79 // pred_region
          %s617 = sand.u32 %s37, 1
          %s618 = scalar_lea.sflag [#allocation7], %s617
          %s619 = sand.u32 %s73, 1
          %s620 = smul.addr %s619, 8
          %s621 = scalar_lea.vmem [#allocation6], %s620
          %s623 = ssub.s32 128, 128
          %624 = vsyncadd %s618, %s623
          %s625 = smul.addr %s37, 128
          %s626 = scalar_lea.hbm %s1, %s625
          %s628 = sshll.u32 %s621, 4
          %s629 = int_to_ptr.vmem [resolvable:$true] %s628
          %631 = dma.hbm_to_vmem [thread:$0]  %s626, 128, %s629, %s618
        $region88: #{tpu_custom_call.1} parent=79 // pred_fallthru
          _
      $region80: #{tpu_custom_call.1} parent=5 // pred_fallthru
        _
      %p632 = scmp.le.s32.totalorder 1, %s37
      %p633 = scmp.lt.s32.totalorder %s37, 3
      %p634 = pnand %p632, %p633
      %p635 = pneg %p634
      // Predicated region
      $region89: #{tpu_custom_call.1} parent=5 // pred_check
        _
      $region90: #{tpu_custom_call.1} parent=5 // pred_check_branch
        %637 = sbr.rel (%p634) target = $region92
      $region91: #{tpu_custom_call.1} parent=5 // pred_region
        %s638 = ssub.s32 %s37, 1
        %s639 = sand.u32 %s50, 1
        %s640 = scalar_lea.sflag [#allocation4], %s639
        %s641 = sand.u32 %s50, 1
        %s642 = smul.addr %s641, 8
        %s643 = scalar_lea.vmem [#allocation3], %s642
        // Predicated region
        $region93: #{tpu_custom_call.1} parent=91 // pred_check
          %p644 = pneg %p63
        $region94: #{tpu_custom_call.1} parent=91 // pred_check_branch
          %646 = sbr.rel (%p644) target = $region96
        $region95: #{tpu_custom_call.1} parent=91 // pred_region
          %647 = dma.done %s640, 128
        $region96: #{tpu_custom_call.1} parent=91 // pred_fallthru
          _
        %s648 = sand.u32 %s42, 1
        %s649 = scalar_lea.sflag [#allocation7], %s648
        %s650 = sand.u32 %s76, 1
        %s651 = smul.addr %s650, 8
        %s652 = scalar_lea.vmem [#allocation6], %s651
        // Predicated region
        $region97: #{tpu_custom_call.1} parent=91 // pred_check
          %p653 = pneg %p89
        $region98: #{tpu_custom_call.1} parent=91 // pred_check_branch
          %655 = sbr.rel (%p653) target = $region100
        $region99: #{tpu_custom_call.1} parent=91 // pred_region
          %656 = dma.done %s649, 128
        $region100: #{tpu_custom_call.1} parent=91 // pred_fallthru
          _
        // Predicated region
        $region101: #{tpu_custom_call.1} parent=91 // pred_check
          %p657 = pneg %p110
        $region102: #{tpu_custom_call.1} parent=91 // pred_check_branch
          %659 = sbr.rel (%p657) target = $region104
        $region103: #{tpu_custom_call.1} parent=91 // pred_region
          %660 = dma.done [#allocation7], 256
        $region104: #{tpu_custom_call.1} parent=91 // pred_fallthru
          _
        // Predicated region
        $region105: #{tpu_custom_call.1} parent=91 // pred_check
          %p661 = pneg %p152
        $region106: #{tpu_custom_call.1} parent=91 // pred_check_branch
          %663 = sbr.rel (%p661) target = $region108
        $region107: #{tpu_custom_call.1} parent=91 // pred_region
          %664 = dma.done [#allocation10], 256
        $region108: #{tpu_custom_call.1} parent=91 // pred_fallthru
          _
        // Predicated region
        $region109: #{tpu_custom_call.1} parent=91 // pred_check
          %p665 = pneg %p173
        $region110: #{tpu_custom_call.1} parent=91 // pred_check_branch
          %667 = sbr.rel (%p665) target = $region112
        $region111: #{tpu_custom_call.1} parent=91 // pred_region
          %668 = dma.done [#allocation10], 16
        $region112: #{tpu_custom_call.1} parent=91 // pred_fallthru
          _
        // Predicated region
        $region113: #{tpu_custom_call.1} parent=91 // pred_check
          %p669 = pneg %p215
        $region114: #{tpu_custom_call.1} parent=91 // pred_check_branch
          %671 = sbr.rel (%p669) target = $region116
        $region115: #{tpu_custom_call.1} parent=91 // pred_region
          %672 = dma.done [#allocation13], 16
        $region116: #{tpu_custom_call.1} parent=91 // pred_fallthru
          _
        // Predicated region
        $region117: #{tpu_custom_call.1} parent=91 // pred_check
          %p673 = pneg %p236
        $region118: #{tpu_custom_call.1} parent=91 // pred_check_branch
          %675 = sbr.rel (%p673) target = $region120
        $region119: #{tpu_custom_call.1} parent=91 // pred_region
          %676 = dma.done [#allocation13], 256
        $region120: #{tpu_custom_call.1} parent=91 // pred_fallthru
          _
        // Predicated region
        $region121: #{tpu_custom_call.1} parent=91 // pred_check
          %p677 = pneg %p257
        $region122: #{tpu_custom_call.1} parent=91 // pred_check_branch
          %679 = sbr.rel (%p677) target = $region124
        $region123: #{tpu_custom_call.1} parent=91 // pred_region
          %680 = dma.done [#allocation16], 16
        $region124: #{tpu_custom_call.1} parent=91 // pred_fallthru
          _
        // Predicated region
        $region125: #{tpu_custom_call.1} parent=91 // pred_check
          %p681 = pneg %p278
        $region126: #{tpu_custom_call.1} parent=91 // pred_check_branch
          %683 = sbr.rel (%p681) target = $region128
        $region127: #{tpu_custom_call.1} parent=91 // pred_region
          %684 = dma.done [#allocation16], 16
        $region128: #{tpu_custom_call.1} parent=91 // pred_fallthru
          _
        // Predicated region
        $region129: #{tpu_custom_call.1} parent=91 // pred_check
          %p685 = pneg %p299
        $region130: #{tpu_custom_call.1} parent=91 // pred_check_branch
          %687 = sbr.rel (%p685) target = $region132
        $region131: #{tpu_custom_call.1} parent=91 // pred_region
          %688 = dma.done [#allocation19], 16
        $region132: #{tpu_custom_call.1} parent=91 // pred_fallthru
          _
        // Predicated region
        $region133: #{tpu_custom_call.1} parent=91 // pred_check
          %p689 = pneg %p341
        $region134: #{tpu_custom_call.1} parent=91 // pred_check_branch
          %691 = sbr.rel (%p689) target = $region136
        $region135: #{tpu_custom_call.1} parent=91 // pred_region
          %692 = dma.done [#allocation19], 16
        $region136: #{tpu_custom_call.1} parent=91 // pred_fallthru
          _
        %s693 = sand.u32 %s50, 1
        %s694 = scalar_lea.sflag [#allocation4], %s693
        %s695 = sand.u32 %s50, 1
        %s696 = smul.addr %s695, 8
        %s697 = scalar_lea.vmem [#allocation3], %s696
        %p698 = pneg %p63
        %p699 = pneg %p60
        %s700 = sand.u32 %s42, 1
        %s701 = scalar_lea.sflag [#allocation7], %s700
        %s702 = sand.u32 %s76, 1
        %s703 = smul.addr %s702, 8
        %s704 = scalar_lea.vmem [#allocation6], %s703
        %p705 = pneg %p89
        %p706 = pneg %p86
        %p707 = pneg %p110
        %p708 = pneg %p107
        %p709 = pneg %p131
        %p710 = pneg %p128
        %p711 = pneg %p152
        %p712 = pneg %p149
        %p713 = pneg %p173
        %p714 = pneg %p170
        %p715 = pneg %p194
        %p716 = pneg %p191
        %p717 = pneg %p215
        %p718 = pneg %p212
        %p719 = pneg %p236
        %p720 = pneg %p233
        %p721 = pneg %p257
        %p722 = pneg %p254
        %p723 = pneg %p278
        %p724 = pneg %p275
        %p725 = pneg %p299
        %p726 = pneg %p296
        %p727 = pneg %p320
        %p728 = pneg %p317
        %p729 = pneg %p341
        %p730 = pneg %p338
        %p731 = pneg %p362
        %p732 = pneg %p359
        %p733 = pneg %p383
        %p734 = pneg %p380
        %p735 = pneg %p404
        %p736 = pneg %p401
        %p737 = pneg %p425
        %p738 = pneg %p422
        %p739 = pneg %p451
        %p740 = pneg %p448
        %s741 = sand.u32 %s438, 1
        %s742 = scalar_lea.sflag [#allocation5], %s741
        %s743 = sand.u32 %s438, 1
        %s744 = smul.addr %s743, 8
        %s745 = scalar_lea.vmem [#allocation21], %s744
        %v747 = vld [vmem:[%s643] sm:$0xff]
        %v748 = vld [vmem:[%s652] sm:$0xff]
        %v749 = vpack.c.bf16 %v747, %v747
        %v750 = vpack.c.bf16 %v748, %v748
        %v751 = vld [vmem:[#allocation8] sm:$0xf]
        %v752 = vld [vmem:[#allocation8 + $0x4] sm:$0xf]
        %v753 = vld [vmem:[#allocation8 + $0x8] sm:$0xf]
        %v754 = vld [vmem:[#allocation8 + $0xc] sm:$0xf]
        %v755 = vld [vmem:[%s3] sm:$0x1]
        %v757 = vlaneseq
        %v758 = vshrl.u32 %v757, 7
        %v759 = vsub.s32 0, %v758
        %v760 = vrot.slane %v755, %v759
        %v766 = vunpack.c.l.b16 %v751
        %v767 = vunpack.c.l.b16 %v752
        %v768 = vunpack.c.l.b16 %v753
        %v769 = vunpack.c.l.b16 %v754
        %v770 = vpack.c.b16 %v767, %v766
        %v771 = vpack.c.b16 %v769, %v768
        %vm774 = vcmask 261120
        %v776 = vsel %vm774, %v749, 0
        %778 = vmatprep.subr.bf16.mxu0 0
        %779 = vmatpush1.bf16.msra.mxu0 %v770
        %780 = vmatprep.subr.bf16.mxu0 0
        %781 = vmatpush1.bf16.msra.mxu0 %v771
        %782 = vmatprep.subr.bf16.mxu0 0
        %783 = vmatpush1.bf16.msra.mxu0 0
        %784 = vmatprep.subr.bf16.mxu0 0
        %785 = vmatpush1.bf16.msra.mxu0 0
        %786 = vmatprep.subr.bf16.mxu0 0
        %787 = vmatpush1.bf16.msra.mxu0 0
        %788 = vmatprep.subr.bf16.mxu0 0
        %789 = vmatpush1.bf16.msra.mxu0 0
        %790 = vmatprep.subr.bf16.mxu0 0
        %791 = vmatpush1.bf16.msra.mxu0 0
        %792 = vmatprep.subr.bf16.mxu0 0
        %793 = vmatpush1.bf16.msra.mxu0 0
        %794 = vmatprep.subr.bf16.mxu0 0
        %795 = vmatpush1.bf16.msra.mxu0 0
        %796 = vmatprep.subr.bf16.mxu0 0
        %797 = vmatpush1.bf16.msra.mxu0 0
        %798 = vmatprep.subr.bf16.mxu0 0
        %799 = vmatpush1.bf16.msra.mxu0 0
        %800 = vmatprep.subr.bf16.mxu0 0
        %801 = vmatpush1.bf16.msra.mxu0 0
        %802 = vmatprep.subr.bf16.mxu0 0
        %803 = vmatpush1.bf16.msra.mxu0 0
        %804 = vmatprep.subr.bf16.mxu0 0
        %805 = vmatpush1.bf16.msra.mxu0 0
        %806 = vmatprep.subr.bf16.mxu0 0
        %807 = vmatpush1.bf16.msra.mxu0 0
        %808 = vmatprep.subr.bf16.mxu0 0
        %809 = vmatpush1.bf16.msra.mxu0 0
        %810 = vmatprep.mubr.bf16.mxu0 0
        %811 = vmatmul.mubr.bf16.gmra.mrb[0].mxu0 %v776
        %v812 = vpop.f32.mrb[0].mxu0
        %v813 = vadd.f32 %v760, %v812
        %v814 = vpop.f32.mrb[0].mxu0
        %v815 = vpop.f32.mrb[0].mxu0
        %v816 = vpop.f32.mrb[0].mxu0
        %817 = vdwg.mxu0
        %v818 = vmul.f32 %v813, 0.35355338
        %v819 = vpack.c.bf16 %v818, %v818
        %v820 = vld [vmem:[#allocation9] sm:$0xf]
        %v821 = vld [vmem:[#allocation9 + $0x4] sm:$0xf]
        %v822 = vld [vmem:[#allocation9 + $0x8] sm:$0xf]
        %v823 = vld [vmem:[#allocation9 + $0xc] sm:$0xf]
        %v824 = vld [vmem:[#allocation11] sm:$0x1]
        %v826 = vlaneseq
        %v827 = vshrl.u32 %v826, 7
        %v828 = vsub.s32 0, %v827
        %v829 = vrot.slane %v824, %v828
        %v835 = vunpack.c.l.b16 %v820
        %v836 = vunpack.c.l.b16 %v821
        %v837 = vunpack.c.l.b16 %v822
        %v838 = vunpack.c.l.b16 %v823
        %v839 = vpack.c.b16 %v836, %v835
        %v840 = vpack.c.b16 %v838, %v837
        %v844 = vsel %vm774, %v750, 0
        %846 = vmatprep.subr.bf16.mxu0 0
        %847 = vmatpush1.bf16.msra.mxu0 %v839
        %848 = vmatprep.subr.bf16.mxu0 0
        %849 = vmatpush1.bf16.msra.mxu0 %v840
        %850 = vmatprep.subr.bf16.mxu0 0
        %851 = vmatpush1.bf16.msra.mxu0 0
        %852 = vmatprep.subr.bf16.mxu0 0
        %853 = vmatpush1.bf16.msra.mxu0 0
        %854 = vmatprep.subr.bf16.mxu0 0
        %855 = vmatpush1.bf16.msra.mxu0 0
        %856 = vmatprep.subr.bf16.mxu0 0
        %857 = vmatpush1.bf16.msra.mxu0 0
        %858 = vmatprep.subr.bf16.mxu0 0
        %859 = vmatpush1.bf16.msra.mxu0 0
        %860 = vmatprep.subr.bf16.mxu0 0
        %861 = vmatpush1.bf16.msra.mxu0 0
        %862 = vmatprep.subr.bf16.mxu0 0
        %863 = vmatpush1.bf16.msra.mxu0 0
        %864 = vmatprep.subr.bf16.mxu0 0
        %865 = vmatpush1.bf16.msra.mxu0 0
        %866 = vmatprep.subr.bf16.mxu0 0
        %867 = vmatpush1.bf16.msra.mxu0 0
        %868 = vmatprep.subr.bf16.mxu0 0
        %869 = vmatpush1.bf16.msra.mxu0 0
        %870 = vmatprep.subr.bf16.mxu0 0
        %871 = vmatpush1.bf16.msra.mxu0 0
        %872 = vmatprep.subr.bf16.mxu0 0
        %873 = vmatpush1.bf16.msra.mxu0 0
        %874 = vmatprep.subr.bf16.mxu0 0
        %875 = vmatpush1.bf16.msra.mxu0 0
        %876 = vmatprep.subr.bf16.mxu0 0
        %877 = vmatpush1.bf16.msra.mxu0 0
        %878 = vmatprep.mubr.bf16.mxu0 0
        %879 = vmatmul.mubr.bf16.gmra.mrb[0].mxu0 %v844
        %v880 = vpop.f32.mrb[0].mxu0
        %v881 = vadd.f32 %v829, %v880
        %v882 = vpop.f32.mrb[0].mxu0
        %v883 = vpop.f32.mrb[0].mxu0
        %v884 = vpop.f32.mrb[0].mxu0
        %885 = vdwg.mxu0
        %v886 = vpack.c.bf16 %v881, %v881
        %v887 = vld [vmem:[%s6] sm:$0xf]
        %v888 = vld [vmem:[%s6 + $0x4] sm:$0xf]
        %v889 = vld [vmem:[%s6 + $0x8] sm:$0xf]
        %v890 = vld [vmem:[%s6 + $0xc] sm:$0xf]
        %v891 = vld [vmem:[#allocation12] sm:$0x1]
        %v893 = vlaneseq
        %v894 = vshrl.u32 %v893, 7
        %v895 = vsub.s32 0, %v894
        %v896 = vrot.slane %v891, %v895
        %v902 = vunpack.c.l.b16 %v887
        %v903 = vunpack.c.l.b16 %v888
        %v904 = vunpack.c.l.b16 %v889
        %v905 = vunpack.c.l.b16 %v890
        %v906 = vpack.c.b16 %v903, %v902
        %v907 = vpack.c.b16 %v905, %v904
        %910 = vmatprep.subr.bf16.mxu0 0
        %911 = vmatpush1.bf16.msra.mxu0 %v906
        %912 = vmatprep.subr.bf16.mxu0 0
        %913 = vmatpush1.bf16.msra.mxu0 %v907
        %914 = vmatprep.subr.bf16.mxu0 0
        %915 = vmatpush1.bf16.msra.mxu0 0
        %916 = vmatprep.subr.bf16.mxu0 0
        %917 = vmatpush1.bf16.msra.mxu0 0
        %918 = vmatprep.subr.bf16.mxu0 0
        %919 = vmatpush1.bf16.msra.mxu0 0
        %920 = vmatprep.subr.bf16.mxu0 0
        %921 = vmatpush1.bf16.msra.mxu0 0
        %922 = vmatprep.subr.bf16.mxu0 0
        %923 = vmatpush1.bf16.msra.mxu0 0
        %924 = vmatprep.subr.bf16.mxu0 0
        %925 = vmatpush1.bf16.msra.mxu0 0
        %926 = vmatprep.subr.bf16.mxu0 0
        %927 = vmatpush1.bf16.msra.mxu0 0
        %928 = vmatprep.subr.bf16.mxu0 0
        %929 = vmatpush1.bf16.msra.mxu0 0
        %930 = vmatprep.subr.bf16.mxu0 0
        %931 = vmatpush1.bf16.msra.mxu0 0
        %932 = vmatprep.subr.bf16.mxu0 0
        %933 = vmatpush1.bf16.msra.mxu0 0
        %934 = vmatprep.subr.bf16.mxu0 0
        %935 = vmatpush1.bf16.msra.mxu0 0
        %936 = vmatprep.subr.bf16.mxu0 0
        %937 = vmatpush1.bf16.msra.mxu0 0
        %938 = vmatprep.subr.bf16.mxu0 0
        %939 = vmatpush1.bf16.msra.mxu0 0
        %940 = vmatprep.subr.bf16.mxu0 0
        %941 = vmatpush1.bf16.msra.mxu0 0
        %942 = vmatprep.mubr.bf16.mxu0 0
        %943 = vmatmul.mubr.bf16.gmra.mrb[0].mxu0 %v844
        %v944 = vpop.f32.mrb[0].mxu0
        %v945 = vadd.f32 %v896, %v944
        %v946 = vpop.f32.mrb[0].mxu0
        %v947 = vpop.f32.mrb[0].mxu0
        %v948 = vpop.f32.mrb[0].mxu0
        %949 = vdwg.mxu0
        %v950 = vpack.c.bf16 %v945, %v945
        %v951 = vld [vmem:[#allocation14] sm:$0xf]
        %v952 = vld [vmem:[#allocation14 + $0x4] sm:$0xf]
        %v953 = vld [vmem:[#allocation14 + $0x8] sm:$0xf]
        %v954 = vld [vmem:[#allocation14 + $0xc] sm:$0xf]
        %955 = vst.msk [vmem:[#allocation2] sm:$0xff] %vm774, 0.0
        %vm956 = vcmask 64512
        %v958 = vsel %vm956, %v819, 0
        %v961 = vsel %vm956, %v886, 0
        %963 = vmatprep.subr.bf16.mxu0 0
        %964 = vmatpush1.bf16.xpose.msra.mxu0 %v961
        %965 = vmatprep.subr.bf16.mxu0 0
        %966 = vmatpush1.bf16.xpose.msra.mxu0 0
        %967 = vmatprep.subr.bf16.mxu0 0
        %968 = vmatpush1.bf16.xpose.msra.mxu0 0
        %969 = vmatprep.subr.bf16.mxu0 0
        %970 = vmatpush1.bf16.xpose.msra.mxu0 0
        %971 = vmatprep.subr.bf16.mxu0 0
        %972 = vmatpush1.bf16.xpose.msra.mxu0 0
        %973 = vmatprep.subr.bf16.mxu0 0
        %974 = vmatpush1.bf16.xpose.msra.mxu0 0
        %975 = vmatprep.subr.bf16.mxu0 0
        %976 = vmatpush1.bf16.xpose.msra.mxu0 0
        %977 = vmatprep.subr.bf16.mxu0 0
        %978 = vmatpush1.bf16.xpose.msra.mxu0 0
        %979 = vmatprep.subr.bf16.mxu0 0
        %980 = vmatpush1.bf16.xpose.msra.mxu0 0
        %981 = vmatprep.subr.bf16.mxu0 0
        %982 = vmatpush1.bf16.xpose.msra.mxu0 0
        %983 = vmatprep.subr.bf16.mxu0 0
        %984 = vmatpush1.bf16.xpose.msra.mxu0 0
        %985 = vmatprep.subr.bf16.mxu0 0
        %986 = vmatpush1.bf16.xpose.msra.mxu0 0
        %987 = vmatprep.subr.bf16.mxu0 0
        %988 = vmatpush1.bf16.xpose.msra.mxu0 0
        %989 = vmatprep.subr.bf16.mxu0 0
        %990 = vmatpush1.bf16.xpose.msra.mxu0 0
        %991 = vmatprep.subr.bf16.mxu0 0
        %992 = vmatpush1.bf16.xpose.msra.mxu0 0
        %993 = vmatprep.subr.bf16.mxu0 0
        %994 = vmatpush1.bf16.xpose.msra.mxu0 0
        %995 = vmatprep.mubr.bf16.mxu0 0
        %996 = vmatmul.mubr.bf16.gmra.mrb[0].mxu0 %v958
        %v997 = vpop.f32.mrb[0].mxu0
        %v998 = vadd.f32 0.0, %v997
        %v999 = vpop.f32.mrb[0].mxu0
        %v1000 = vpop.f32.mrb[0].mxu0
        %v1001 = vpop.f32.mrb[0].mxu0
        %1002 = vdwg.mxu0
        %v1003 = vsel %vm956, %v998, -inf
        %1004 = vmax.xlane.f32.xlu0 %v1003
        %v1005 = vpop.xlane.xlu0 %1004
        %v1006 = vsub.f32 %v998, %v1005
        %v1007 = vmul.f32 %v1006, 1.442695
        %v1008 = vpow.pop %v1007
        %v1009 = vsel %vm956, %v1008, 0.0
        %1010 = vadd.xlane.f32.xlu0 %v1009
        %v1011 = vpop.xlane.xlu0 %1010
        %v1012 = vrcp.pop %v1011
        %v1013 = vmul.f32 %v1008, %v1012
        %v1014 = vpack.c.bf16 %v1013, %v1013
        %v1016 = vsel %vm956, %v1014, 0
        %vm1018 = vcmask 1043456
        %v1020 = vsel %vm1018, %v950, 0
        %1022 = vmatprep.subr.bf16.mxu0 0
        %1023 = vmatpush1.bf16.msra.mxu0 %v1020
        %1024 = vmatprep.subr.bf16.mxu0 0
        %1025 = vmatpush1.bf16.msra.mxu0 0
        %1026 = vmatprep.subr.bf16.mxu0 0
        %1027 = vmatpush1.bf16.msra.mxu0 0
        %1028 = vmatprep.subr.bf16.mxu0 0
        %1029 = vmatpush1.bf16.msra.mxu0 0
        %1030 = vmatprep.subr.bf16.mxu0 0
        %1031 = vmatpush1.bf16.msra.mxu0 0
        %1032 = vmatprep.subr.bf16.mxu0 0
        %1033 = vmatpush1.bf16.msra.mxu0 0
        %1034 = vmatprep.subr.bf16.mxu0 0
        %1035 = vmatpush1.bf16.msra.mxu0 0
        %1036 = vmatprep.subr.bf16.mxu0 0
        %1037 = vmatpush1.bf16.msra.mxu0 0
        %1038 = vmatprep.subr.bf16.mxu0 0
        %1039 = vmatpush1.bf16.msra.mxu0 0
        %1040 = vmatprep.subr.bf16.mxu0 0
        %1041 = vmatpush1.bf16.msra.mxu0 0
        %1042 = vmatprep.subr.bf16.mxu0 0
        %1043 = vmatpush1.bf16.msra.mxu0 0
        %1044 = vmatprep.subr.bf16.mxu0 0
        %1045 = vmatpush1.bf16.msra.mxu0 0
        %1046 = vmatprep.subr.bf16.mxu0 0
        %1047 = vmatpush1.bf16.msra.mxu0 0
        %1048 = vmatprep.subr.bf16.mxu0 0
        %1049 = vmatpush1.bf16.msra.mxu0 0
        %1050 = vmatprep.subr.bf16.mxu0 0
        %1051 = vmatpush1.bf16.msra.mxu0 0
        %1052 = vmatprep.subr.bf16.mxu0 0
        %1053 = vmatpush1.bf16.msra.mxu0 0
        %1054 = vmatprep.mubr.bf16.mxu0 0
        %1055 = vmatmul.mubr.bf16.gmra.mrb[0].mxu0 %v1016
        %v1056 = vpop.f32.mrb[0].mxu0
        %v1057 = vadd.f32 0.0, %v1056
        %v1058 = vpop.f32.mrb[0].mxu0
        %v1059 = vpop.f32.mrb[0].mxu0
        %v1060 = vpop.f32.mrb[0].mxu0
        %1061 = vdwg.mxu0
        %v1062 = vld [vmem:[#allocation2] sm:$0xff]
        %v1063 = vpack.c.bf16 %v1057, %v1057
        %v1065 = vsel %vm956, %v1063, 0
        %v1068 = vsel %vm1018, %v951, 0
        %1070 = vmatprep.subr.bf16.mxu0 0
        %1071 = vmatpush1.bf16.msra.mxu0 %v1068
        %1072 = vmatprep.subr.bf16.mxu0 0
        %1073 = vmatpush1.bf16.msra.mxu0 0
        %1074 = vmatprep.subr.bf16.mxu0 0
        %1075 = vmatpush1.bf16.msra.mxu0 0
        %1076 = vmatprep.subr.bf16.mxu0 0
        %1077 = vmatpush1.bf16.msra.mxu0 0
        %1078 = vmatprep.subr.bf16.mxu0 0
        %1079 = vmatpush1.bf16.msra.mxu0 0
        %1080 = vmatprep.subr.bf16.mxu0 0
        %1081 = vmatpush1.bf16.msra.mxu0 0
        %1082 = vmatprep.subr.bf16.mxu0 0
        %1083 = vmatpush1.bf16.msra.mxu0 0
        %1084 = vmatprep.subr.bf16.mxu0 0
        %1085 = vmatpush1.bf16.msra.mxu0 0
        %1086 = vmatprep.subr.bf16.mxu0 0
        %1087 = vmatpush1.bf16.msra.mxu0 0
        %1088 = vmatprep.subr.bf16.mxu0 0
        %1089 = vmatpush1.bf16.msra.mxu0 0
        %1090 = vmatprep.subr.bf16.mxu0 0
        %1091 = vmatpush1.bf16.msra.mxu0 0
        %1092 = vmatprep.subr.bf16.mxu0 0
        %1093 = vmatpush1.bf16.msra.mxu0 0
        %1094 = vmatprep.subr.bf16.mxu0 0
        %1095 = vmatpush1.bf16.msra.mxu0 0
        %1096 = vmatprep.subr.bf16.mxu0 0
        %1097 = vmatpush1.bf16.msra.mxu0 0
        %1098 = vmatprep.subr.bf16.mxu0 0
        %1099 = vmatpush1.bf16.msra.mxu0 0
        %1100 = vmatprep.subr.bf16.mxu0 0
        %1101 = vmatpush1.bf16.msra.mxu0 0
        %1102 = vmatprep.mubr.bf16.mxu0 0
        %1103 = vmatmul.mubr.bf16.gmra.mrb[0].mxu0 %v1065
        %v1104 = vpop.f32.mrb[0].mxu0
        %v1105 = vadd.f32 0.0, %v1104
        %v1106 = vpop.f32.mrb[0].mxu0
        %v1107 = vpop.f32.mrb[0].mxu0
        %v1108 = vpop.f32.mrb[0].mxu0
        %1109 = vdwg.mxu0
        %v1110 = vadd.f32 %v1062, %v1105
        %1111 = vst.msk [vmem:[#allocation2] sm:$0xff] %vm774, %v1110
        %1113 = vrot.lane.b32.xlu0 %v819, 120
        %v1114 = vpop.permute.xlu0 %1113
        %1116 = vrot.lane.b32.xlu0 %v886, 120
        %v1117 = vpop.permute.xlu0 %1116
        %v1119 = vsel %vm956, %v1114, 0
        %v1122 = vsel %vm956, %v1117, 0
        %1124 = vmatprep.subr.bf16.mxu0 0
        %1125 = vmatpush1.bf16.xpose.msra.mxu0 %v1122
        %1126 = vmatprep.subr.bf16.mxu0 0
        %1127 = vmatpush1.bf16.xpose.msra.mxu0 0
        %1128 = vmatprep.subr.bf16.mxu0 0
        %1129 = vmatpush1.bf16.xpose.msra.mxu0 0
        %1130 = vmatprep.subr.bf16.mxu0 0
        %1131 = vmatpush1.bf16.xpose.msra.mxu0 0
        %1132 = vmatprep.subr.bf16.mxu0 0
        %1133 = vmatpush1.bf16.xpose.msra.mxu0 0
        %1134 = vmatprep.subr.bf16.mxu0 0
        %1135 = vmatpush1.bf16.xpose.msra.mxu0 0
        %1136 = vmatprep.subr.bf16.mxu0 0
        %1137 = vmatpush1.bf16.xpose.msra.mxu0 0
        %1138 = vmatprep.subr.bf16.mxu0 0
        %1139 = vmatpush1.bf16.xpose.msra.mxu0 0
        %1140 = vmatprep.subr.bf16.mxu0 0
        %1141 = vmatpush1.bf16.xpose.msra.mxu0 0
        %1142 = vmatprep.subr.bf16.mxu0 0
        %1143 = vmatpush1.bf16.xpose.msra.mxu0 0
        %1144 = vmatprep.subr.bf16.mxu0 0
        %1145 = vmatpush1.bf16.xpose.msra.mxu0 0
        %1146 = vmatprep.subr.bf16.mxu0 0
        %1147 = vmatpush1.bf16.xpose.msra.mxu0 0
        %1148 = vmatprep.subr.bf16.mxu0 0
        %1149 = vmatpush1.bf16.xpose.msra.mxu0 0
        %1150 = vmatprep.subr.bf16.mxu0 0
        %1151 = vmatpush1.bf16.xpose.msra.mxu0 0
        %1152 = vmatprep.subr.bf16.mxu0 0
        %1153 = vmatpush1.bf16.xpose.msra.mxu0 0
        %1154 = vmatprep.subr.bf16.mxu0 0
        %1155 = vmatpush1.bf16.xpose.msra.mxu0 0
        %1156 = vmatprep.mubr.bf16.mxu0 0
        %1157 = vmatmul.mubr.bf16.gmra.mrb[0].mxu0 %v1119
        %v1158 = vpop.f32.mrb[0].mxu0
        %v1159 = vadd.f32 0.0, %v1158
        %v1160 = vpop.f32.mrb[0].mxu0
        %v1161 = vpop.f32.mrb[0].mxu0
        %v1162 = vpop.f32.mrb[0].mxu0
        %1163 = vdwg.mxu0
        %v1164 = vsel %vm956, %v1159, -inf
        %1165 = vmax.xlane.f32.xlu0 %v1164
        %v1166 = vpop.xlane.xlu0 %1165
        %v1167 = vsub.f32 %v1159, %v1166
        %v1168 = vmul.f32 %v1167, 1.442695
        %v1169 = vpow.pop %v1168
        %v1170 = vsel %vm956, %v1169, 0.0
        %1171 = vadd.xlane.f32.xlu0 %v1170
        %v1172 = vpop.xlane.xlu0 %1171
        %v1173 = vrcp.pop %v1172
        %v1174 = vmul.f32 %v1169, %v1173
        %v1175 = vpack.c.bf16 %v1174, %v1174
        %1177 = vrot.lane.b32.xlu0 %v950, 120
        %v1178 = vpop.permute.xlu0 %1177
        %v1180 = vsel %vm956, %v1175, 0
        %v1183 = vsel %vm1018, %v1178, 0
        %1185 = vmatprep.subr.bf16.mxu0 0
        %1186 = vmatpush1.bf16.msra.mxu0 %v1183
        %1187 = vmatprep.subr.bf16.mxu0 0
        %1188 = vmatpush1.bf16.msra.mxu0 0
        %1189 = vmatprep.subr.bf16.mxu0 0
        %1190 = vmatpush1.bf16.msra.mxu0 0
        %1191 = vmatprep.subr.bf16.mxu0 0
        %1192 = vmatpush1.bf16.msra.mxu0 0
        %1193 = vmatprep.subr.bf16.mxu0 0
        %1194 = vmatpush1.bf16.msra.mxu0 0
        %1195 = vmatprep.subr.bf16.mxu0 0
        %1196 = vmatpush1.bf16.msra.mxu0 0
        %1197 = vmatprep.subr.bf16.mxu0 0
        %1198 = vmatpush1.bf16.msra.mxu0 0
        %1199 = vmatprep.subr.bf16.mxu0 0
        %1200 = vmatpush1.bf16.msra.mxu0 0
        %1201 = vmatprep.subr.bf16.mxu0 0
        %1202 = vmatpush1.bf16.msra.mxu0 0
        %1203 = vmatprep.subr.bf16.mxu0 0
        %1204 = vmatpush1.bf16.msra.mxu0 0
        %1205 = vmatprep.subr.bf16.mxu0 0
        %1206 = vmatpush1.bf16.msra.mxu0 0
        %1207 = vmatprep.subr.bf16.mxu0 0
        %1208 = vmatpush1.bf16.msra.mxu0 0
        %1209 = vmatprep.subr.bf16.mxu0 0
        %1210 = vmatpush1.bf16.msra.mxu0 0
        %1211 = vmatprep.subr.bf16.mxu0 0
        %1212 = vmatpush1.bf16.msra.mxu0 0
        %1213 = vmatprep.subr.bf16.mxu0 0
        %1214 = vmatpush1.bf16.msra.mxu0 0
        %1215 = vmatprep.subr.bf16.mxu0 0
        %1216 = vmatpush1.bf16.msra.mxu0 0
        %1217 = vmatprep.mubr.bf16.mxu0 0
        %1218 = vmatmul.mubr.bf16.gmra.mrb[0].mxu0 %v1180
        %v1219 = vpop.f32.mrb[0].mxu0
        %v1220 = vadd.f32 0.0, %v1219
        %v1221 = vpop.f32.mrb[0].mxu0
        %v1222 = vpop.f32.mrb[0].mxu0
        %v1223 = vpop.f32.mrb[0].mxu0
        %1224 = vdwg.mxu0
        %v1225 = vld [vmem:[#allocation2] sm:$0xff]
        %v1226 = vpack.c.bf16 %v1220, %v1220
        %v1228 = vsel %vm956, %v1226, 0
        %v1231 = vsel %vm1018, %v952, 0
        %1233 = vmatprep.subr.bf16.mxu0 0
        %1234 = vmatpush1.bf16.msra.mxu0 %v1231
        %1235 = vmatprep.subr.bf16.mxu0 0
        %1236 = vmatpush1.bf16.msra.mxu0 0
        %1237 = vmatprep.subr.bf16.mxu0 0
        %1238 = vmatpush1.bf16.msra.mxu0 0
        %1239 = vmatprep.subr.bf16.mxu0 0
        %1240 = vmatpush1.bf16.msra.mxu0 0
        %1241 = vmatprep.subr.bf16.mxu0 0
        %1242 = vmatpush1.bf16.msra.mxu0 0
        %1243 = vmatprep.subr.bf16.mxu0 0
        %1244 = vmatpush1.bf16.msra.mxu0 0
        %1245 = vmatprep.subr.bf16.mxu0 0
        %1246 = vmatpush1.bf16.msra.mxu0 0
        %1247 = vmatprep.subr.bf16.mxu0 0
        %1248 = vmatpush1.bf16.msra.mxu0 0
        %1249 = vmatprep.subr.bf16.mxu0 0
        %1250 = vmatpush1.bf16.msra.mxu0 0
        %1251 = vmatprep.subr.bf16.mxu0 0
        %1252 = vmatpush1.bf16.msra.mxu0 0
        %1253 = vmatprep.subr.bf16.mxu0 0
        %1254 = vmatpush1.bf16.msra.mxu0 0
        %1255 = vmatprep.subr.bf16.mxu0 0
        %1256 = vmatpush1.bf16.msra.mxu0 0
        %1257 = vmatprep.subr.bf16.mxu0 0
        %1258 = vmatpush1.bf16.msra.mxu0 0
        %1259 = vmatprep.subr.bf16.mxu0 0
        %1260 = vmatpush1.bf16.msra.mxu0 0
        %1261 = vmatprep.subr.bf16.mxu0 0
        %1262 = vmatpush1.bf16.msra.mxu0 0
        %1263 = vmatprep.subr.bf16.mxu0 0
        %1264 = vmatpush1.bf16.msra.mxu0 0
        %1265 = vmatprep.mubr.bf16.mxu0 0
        %1266 = vmatmul.mubr.bf16.gmra.mrb[0].mxu0 %v1228
        %v1267 = vpop.f32.mrb[0].mxu0
        %v1268 = vadd.f32 0.0, %v1267
        %v1269 = vpop.f32.mrb[0].mxu0
        %v1270 = vpop.f32.mrb[0].mxu0
        %v1271 = vpop.f32.mrb[0].mxu0
        %1272 = vdwg.mxu0
        %v1273 = vadd.f32 %v1225, %v1268
        %1274 = vst.msk [vmem:[#allocation2] sm:$0xff] %vm774, %v1273
        %1275 = vrot.lane.b32.xlu0 %v819, 112
        %v1276 = vpop.permute.xlu0 %1275
        %1277 = vrot.lane.b32.xlu0 %v886, 112
        %v1278 = vpop.permute.xlu0 %1277
        %v1280 = vsel %vm956, %v1276, 0
        %v1283 = vsel %vm956, %v1278, 0
        %1285 = vmatprep.subr.bf16.mxu0 0
        %1286 = vmatpush1.bf16.xpose.msra.mxu0 %v1283
        %1287 = vmatprep.subr.bf16.mxu0 0
        %1288 = vmatpush1.bf16.xpose.msra.mxu0 0
        %1289 = vmatprep.subr.bf16.mxu0 0
        %1290 = vmatpush1.bf16.xpose.msra.mxu0 0
        %1291 = vmatprep.subr.bf16.mxu0 0
        %1292 = vmatpush1.bf16.xpose.msra.mxu0 0
        %1293 = vmatprep.subr.bf16.mxu0 0
        %1294 = vmatpush1.bf16.xpose.msra.mxu0 0
        %1295 = vmatprep.subr.bf16.mxu0 0
        %1296 = vmatpush1.bf16.xpose.msra.mxu0 0
        %1297 = vmatprep.subr.bf16.mxu0 0
        %1298 = vmatpush1.bf16.xpose.msra.mxu0 0
        %1299 = vmatprep.subr.bf16.mxu0 0
        %1300 = vmatpush1.bf16.xpose.msra.mxu0 0
        %1301 = vmatprep.subr.bf16.mxu0 0
        %1302 = vmatpush1.bf16.xpose.msra.mxu0 0
        %1303 = vmatprep.subr.bf16.mxu0 0
        %1304 = vmatpush1.bf16.xpose.msra.mxu0 0
        %1305 = vmatprep.subr.bf16.mxu0 0
        %1306 = vmatpush1.bf16.xpose.msra.mxu0 0
        %1307 = vmatprep.subr.bf16.mxu0 0
        %1308 = vmatpush1.bf16.xpose.msra.mxu0 0
        %1309 = vmatprep.subr.bf16.mxu0 0
        %1310 = vmatpush1.bf16.xpose.msra.mxu0 0
        %1311 = vmatprep.subr.bf16.mxu0 0
        %1312 = vmatpush1.bf16.xpose.msra.mxu0 0
        %1313 = vmatprep.subr.bf16.mxu0 0
        %1314 = vmatpush1.bf16.xpose.msra.mxu0 0
        %1315 = vmatprep.subr.bf16.mxu0 0
        %1316 = vmatpush1.bf16.xpose.msra.mxu0 0
        %1317 = vmatprep.mubr.bf16.mxu0 0
        %1318 = vmatmul.mubr.bf16.gmra.mrb[0].mxu0 %v1280
        %v1319 = vpop.f32.mrb[0].mxu0
        %v1320 = vadd.f32 0.0, %v1319
        %v1321 = vpop.f32.mrb[0].mxu0
        %v1322 = vpop.f32.mrb[0].mxu0
        %v1323 = vpop.f32.mrb[0].mxu0
        %1324 = vdwg.mxu0
        %v1325 = vsel %vm956, %v1320, -inf
        %1326 = vmax.xlane.f32.xlu0 %v1325
        %v1327 = vpop.xlane.xlu0 %1326
        %v1328 = vsub.f32 %v1320, %v1327
        %v1329 = vmul.f32 %v1328, 1.442695
        %v1330 = vpow.pop %v1329
        %v1331 = vsel %vm956, %v1330, 0.0
        %1332 = vadd.xlane.f32.xlu0 %v1331
        %v1333 = vpop.xlane.xlu0 %1332
        %v1334 = vrcp.pop %v1333
        %v1335 = vmul.f32 %v1330, %v1334
        %v1336 = vpack.c.bf16 %v1335, %v1335
        %1337 = vrot.lane.b32.xlu0 %v950, 112
        %v1338 = vpop.permute.xlu0 %1337
        %v1340 = vsel %vm956, %v1336, 0
        %v1343 = vsel %vm1018, %v1338, 0
        %1345 = vmatprep.subr.bf16.mxu0 0
        %1346 = vmatpush1.bf16.msra.mxu0 %v1343
        %1347 = vmatprep.subr.bf16.mxu0 0
        %1348 = vmatpush1.bf16.msra.mxu0 0
        %1349 = vmatprep.subr.bf16.mxu0 0
        %1350 = vmatpush1.bf16.msra.mxu0 0
        %1351 = vmatprep.subr.bf16.mxu0 0
        %1352 = vmatpush1.bf16.msra.mxu0 0
        %1353 = vmatprep.subr.bf16.mxu0 0
        %1354 = vmatpush1.bf16.msra.mxu0 0
        %1355 = vmatprep.subr.bf16.mxu0 0
        %1356 = vmatpush1.bf16.msra.mxu0 0
        %1357 = vmatprep.subr.bf16.mxu0 0
        %1358 = vmatpush1.bf16.msra.mxu0 0
        %1359 = vmatprep.subr.bf16.mxu0 0
        %1360 = vmatpush1.bf16.msra.mxu0 0
        %1361 = vmatprep.subr.bf16.mxu0 0
        %1362 = vmatpush1.bf16.msra.mxu0 0
        %1363 = vmatprep.subr.bf16.mxu0 0
        %1364 = vmatpush1.bf16.msra.mxu0 0
        %1365 = vmatprep.subr.bf16.mxu0 0
        %1366 = vmatpush1.bf16.msra.mxu0 0
        %1367 = vmatprep.subr.bf16.mxu0 0
        %1368 = vmatpush1.bf16.msra.mxu0 0
        %1369 = vmatprep.subr.bf16.mxu0 0
        %1370 = vmatpush1.bf16.msra.mxu0 0
        %1371 = vmatprep.subr.bf16.mxu0 0
        %1372 = vmatpush1.bf16.msra.mxu0 0
        %1373 = vmatprep.subr.bf16.mxu0 0
        %1374 = vmatpush1.bf16.msra.mxu0 0
        %1375 = vmatprep.subr.bf16.mxu0 0
        %1376 = vmatpush1.bf16.msra.mxu0 0
        %1377 = vmatprep.mubr.bf16.mxu0 0
        %1378 = vmatmul.mubr.bf16.gmra.mrb[0].mxu0 %v1340
        %v1379 = vpop.f32.mrb[0].mxu0
        %v1380 = vadd.f32 0.0, %v1379
        %v1381 = vpop.f32.mrb[0].mxu0
        %v1382 = vpop.f32.mrb[0].mxu0
        %v1383 = vpop.f32.mrb[0].mxu0
        %1384 = vdwg.mxu0
        %v1385 = vld [vmem:[#allocation2] sm:$0xff]
        %v1386 = vpack.c.bf16 %v1380, %v1380
        %v1388 = vsel %vm956, %v1386, 0
        %v1391 = vsel %vm1018, %v953, 0
        %1393 = vmatprep.subr.bf16.mxu0 0
        %1394 = vmatpush1.bf16.msra.mxu0 %v1391
        %1395 = vmatprep.subr.bf16.mxu0 0
        %1396 = vmatpush1.bf16.msra.mxu0 0
        %1397 = vmatprep.subr.bf16.mxu0 0
        %1398 = vmatpush1.bf16.msra.mxu0 0
        %1399 = vmatprep.subr.bf16.mxu0 0
        %1400 = vmatpush1.bf16.msra.mxu0 0
        %1401 = vmatprep.subr.bf16.mxu0 0
        %1402 = vmatpush1.bf16.msra.mxu0 0
        %1403 = vmatprep.subr.bf16.mxu0 0
        %1404 = vmatpush1.bf16.msra.mxu0 0
        %1405 = vmatprep.subr.bf16.mxu0 0
        %1406 = vmatpush1.bf16.msra.mxu0 0
        %1407 = vmatprep.subr.bf16.mxu0 0
        %1408 = vmatpush1.bf16.msra.mxu0 0
        %1409 = vmatprep.subr.bf16.mxu0 0
        %1410 = vmatpush1.bf16.msra.mxu0 0
        %1411 = vmatprep.subr.bf16.mxu0 0
        %1412 = vmatpush1.bf16.msra.mxu0 0
        %1413 = vmatprep.subr.bf16.mxu0 0
        %1414 = vmatpush1.bf16.msra.mxu0 0
        %1415 = vmatprep.subr.bf16.mxu0 0
        %1416 = vmatpush1.bf16.msra.mxu0 0
        %1417 = vmatprep.subr.bf16.mxu0 0
        %1418 = vmatpush1.bf16.msra.mxu0 0
        %1419 = vmatprep.subr.bf16.mxu0 0
        %1420 = vmatpush1.bf16.msra.mxu0 0
        %1421 = vmatprep.subr.bf16.mxu0 0
        %1422 = vmatpush1.bf16.msra.mxu0 0
        %1423 = vmatprep.subr.bf16.mxu0 0
        %1424 = vmatpush1.bf16.msra.mxu0 0
        %1425 = vmatprep.mubr.bf16.mxu0 0
        %1426 = vmatmul.mubr.bf16.gmra.mrb[0].mxu0 %v1388
        %v1427 = vpop.f32.mrb[0].mxu0
        %v1428 = vadd.f32 0.0, %v1427
        %v1429 = vpop.f32.mrb[0].mxu0
        %v1430 = vpop.f32.mrb[0].mxu0
        %v1431 = vpop.f32.mrb[0].mxu0
        %1432 = vdwg.mxu0
        %v1433 = vadd.f32 %v1385, %v1428
        %1434 = vst.msk [vmem:[#allocation2] sm:$0xff] %vm774, %v1433
        %1435 = vrot.lane.b32.xlu0 %v819, 104
        %v1436 = vpop.permute.xlu0 %1435
        %1437 = vrot.lane.b32.xlu0 %v886, 104
        %v1438 = vpop.permute.xlu0 %1437
        %v1440 = vsel %vm956, %v1436, 0
        %v1443 = vsel %vm956, %v1438, 0
        %1445 = vmatprep.subr.bf16.mxu0 0
        %1446 = vmatpush1.bf16.xpose.msra.mxu0 %v1443
        %1447 = vmatprep.subr.bf16.mxu0 0
        %1448 = vmatpush1.bf16.xpose.msra.mxu0 0
        %1449 = vmatprep.subr.bf16.mxu0 0
        %1450 = vmatpush1.bf16.xpose.msra.mxu0 0
        %1451 = vmatprep.subr.bf16.mxu0 0
        %1452 = vmatpush1.bf16.xpose.msra.mxu0 0
        %1453 = vmatprep.subr.bf16.mxu0 0
        %1454 = vmatpush1.bf16.xpose.msra.mxu0 0
        %1455 = vmatprep.subr.bf16.mxu0 0
        %1456 = vmatpush1.bf16.xpose.msra.mxu0 0
        %1457 = vmatprep.subr.bf16.mxu0 0
        %1458 = vmatpush1.bf16.xpose.msra.mxu0 0
        %1459 = vmatprep.subr.bf16.mxu0 0
        %1460 = vmatpush1.bf16.xpose.msra.mxu0 0
        %1461 = vmatprep.subr.bf16.mxu0 0
        %1462 = vmatpush1.bf16.xpose.msra.mxu0 0
        %1463 = vmatprep.subr.bf16.mxu0 0
        %1464 = vmatpush1.bf16.xpose.msra.mxu0 0
        %1465 = vmatprep.subr.bf16.mxu0 0
        %1466 = vmatpush1.bf16.xpose.msra.mxu0 0
        %1467 = vmatprep.subr.bf16.mxu0 0
        %1468 = vmatpush1.bf16.xpose.msra.mxu0 0
        %1469 = vmatprep.subr.bf16.mxu0 0
        %1470 = vmatpush1.bf16.xpose.msra.mxu0 0
        %1471 = vmatprep.subr.bf16.mxu0 0
        %1472 = vmatpush1.bf16.xpose.msra.mxu0 0
        %1473 = vmatprep.subr.bf16.mxu0 0
        %1474 = vmatpush1.bf16.xpose.msra.mxu0 0
        %1475 = vmatprep.subr.bf16.mxu0 0
        %1476 = vmatpush1.bf16.xpose.msra.mxu0 0
        %1477 = vmatprep.mubr.bf16.mxu0 0
        %1478 = vmatmul.mubr.bf16.gmra.mrb[0].mxu0 %v1440
        %v1479 = vpop.f32.mrb[0].mxu0
        %v1480 = vadd.f32 0.0, %v1479
        %v1481 = vpop.f32.mrb[0].mxu0
        %v1482 = vpop.f32.mrb[0].mxu0
        %v1483 = vpop.f32.mrb[0].mxu0
        %1484 = vdwg.mxu0
        %v1485 = vsel %vm956, %v1480, -inf
        %1486 = vmax.xlane.f32.xlu0 %v1485
        %v1487 = vpop.xlane.xlu0 %1486
        %v1488 = vsub.f32 %v1480, %v1487
        %v1489 = vmul.f32 %v1488, 1.442695
        %v1490 = vpow.pop %v1489
        %v1491 = vsel %vm956, %v1490, 0.0
        %1492 = vadd.xlane.f32.xlu0 %v1491
        %v1493 = vpop.xlane.xlu0 %1492
        %v1494 = vrcp.pop %v1493
        %v1495 = vmul.f32 %v1490, %v1494
        %v1496 = vpack.c.bf16 %v1495, %v1495
        %1497 = vrot.lane.b32.xlu0 %v950, 104
        %v1498 = vpop.permute.xlu0 %1497
        %v1500 = vsel %vm956, %v1496, 0
        %v1503 = vsel %vm1018, %v1498, 0
        %1505 = vmatprep.subr.bf16.mxu0 0
        %1506 = vmatpush1.bf16.msra.mxu0 %v1503
        %1507 = vmatprep.subr.bf16.mxu0 0
        %1508 = vmatpush1.bf16.msra.mxu0 0
        %1509 = vmatprep.subr.bf16.mxu0 0
        %1510 = vmatpush1.bf16.msra.mxu0 0
        %1511 = vmatprep.subr.bf16.mxu0 0
        %1512 = vmatpush1.bf16.msra.mxu0 0
        %1513 = vmatprep.subr.bf16.mxu0 0
        %1514 = vmatpush1.bf16.msra.mxu0 0
        %1515 = vmatprep.subr.bf16.mxu0 0
        %1516 = vmatpush1.bf16.msra.mxu0 0
        %1517 = vmatprep.subr.bf16.mxu0 0
        %1518 = vmatpush1.bf16.msra.mxu0 0
        %1519 = vmatprep.subr.bf16.mxu0 0
        %1520 = vmatpush1.bf16.msra.mxu0 0
        %1521 = vmatprep.subr.bf16.mxu0 0
        %1522 = vmatpush1.bf16.msra.mxu0 0
        %1523 = vmatprep.subr.bf16.mxu0 0
        %1524 = vmatpush1.bf16.msra.mxu0 0
        %1525 = vmatprep.subr.bf16.mxu0 0
        %1526 = vmatpush1.bf16.msra.mxu0 0
        %1527 = vmatprep.subr.bf16.mxu0 0
        %1528 = vmatpush1.bf16.msra.mxu0 0
        %1529 = vmatprep.subr.bf16.mxu0 0
        %1530 = vmatpush1.bf16.msra.mxu0 0
        %1531 = vmatprep.subr.bf16.mxu0 0
        %1532 = vmatpush1.bf16.msra.mxu0 0
        %1533 = vmatprep.subr.bf16.mxu0 0
        %1534 = vmatpush1.bf16.msra.mxu0 0
        %1535 = vmatprep.subr.bf16.mxu0 0
        %1536 = vmatpush1.bf16.msra.mxu0 0
        %1537 = vmatprep.mubr.bf16.mxu0 0
        %1538 = vmatmul.mubr.bf16.gmra.mrb[0].mxu0 %v1500
        %v1539 = vpop.f32.mrb[0].mxu0
        %v1540 = vadd.f32 0.0, %v1539
        %v1541 = vpop.f32.mrb[0].mxu0
        %v1542 = vpop.f32.mrb[0].mxu0
        %v1543 = vpop.f32.mrb[0].mxu0
        %1544 = vdwg.mxu0
        %v1545 = vld [vmem:[#allocation2] sm:$0xff]
        %v1546 = vpack.c.bf16 %v1540, %v1540
        %v1548 = vsel %vm956, %v1546, 0
        %v1551 = vsel %vm1018, %v954, 0
        %1553 = vmatprep.subr.bf16.mxu0 0
        %1554 = vmatpush1.bf16.msra.mxu0 %v1551
        %1555 = vmatprep.subr.bf16.mxu0 0
        %1556 = vmatpush1.bf16.msra.mxu0 0
        %1557 = vmatprep.subr.bf16.mxu0 0
        %1558 = vmatpush1.bf16.msra.mxu0 0
        %1559 = vmatprep.subr.bf16.mxu0 0
        %1560 = vmatpush1.bf16.msra.mxu0 0
        %1561 = vmatprep.subr.bf16.mxu0 0
        %1562 = vmatpush1.bf16.msra.mxu0 0
        %1563 = vmatprep.subr.bf16.mxu0 0
        %1564 = vmatpush1.bf16.msra.mxu0 0
        %1565 = vmatprep.subr.bf16.mxu0 0
        %1566 = vmatpush1.bf16.msra.mxu0 0
        %1567 = vmatprep.subr.bf16.mxu0 0
        %1568 = vmatpush1.bf16.msra.mxu0 0
        %1569 = vmatprep.subr.bf16.mxu0 0
        %1570 = vmatpush1.bf16.msra.mxu0 0
        %1571 = vmatprep.subr.bf16.mxu0 0
        %1572 = vmatpush1.bf16.msra.mxu0 0
        %1573 = vmatprep.subr.bf16.mxu0 0
        %1574 = vmatpush1.bf16.msra.mxu0 0
        %1575 = vmatprep.subr.bf16.mxu0 0
        %1576 = vmatpush1.bf16.msra.mxu0 0
        %1577 = vmatprep.subr.bf16.mxu0 0
        %1578 = vmatpush1.bf16.msra.mxu0 0
        %1579 = vmatprep.subr.bf16.mxu0 0
        %1580 = vmatpush1.bf16.msra.mxu0 0
        %1581 = vmatprep.subr.bf16.mxu0 0
        %1582 = vmatpush1.bf16.msra.mxu0 0
        %1583 = vmatprep.subr.bf16.mxu0 0
        %1584 = vmatpush1.bf16.msra.mxu0 0
        %1585 = vmatprep.mubr.bf16.mxu0 0
        %1586 = vmatmul.mubr.bf16.gmra.mrb[0].mxu0 %v1548
        %v1587 = vpop.f32.mrb[0].mxu0
        %v1588 = vadd.f32 0.0, %v1587
        %v1589 = vpop.f32.mrb[0].mxu0
        %v1590 = vpop.f32.mrb[0].mxu0
        %v1591 = vpop.f32.mrb[0].mxu0
        %1592 = vdwg.mxu0
        %v1593 = vadd.f32 %v1545, %v1588
        %1594 = vst.msk [vmem:[#allocation2] sm:$0xff] %vm774, %v1593
        %v1595 = vld [vmem:[#allocation2] sm:$0xff]
        %v1596 = vld [vmem:[#allocation15] sm:$0x1]
        %v1598 = vlaneseq
        %v1599 = vshrl.u32 %v1598, 7
        %v1600 = vsub.s32 0, %v1599
        %v1601 = vrot.slane %v1596, %v1600
        %v1603 = vadd.f32 %v1595, %v1601
        %v1604 = vadd.f32 %v747, %v1603
        %v1605 = vld [vmem:[#allocation17] sm:$0x1]
        %v1606 = vld [vmem:[#allocation18] sm:$0x1]
        %v1607 = vsel %vm774, %v1604, 0.0
        %1608 = vadd.xlane.f32.xlu0 %v1607
        %v1609 = vpop.xlane.xlu0 %1608
        %v1610 = vrcp.pop 32.0
        %v1611 = vmul.f32 %v1609, %v1610
        %v1612 = vsub.f32 %v1604, %v1611
        %v1613 = vmul.f32 %v1612, %v1612
        %v1614 = vsel %vm774, %v1613, 0.0
        %1615 = vadd.xlane.f32.xlu0 %v1614
        %v1616 = vpop.xlane.xlu0 %1615
        %v1617 = vmul.f32 %v1616, %v1610
        %v1618 = vadd.f32 %v1617, 1e-05
        %v1619 = vrsqrt.pop %v1618
        %v1620 = vmul.f32 %v1612, %v1619
        %v1622 = vlaneseq
        %v1623 = vshrl.u32 %v1622, 7
        %v1624 = vsub.s32 0, %v1623
        %v1625 = vrot.slane %v1605, %v1624
        %v1627 = vmul.f32 %v1620, %v1625
        %v1629 = vlaneseq
        %v1630 = vshrl.u32 %v1629, 7
        %v1631 = vsub.s32 0, %v1630
        %v1632 = vrot.slane %v1606, %v1631
        %v1634 = vadd.f32 %v1627, %v1632
        %v1635 = vpack.c.bf16 %v1634, %v1634
        %v1636 = vld [vmem:[%s12] sm:$0xf]
        %v1637 = vld [vmem:[%s12 + $0x4] sm:$0xf]
        %v1638 = vld [vmem:[%s12 + $0x8] sm:$0xf]
        %v1639 = vld [vmem:[%s12 + $0xc] sm:$0xf]
        %v1640 = vld [vmem:[#allocation20] sm:$0x1]
        %v1642 = vlaneseq
        %v1643 = vshrl.u32 %v1642, 7
        %v1644 = vsub.s32 0, %v1643
        %v1645 = vrot.slane %v1640, %v1644
        %v1651 = vunpack.c.l.b16 %v1636
        %v1652 = vunpack.c.l.b16 %v1637
        %v1653 = vunpack.c.l.b16 %v1638
        %v1654 = vunpack.c.l.b16 %v1639
        %v1655 = vpack.c.b16 %v1652, %v1651
        %v1656 = vpack.c.b16 %v1654, %v1653
        %v1660 = vsel %vm774, %v1635, 0
        %1662 = vmatprep.subr.bf16.mxu0 0
        %1663 = vmatpush1.bf16.msra.mxu0 %v1655
        %1664 = vmatprep.subr.bf16.mxu0 0
        %1665 = vmatpush1.bf16.msra.mxu0 %v1656
        %1666 = vmatprep.subr.bf16.mxu0 0
        %1667 = vmatpush1.bf16.msra.mxu0 0
        %1668 = vmatprep.subr.bf16.mxu0 0
        %1669 = vmatpush1.bf16.msra.mxu0 0
        %1670 = vmatprep.subr.bf16.mxu0 0
        %1671 = vmatpush1.bf16.msra.mxu0 0
        %1672 = vmatprep.subr.bf16.mxu0 0
        %1673 = vmatpush1.bf16.msra.mxu0 0
        %1674 = vmatprep.subr.bf16.mxu0 0
        %1675 = vmatpush1.bf16.msra.mxu0 0
        %1676 = vmatprep.subr.bf16.mxu0 0
        %1677 = vmatpush1.bf16.msra.mxu0 0
        %1678 = vmatprep.subr.bf16.mxu0 0
        %1679 = vmatpush1.bf16.msra.mxu0 0
        %1680 = vmatprep.subr.bf16.mxu0 0
        %1681 = vmatpush1.bf16.msra.mxu0 0
        %1682 = vmatprep.subr.bf16.mxu0 0
        %1683 = vmatpush1.bf16.msra.mxu0 0
        %1684 = vmatprep.subr.bf16.mxu0 0
        %1685 = vmatpush1.bf16.msra.mxu0 0
        %1686 = vmatprep.subr.bf16.mxu0 0
        %1687 = vmatpush1.bf16.msra.mxu0 0
        %1688 = vmatprep.subr.bf16.mxu0 0
        %1689 = vmatpush1.bf16.msra.mxu0 0
        %1690 = vmatprep.subr.bf16.mxu0 0
        %1691 = vmatpush1.bf16.msra.mxu0 0
        %1692 = vmatprep.subr.bf16.mxu0 0
        %1693 = vmatpush1.bf16.msra.mxu0 0
        %1694 = vmatprep.mubr.bf16.mxu0 0
        %1695 = vmatmul.mubr.bf16.gmra.mrb[0].mxu0 %v1660
        %v1696 = vpop.f32.mrb[0].mxu0
        %v1697 = vadd.f32 %v1645, %v1696
        %v1698 = vpop.f32.mrb[0].mxu0
        %v1699 = vpop.f32.mrb[0].mxu0
        %v1700 = vpop.f32.mrb[0].mxu0
        %1701 = vdwg.mxu0
        %v1702 = vmul.f32 %v1697, 0.5
        %v1703 = vmul.f32 %v1697, 0.70710677
        %v1704 = verf.f32.pop %v1703
        %v1705 = vadd.f32 %v1704, 1.0
        %v1706 = vmul.f32 %v1702, %v1705
        %v1707 = vpack.c.bf16 %v1706, %v1706
        %v1708 = vld [vmem:[%s14] sm:$0xf]
        %v1709 = vld [vmem:[%s14 + $0x4] sm:$0xf]
        %v1710 = vld [vmem:[%s14 + $0x8] sm:$0xf]
        %v1711 = vld [vmem:[%s14 + $0xc] sm:$0xf]
        %v1712 = vld [vmem:[%s15] sm:$0x1]
        %v1714 = vlaneseq
        %v1715 = vshrl.u32 %v1714, 7
        %v1716 = vsub.s32 0, %v1715
        %v1717 = vrot.slane %v1712, %v1716
        %v1723 = vunpack.c.l.b16 %v1708
        %v1724 = vunpack.c.l.b16 %v1709
        %v1725 = vunpack.c.l.b16 %v1710
        %v1726 = vunpack.c.l.b16 %v1711
        %v1727 = vpack.c.b16 %v1724, %v1723
        %v1728 = vpack.c.b16 %v1726, %v1725
        %v1732 = vsel %vm774, %v1707, 0
        %1734 = vmatprep.subr.bf16.mxu0 0
        %1735 = vmatpush1.bf16.msra.mxu0 %v1727
        %1736 = vmatprep.subr.bf16.mxu0 0
        %1737 = vmatpush1.bf16.msra.mxu0 %v1728
        %1738 = vmatprep.subr.bf16.mxu0 0
        %1739 = vmatpush1.bf16.msra.mxu0 0
        %1740 = vmatprep.subr.bf16.mxu0 0
        %1741 = vmatpush1.bf16.msra.mxu0 0
        %1742 = vmatprep.subr.bf16.mxu0 0
        %1743 = vmatpush1.bf16.msra.mxu0 0
        %1744 = vmatprep.subr.bf16.mxu0 0
        %1745 = vmatpush1.bf16.msra.mxu0 0
        %1746 = vmatprep.subr.bf16.mxu0 0
        %1747 = vmatpush1.bf16.msra.mxu0 0
        %1748 = vmatprep.subr.bf16.mxu0 0
        %1749 = vmatpush1.bf16.msra.mxu0 0
        %1750 = vmatprep.subr.bf16.mxu0 0
        %1751 = vmatpush1.bf16.msra.mxu0 0
        %1752 = vmatprep.subr.bf16.mxu0 0
        %1753 = vmatpush1.bf16.msra.mxu0 0
        %1754 = vmatprep.subr.bf16.mxu0 0
        %1755 = vmatpush1.bf16.msra.mxu0 0
        %1756 = vmatprep.subr.bf16.mxu0 0
        %1757 = vmatpush1.bf16.msra.mxu0 0
        %1758 = vmatprep.subr.bf16.mxu0 0
        %1759 = vmatpush1.bf16.msra.mxu0 0
        %1760 = vmatprep.subr.bf16.mxu0 0
        %1761 = vmatpush1.bf16.msra.mxu0 0
        %1762 = vmatprep.subr.bf16.mxu0 0
        %1763 = vmatpush1.bf16.msra.mxu0 0
        %1764 = vmatprep.subr.bf16.mxu0 0
        %1765 = vmatpush1.bf16.msra.mxu0 0
        %1766 = vmatprep.mubr.bf16.mxu0 0
        %1767 = vmatmul.mubr.bf16.gmra.mrb[0].mxu0 %v1732
        %v1768 = vpop.f32.mrb[0].mxu0
        %v1769 = vadd.f32 %v1717, %v1768
        %v1770 = vpop.f32.mrb[0].mxu0
        %v1771 = vpop.f32.mrb[0].mxu0
        %v1772 = vpop.f32.mrb[0].mxu0
        %1773 = vdwg.mxu0
        %v1774 = vadd.f32 %v1634, %v1769
        %v1775 = vld [vmem:[%s16] sm:$0x1]
        %v1776 = vld [vmem:[%s17] sm:$0x1]
        %v1777 = vsel %vm774, %v1774, 0.0
        %1778 = vadd.xlane.f32.xlu0 %v1777
        %v1779 = vpop.xlane.xlu0 %1778
        %v1780 = vmul.f32 %v1779, %v1610
        %v1781 = vsub.f32 %v1774, %v1780
        %v1782 = vmul.f32 %v1781, %v1781
        %v1783 = vsel %vm774, %v1782, 0.0
        %1784 = vadd.xlane.f32.xlu0 %v1783
        %v1785 = vpop.xlane.xlu0 %1784
        %v1786 = vmul.f32 %v1785, %v1610
        %v1787 = vadd.f32 %v1786, 1e-05
        %v1788 = vrsqrt.pop %v1787
        %v1789 = vmul.f32 %v1781, %v1788
        %v1791 = vlaneseq
        %v1792 = vshrl.u32 %v1791, 7
        %v1793 = vsub.s32 0, %v1792
        %v1794 = vrot.slane %v1775, %v1793
        %v1796 = vmul.f32 %v1789, %v1794
        %v1798 = vlaneseq
        %v1799 = vshrl.u32 %v1798, 7
        %v1800 = vsub.s32 0, %v1799
        %v1801 = vrot.slane %v1776, %v1800
        %v1803 = vadd.f32 %v1796, %v1801
        %1804 = vst.msk [vmem:[%s745] sm:$0xff] %vm774, %v1803
        %s1805 = sand.u32 %s438, 1
        %s1806 = scalar_lea.sflag [#allocation5], %s1805
        %s1807 = sand.u32 %s438, 1
        %s1808 = smul.addr %s1807, 8
        %s1809 = scalar_lea.vmem [#allocation21], %s1808
        // Predicated region
        $region137: #{tpu_custom_call.1} parent=91 // pred_check
          %p1810 = pneg %p448
        $region138: #{tpu_custom_call.1} parent=91 // pred_check_branch
          %1812 = sbr.rel (%p1810) target = $region140
        $region139: #{tpu_custom_call.1} parent=91 // pred_region
          %s1814 = ssub.s32 128, 128
          %1815 = vsyncadd %s1806, %s1814
          %s1816 = smul.addr %s42, 128
          %s1817 = scalar_lea.hbm %s18, %s1816
          %s1819 = sshll.u32 %s1809, 4
          %s1820 = int_to_ptr.vmem [resolvable:$true] %s1819
          %1822 = dma.vmem_to_hbm [thread:$0]  %s1820, 128, %s1817, %s1806
        $region140: #{tpu_custom_call.1} parent=91 // pred_fallthru
          _
      $region92: #{tpu_custom_call.1} parent=5 // pred_fallthru
        _
      %p1823 = scmp.le.s32.totalorder 2, %s37
      // Predicated region
      $region141: #{tpu_custom_call.1} parent=5 // pred_check
        %p1824 = pneg %p1823
      $region142: #{tpu_custom_call.1} parent=5 // pred_check_branch
        %1826 = sbr.rel (%p1824) target = $region144
      $region143: #{tpu_custom_call.1} parent=5 // pred_region
        %s1827 = ssub.s32 %s37, 2
        // Predicated region
        $region145: #{tpu_custom_call.1} parent=143 // pred_check
          %p1828 = pneg %p454
        $region146: #{tpu_custom_call.1} parent=143 // pred_check_branch
          %1830 = sbr.rel (%p1828) target = $region148
        $region147: #{tpu_custom_call.1} parent=143 // pred_region
          %s1831 = sand.u32 %s439, 1
          %s1832 = scalar_lea.sflag [#allocation5], %s1831
          %s1833 = sand.u32 %s439, 1
          %s1834 = smul.addr %s1833, 8
          %s1835 = scalar_lea.vmem [#allocation21], %s1834
          %1836 = dma.done %s1832, 128
        $region148: #{tpu_custom_call.1} parent=143 // pred_fallthru
          _
      $region144: #{tpu_custom_call.1} parent=5 // pred_fallthru
        _
    $region6: #{tpu_custom_call.1} parent=1 // loop_footer
      %s41 = sadd.s32 1, %s37
    $region7: #{tpu_custom_call.1} parent=1 // loop_footer_branch
      %36 = sbr.rel target = $region3
    $region8: #{tpu_custom_call.1} parent=1 // loop_exit
      _
    %1837 = vsyncpa [#allocation4], 1
    %s1838 = scalar_lea.sflag [#allocation4], 1
    %1839 = vsyncpa %s1838, 1
    %1840 = vsyncpa [#allocation7], 1
    %s1841 = scalar_lea.sflag [#allocation7], 1
    %1842 = vsyncpa %s1841, 1
    %1843 = vsyncpa [#allocation10], 1
    %1844 = vsyncpa [#allocation13], 1
    %1845 = vsyncpa [#allocation16], 1
    %1846 = vsyncpa [#allocation19], 1
    %1847 = vsyncpa [#allocation5], 1
    %s1848 = scalar_lea.sflag [#allocation5], 1
    %1849 = vsyncpa %s1848, 1

// kernel: tpu_custom_call.1
$region0: #{tpu_custom_call.1}
  #allocation0 [shape = 'u32[]', space=smem, size = 0x4, offset = 0x4, fixed_abs, tag = 'smem constant byte address 0x4 - core index']
  #allocation1 [shape = 'u32[144,128]{1,0:T(1,128)}', space=vmem, size = 0x12000, scoped, tag = 'internal scratch']
  #allocation2 [shape = 'f32[8,32]{1,0:T(8,128)}', space=vmem, size = 0x1000, scoped, tag = 'scratch operand']
  %s0 = inlined_call_operand.hbm [shape: f32[16,32], index: 0, kind: input, shape index: {}]
  %s1 = inlined_call_operand.hbm [shape: f32[16,32], index: 1, kind: input, shape index: {}]
  %s2 = inlined_call_operand.hbm [shape: bf16[32,32], index: 2, kind: input, shape index: {}]
  %s3 = inlined_call_operand.vmem [shape: f32[1,32], index: 3, kind: input, shape index: {}]
  %s4 = inlined_call_operand.hbm [shape: bf16[32,32], index: 4, kind: input, shape index: {}]
  %s5 = inlined_call_operand.hbm [shape: f32[1,32], index: 5, kind: input, shape index: {}]
  %s6 = inlined_call_operand.vmem [shape: bf16[32,32], index: 6, kind: input, shape index: {}]
  %s7 = inlined_call_operand.hbm [shape: f32[1,32], index: 7, kind: input, shape index: {}]
  %s8 = inlined_call_operand.hbm [shape: bf16[32,32], index: 8, kind: input, shape index: {}]
  %s9 = inlined_call_operand.hbm [shape: f32[1,32], index: 9, kind: input, shape index: {}]
  %s10 = inlined_call_operand.hbm [shape: f32[1,32], index: 10, kind: input, shape index: {}]
  %s11 = inlined_call_operand.hbm [shape: f32[1,32], index: 11, kind: input, shape index: {}]
  %s12 = inlined_call_operand.vmem [shape: bf16[32,32], index: 12, kind: input, shape index: {}]
  %s13 = inlined_call_operand.hbm [shape: f32[1,32], index: 13, kind: input, shape index: {}]
  %s14 = inlined_call_operand.vmem [shape: bf16[32,32], index: 14, kind: input, shape index: {}]
  %s15 = inlined_call_operand.vmem [shape: f32[1,32], index: 15, kind: input, shape index: {}]
  %s16 = inlined_call_operand.vmem [shape: f32[1,32], index: 16, kind: input, shape index: {}]
  %s17 = inlined_call_operand.vmem [shape: f32[1,32], index: 17, kind: input, shape index: {}]
  %s18 = inlined_call_operand.hbm [shape: f32[16,32], index: 18, kind: output, shape index: {}]
  %s19 = sld [smem:[#allocation0]]
  $region149: #{tpu_custom_call.1} parent=0
    _
  %s21 = ssub.s32 1, %s19
  %s22 = scalar_select 0, %s21, %s19
  $region1: #{tpu_custom_call.1} parent=0
    #allocation3 [shape = 'u8[8192]{0}', space=vmem, size = 0x2000, scoped, tag = 'input window, operand 0']
    #allocation4 [shape = 's32[2]{0}', space=sflag, size = 0x8, scoped, tag = 'scoped memory for tpu_custom_call.1']
    #allocation5 [shape = 's32[2]{0}', space=sflag, size = 0x8, scoped, tag = 'scoped memory for tpu_custom_call.1']
    #allocation6 [shape = 'u8[8192]{0}', space=vmem, size = 0x2000, scoped, tag = 'input window, operand 1']
    #allocation7 [shape = 's32[2]{0}', space=sflag, size = 0x8, scoped, tag = 'scoped memory for tpu_custom_call.1']
    #allocation8 [shape = 'u8[8192]{0}', space=vmem, size = 0x2000, scoped, tag = 'input window, operand 2, single buffered']
    #allocation9 [shape = 'u8[8192]{0}', space=vmem, size = 0x2000, scoped, tag = 'input window, operand 4, single buffered']
    #allocation10 [shape = 's32[1]{0}', space=sflag, size = 0x4, scoped, tag = 'scoped memory for tpu_custom_call.1']
    #allocation11 [shape = 'u8[512]{0}', space=vmem, size = 0x400, scoped, tag = 'input window, operand 5, single buffered']
    #allocation12 [shape = 'u8[512]{0}', space=vmem, size = 0x400, scoped, tag = 'input window, operand 7, single buffered']
    #allocation13 [shape = 's32[1]{0}', space=sflag, size = 0x4, scoped, tag = 'scoped memory for tpu_custom_call.1']
    #allocation14 [shape = 'u8[8192]{0}', space=vmem, size = 0x2000, scoped, tag = 'input window, operand 8, single buffered']
    #allocation15 [shape = 'u8[512]{0}', space=vmem, size = 0x400, scoped, tag = 'input window, operand 9, single buffered']
    #allocation16 [shape = 's32[1]{0}', space=sflag, size = 0x4, scoped, tag = 'scoped memory for tpu_custom_call.1']
    #allocation17 [shape = 'u8[512]{0}', space=vmem, size = 0x400, scoped, tag = 'input window, operand 10, single buffered']
    #allocation18 [shape = 'u8[512]{0}', space=vmem, size = 0x400, scoped, tag = 'input window, operand 11, single buffered']
    #allocation19 [shape = 's32[1]{0}', space=sflag, size = 0x4, scoped, tag = 'scoped memory for tpu_custom_call.1']
    #allocation20 [shape = 'u8[512]{0}', space=vmem, size = 0x400, scoped, tag = 'input window, operand 13, single buffered']
    #allocation21 [shape = 'u8[8192]{0}', space=vmem, size = 0x2000, scoped, tag = 'output window, operand 0']
    %23 = vsyncpa [#allocation4], 0
    %s24 = scalar_lea.sflag [#allocation4], 1
    %25 = vsyncpa %s24, 0
    %26 = vsyncpa [#allocation7], 0
    %s27 = scalar_lea.sflag [#allocation7], 1
    %28 = vsyncpa %s27, 0
    %29 = vsyncpa [#allocation10], 0
    %30 = vsyncpa [#allocation13], 0
    %31 = vsyncpa [#allocation16], 0
    %32 = vsyncpa [#allocation19], 0
    %33 = vsyncpa [#allocation5], 0
    %s34 = scalar_lea.sflag [#allocation5], 1
    %35 = vsyncpa %s34, 0
    loop: start=0, step=1, limit=4
    $region2: #{tpu_custom_call.1} parent=1 // loop_pre_header
      _
    $region3: #{tpu_custom_call.1} parent=1 // loop_header
      %s37 = sphi 0, %s41
      %p38 = scmp.ge.s32.totalorder %s37, 4
      %s47 = sphi 0, %s49
      %s50 = sphi 0, %s47
      %s51 = sphi 0, %s50
      %s67 = sphi 0, %s51
      %s73 = sphi 0, %s75
      %s76 = sphi 0, %s73
      %s77 = sphi 0, %s76
      %s93 = sphi 0, %s77
      %s97 = sphi 0, %s97
      %s99 = sphi 0, %s97
      %s100 = sphi 0, %s99
      %s114 = sphi 0, %s100
      %s118 = sphi 0, %s118
      %s120 = sphi 0, %s118
      %s121 = sphi 0, %s120
      %s135 = sphi 0, %s121
      %s139 = sphi 0, %s139
      %s141 = sphi 0, %s139
      %s142 = sphi 0, %s141
      %s156 = sphi 0, %s142
      %s160 = sphi 0, %s160
      %s162 = sphi 0, %s160
      %s163 = sphi 0, %s162
      %s177 = sphi 0, %s163
      %s181 = sphi 0, %s181
      %s183 = sphi 0, %s181
      %s184 = sphi 0, %s183
      %s198 = sphi 0, %s184
      %s202 = sphi 0, %s202
      %s204 = sphi 0, %s202
      %s205 = sphi 0, %s204
      %s219 = sphi 0, %s205
      %s223 = sphi 0, %s223
      %s225 = sphi 0, %s223
      %s226 = sphi 0, %s225
      %s240 = sphi 0, %s226
      %s244 = sphi 0, %s244
      %s246 = sphi 0, %s244
      %s247 = sphi 0, %s246
      %s261 = sphi 0, %s247
      %s265 = sphi 0, %s265
      %s267 = sphi 0, %s265
      %s268 = sphi 0, %s267
      %s282 = sphi 0, %s268
      %s286 = sphi 0, %s286
      %s288 = sphi 0, %s286
      %s289 = sphi 0, %s288
      %s303 = sphi 0, %s289
      %s307 = sphi 0, %s307
      %s309 = sphi 0, %s307
      %s310 = sphi 0, %s309
      %s324 = sphi 0, %s310
      %s328 = sphi 0, %s328
      %s330 = sphi 0, %s328
      %s331 = sphi 0, %s330
      %s345 = sphi 0, %s331
      %s349 = sphi 0, %s349
      %s351 = sphi 0, %s349
      %s352 = sphi 0, %s351
      %s366 = sphi 0, %s352
      %s370 = sphi 0, %s370
      %s372 = sphi 0, %s370
      %s373 = sphi 0, %s372
      %s387 = sphi 0, %s373
      %s391 = sphi 0, %s391
      %s393 = sphi 0, %s391
      %s394 = sphi 0, %s393
      %s408 = sphi 0, %s394
      %s412 = sphi 0, %s412
      %s414 = sphi 0, %s412
      %s415 = sphi 0, %s414
      %s429 = sphi 0, %s415
      %s435 = sphi 0, %s437
      %s438 = sphi 0, %s435
      %s439 = sphi 0, %s438
      %s455 = sphi 0, %s439
    $region4: #{tpu_custom_call.1} parent=1 // loop_header_branch
      %40 = sbr.rel (%p38) target = $region8
    $region5: #{tpu_custom_call.1} parent=1 // loop_body
      %s42 = ssub.s32 %s37, 1
      %s43 = ssub.s32 %s37, 2
      %s44 = sadd.s32 %s37, 1
      %s45 = ssub.s32 %s37, %s44
      %p46 = scmp.eq.s32.totalorder %s45, 0
      %s48 = sadd.s32 %s47, 1
      %s49 = scalar_select %p46, %s47, %s48
      %p52 = pneg %p46
      %p53 = scmp.eq.s32.totalorder %s37, 1
      %p54 = por %p52, %p53
      %p55 = scmp.ne.s32.totalorder %s47, %s50
      %p56 = scmp.eq.s32.totalorder %s37, 0
      %p57 = por %p55, %p56
      %p58 = scmp.ne.s32.totalorder %s47, %s50
      %p59 = scmp.eq.s32.totalorder %s42, 1
      %p60 = por %p58, %p59
      %p61 = scmp.ne.s32.totalorder %s50, %s51
      %p62 = scmp.eq.s32.totalorder %s42, 0
      %p63 = por %p61, %p62
      %p64 = scmp.ne.s32.totalorder %s50, %s51
      %p65 = scmp.eq.s32.totalorder %s43, 1
      %p66 = por %p64, %p65
      %p68 = scmp.ne.s32.totalorder %s51, %s67
      %p69 = scmp.eq.s32.totalorder %s43, 0
      %p70 = por %p68, %p69
      %s71 = ssub.s32 %s37, %s44
      %p72 = scmp.eq.s32.totalorder %s71, 0
      %s74 = sadd.s32 %s73, 1
      %s75 = scalar_select %p72, %s73, %s74
      %p78 = pneg %p72
      %p79 = scmp.eq.s32.totalorder %s37, 1
      %p80 = por %p78, %p79
      %p81 = scmp.ne.s32.totalorder %s73, %s76
      %p82 = scmp.eq.s32.totalorder %s37, 0
      %p83 = por %p81, %p82
      %p84 = scmp.ne.s32.totalorder %s73, %s76
      %p85 = scmp.eq.s32.totalorder %s42, 1
      %p86 = por %p84, %p85
      %p87 = scmp.ne.s32.totalorder %s76, %s77
      %p88 = scmp.eq.s32.totalorder %s42, 0
      %p89 = por %p87, %p88
      %p90 = scmp.ne.s32.totalorder %s76, %s77
      %p91 = scmp.eq.s32.totalorder %s43, 1
      %p92 = por %p90, %p91
      %p94 = scmp.ne.s32.totalorder %s77, %s93
      %p95 = scmp.eq.s32.totalorder %s43, 0
      %p96 = por %p94, %p95
      %s98 = sadd.s32 %s97, 1
      %p101 = scmp.eq.s32.totalorder %s37, 1
      %p102 = scmp.ne.s32.totalorder %s97, %s99
      %p103 = scmp.eq.s32.totalorder %s37, 0
      %p104 = por %p102, %p103
      %p105 = scmp.ne.s32.totalorder %s97, %s99
      %p106 = scmp.eq.s32.totalorder %s42, 1
      %p107 = por %p105, %p106
      %p108 = scmp.ne.s32.totalorder %s99, %s100
      %p109 = scmp.eq.s32.totalorder %s42, 0
      %p110 = por %p108, %p109
      %p111 = scmp.ne.s32.totalorder %s99, %s100
      %p112 = scmp.eq.s32.totalorder %s43, 1
      %p113 = por %p111, %p112
      %p115 = scmp.ne.s32.totalorder %s100, %s114
      %p116 = scmp.eq.s32.totalorder %s43, 0
      %p117 = por %p115, %p116
      %s119 = sadd.s32 %s118, 1
      %p122 = scmp.eq.s32.totalorder %s37, 1
      %p123 = scmp.ne.s32.totalorder %s118, %s120
      %p124 = scmp.eq.s32.totalorder %s37, 0
      %p125 = por %p123, %p124
      %p126 = scmp.ne.s32.totalorder %s118, %s120
      %p127 = scmp.eq.s32.totalorder %s42, 1
      %p128 = por %p126, %p127
      %p129 = scmp.ne.s32.totalorder %s120, %s121
      %p130 = scmp.eq.s32.totalorder %s42, 0
      %p131 = por %p129, %p130
      %p132 = scmp.ne.s32.totalorder %s120, %s121
      %p133 = scmp.eq.s32.totalorder %s43, 1
      %p134 = por %p132, %p133
      %p136 = scmp.ne.s32.totalorder %s121, %s135
      %p137 = scmp.eq.s32.totalorder %s43, 0
      %p138 = por %p136, %p137
      %s140 = sadd.s32 %s139, 1
      %p143 = scmp.eq.s32.totalorder %s37, 1
      %p144 = scmp.ne.s32.totalorder %s139, %s141
      %p145 = scmp.eq.s32.totalorder %s37, 0
      %p146 = por %p144, %p145
      %p147 = scmp.ne.s32.totalorder %s139, %s141
      %p148 = scmp.eq.s32.totalorder %s42, 1
      %p149 = por %p147, %p148
      %p150 = scmp.ne.s32.totalorder %s141, %s142
      %p151 = scmp.eq.s32.totalorder %s42, 0
      %p152 = por %p150, %p151
      %p153 = scmp.ne.s32.totalorder %s141, %s142
      %p154 = scmp.eq.s32.totalorder %s43, 1
      %p155 = por %p153, %p154
      %p157 = scmp.ne.s32.totalorder %s142, %s156
      %p158 = scmp.eq.s32.totalorder %s43, 0
      %p159 = por %p157, %p158
      %s161 = sadd.s32 %s160, 1
      %p164 = scmp.eq.s32.totalorder %s37, 1
      %p165 = scmp.ne.s32.totalorder %s160, %s162
      %p166 = scmp.eq.s32.totalorder %s37, 0
      %p167 = por %p165, %p166
      %p168 = scmp.ne.s32.totalorder %s160, %s162
      %p169 = scmp.eq.s32.totalorder %s42, 1
      %p170 = por %p168, %p169
      %p171 = scmp.ne.s32.totalorder %s162, %s163
      %p172 = scmp.eq.s32.totalorder %s42, 0
      %p173 = por %p171, %p172
      %p174 = scmp.ne.s32.totalorder %s162, %s163
      %p175 = scmp.eq.s32.totalorder %s43, 1
      %p176 = por %p174, %p175
      %p178 = scmp.ne.s32.totalorder %s163, %s177
      %p179 = scmp.eq.s32.totalorder %s43, 0
      %p180 = por %p178, %p179
      %s182 = sadd.s32 %s181, 1
      %p185 = scmp.eq.s32.totalorder %s37, 1
      %p186 = scmp.ne.s32.totalorder %s181, %s183
      %p187 = scmp.eq.s32.totalorder %s37, 0
      %p188 = por %p186, %p187
      %p189 = scmp.ne.s32.totalorder %s181, %s183
      %p190 = scmp.eq.s32.totalorder %s42, 1
      %p191 = por %p189, %p190
      %p192 = scmp.ne.s32.totalorder %s183, %s184
      %p193 = scmp.eq.s32.totalorder %s42, 0
      %p194 = por %p192, %p193
      %p195 = scmp.ne.s32.totalorder %s183, %s184
      %p196 = scmp.eq.s32.totalorder %s43, 1
      %p197 = por %p195, %p196
      %p199 = scmp.ne.s32.totalorder %s184, %s198
      %p200 = scmp.eq.s32.totalorder %s43, 0
      %p201 = por %p199, %p200
      %s203 = sadd.s32 %s202, 1
      %p206 = scmp.eq.s32.totalorder %s37, 1
      %p207 = scmp.ne.s32.totalorder %s202, %s204
      %p208 = scmp.eq.s32.totalorder %s37, 0
      %p209 = por %p207, %p208
      %p210 = scmp.ne.s32.totalorder %s202, %s204
      %p211 = scmp.eq.s32.totalorder %s42, 1
      %p212 = por %p210, %p211
      %p213 = scmp.ne.s32.totalorder %s204, %s205
      %p214 = scmp.eq.s32.totalorder %s42, 0
      %p215 = por %p213, %p214
      %p216 = scmp.ne.s32.totalorder %s204, %s205
      %p217 = scmp.eq.s32.totalorder %s43, 1
      %p218 = por %p216, %p217
      %p220 = scmp.ne.s32.totalorder %s205, %s219
      %p221 = scmp.eq.s32.totalorder %s43, 0
      %p222 = por %p220, %p221
      %s224 = sadd.s32 %s223, 1
      %p227 = scmp.eq.s32.totalorder %s37, 1
      %p228 = scmp.ne.s32.totalorder %s223, %s225
      %p229 = scmp.eq.s32.totalorder %s37, 0
      %p230 = por %p228, %p229
      %p231 = scmp.ne.s32.totalorder %s223, %s225
      %p232 = scmp.eq.s32.totalorder %s42, 1
      %p233 = por %p231, %p232
      %p234 = scmp.ne.s32.totalorder %s225, %s226
      %p235 = scmp.eq.s32.totalorder %s42, 0
      %p236 = por %p234, %p235
      %p237 = scmp.ne.s32.totalorder %s225, %s226
      %p238 = scmp.eq.s32.totalorder %s43, 1
      %p239 = por %p237, %p238
      %p241 = scmp.ne.s32.totalorder %s226, %s240
      %p242 = scmp.eq.s32.totalorder %s43, 0
      %p243 = por %p241, %p242
      %s245 = sadd.s32 %s244, 1
      %p248 = scmp.eq.s32.totalorder %s37, 1
      %p249 = scmp.ne.s32.totalorder %s244, %s246
      %p250 = scmp.eq.s32.totalorder %s37, 0
      %p251 = por %p249, %p250
      %p252 = scmp.ne.s32.totalorder %s244, %s246
      %p253 = scmp.eq.s32.totalorder %s42, 1
      %p254 = por %p252, %p253
      %p255 = scmp.ne.s32.totalorder %s246, %s247
      %p256 = scmp.eq.s32.totalorder %s42, 0
      %p257 = por %p255, %p256
      %p258 = scmp.ne.s32.totalorder %s246, %s247
      %p259 = scmp.eq.s32.totalorder %s43, 1
      %p260 = por %p258, %p259
      %p262 = scmp.ne.s32.totalorder %s247, %s261
      %p263 = scmp.eq.s32.totalorder %s43, 0
      %p264 = por %p262, %p263
      %s266 = sadd.s32 %s265, 1
      %p269 = scmp.eq.s32.totalorder %s37, 1
      %p270 = scmp.ne.s32.totalorder %s265, %s267
      %p271 = scmp.eq.s32.totalorder %s37, 0
      %p272 = por %p270, %p271
      %p273 = scmp.ne.s32.totalorder %s265, %s267
      %p274 = scmp.eq.s32.totalorder %s42, 1
      %p275 = por %p273, %p274
      %p276 = scmp.ne.s32.totalorder %s267, %s268
      %p277 = scmp.eq.s32.totalorder %s42, 0
      %p278 = por %p276, %p277
      %p279 = scmp.ne.s32.totalorder %s267, %s268
      %p280 = scmp.eq.s32.totalorder %s43, 1
      %p281 = por %p279, %p280
      %p283 = scmp.ne.s32.totalorder %s268, %s282
      %p284 = scmp.eq.s32.totalorder %s43, 0
      %p285 = por %p283, %p284
      %s287 = sadd.s32 %s286, 1
      %p290 = scmp.eq.s32.totalorder %s37, 1
      %p291 = scmp.ne.s32.totalorder %s286, %s288
      %p292 = scmp.eq.s32.totalorder %s37, 0
      %p293 = por %p291, %p292
      %p294 = scmp.ne.s32.totalorder %s286, %s288
      %p295 = scmp.eq.s32.totalorder %s42, 1
      %p296 = por %p294, %p295
      %p297 = scmp.ne.s32.totalorder %s288, %s289
      %p298 = scmp.eq.s32.totalorder %s42, 0
      %p299 = por %p297, %p298
      %p300 = scmp.ne.s32.totalorder %s288, %s289
      %p301 = scmp.eq.s32.totalorder %s43, 1
      %p302 = por %p300, %p301
      %p304 = scmp.ne.s32.totalorder %s289, %s303
      %p305 = scmp.eq.s32.totalorder %s43, 0
      %p306 = por %p304, %p305
      %s308 = sadd.s32 %s307, 1
      %p311 = scmp.eq.s32.totalorder %s37, 1
      %p312 = scmp.ne.s32.totalorder %s307, %s309
      %p313 = scmp.eq.s32.totalorder %s37, 0
      %p314 = por %p312, %p313
      %p315 = scmp.ne.s32.totalorder %s307, %s309
      %p316 = scmp.eq.s32.totalorder %s42, 1
      %p317 = por %p315, %p316
      %p318 = scmp.ne.s32.totalorder %s309, %s310
      %p319 = scmp.eq.s32.totalorder %s42, 0
      %p320 = por %p318, %p319
      %p321 = scmp.ne.s32.totalorder %s309, %s310
      %p322 = scmp.eq.s32.totalorder %s43, 1
      %p323 = por %p321, %p322
      %p325 = scmp.ne.s32.totalorder %s310, %s324
      %p326 = scmp.eq.s32.totalorder %s43, 0
      %p327 = por %p325, %p326
      %s329 = sadd.s32 %s328, 1
      %p332 = scmp.eq.s32.totalorder %s37, 1
      %p333 = scmp.ne.s32.totalorder %s328, %s330
      %p334 = scmp.eq.s32.totalorder %s37, 0
      %p335 = por %p333, %p334
      %p336 = scmp.ne.s32.totalorder %s328, %s330
      %p337 = scmp.eq.s32.totalorder %s42, 1
      %p338 = por %p336, %p337
      %p339 = scmp.ne.s32.totalorder %s330, %s331
      %p340 = scmp.eq.s32.totalorder %s42, 0
      %p341 = por %p339, %p340
      %p342 = scmp.ne.s32.totalorder %s330, %s331
      %p343 = scmp.eq.s32.totalorder %s43, 1
      %p344 = por %p342, %p343
      %p346 = scmp.ne.s32.totalorder %s331, %s345
      %p347 = scmp.eq.s32.totalorder %s43, 0
      %p348 = por %p346, %p347
      %s350 = sadd.s32 %s349, 1
      %p353 = scmp.eq.s32.totalorder %s37, 1
      %p354 = scmp.ne.s32.totalorder %s349, %s351
      %p355 = scmp.eq.s32.totalorder %s37, 0
      %p356 = por %p354, %p355
      %p357 = scmp.ne.s32.totalorder %s349, %s351
      %p358 = scmp.eq.s32.totalorder %s42, 1
      %p359 = por %p357, %p358
      %p360 = scmp.ne.s32.totalorder %s351, %s352
      %p361 = scmp.eq.s32.totalorder %s42, 0
      %p362 = por %p360, %p361
      %p363 = scmp.ne.s32.totalorder %s351, %s352
      %p364 = scmp.eq.s32.totalorder %s43, 1
      %p365 = por %p363, %p364
      %p367 = scmp.ne.s32.totalorder %s352, %s366
      %p368 = scmp.eq.s32.totalorder %s43, 0
      %p369 = por %p367, %p368
      %s371 = sadd.s32 %s370, 1
      %p374 = scmp.eq.s32.totalorder %s37, 1
      %p375 = scmp.ne.s32.totalorder %s370, %s372
      %p376 = scmp.eq.s32.totalorder %s37, 0
      %p377 = por %p375, %p376
      %p378 = scmp.ne.s32.totalorder %s370, %s372
      %p379 = scmp.eq.s32.totalorder %s42, 1
      %p380 = por %p378, %p379
      %p381 = scmp.ne.s32.totalorder %s372, %s373
      %p382 = scmp.eq.s32.totalorder %s42, 0
      %p383 = por %p381, %p382
      %p384 = scmp.ne.s32.totalorder %s372, %s373
      %p385 = scmp.eq.s32.totalorder %s43, 1
      %p386 = por %p384, %p385
      %p388 = scmp.ne.s32.totalorder %s373, %s387
      %p389 = scmp.eq.s32.totalorder %s43, 0
      %p390 = por %p388, %p389
      %s392 = sadd.s32 %s391, 1
      %p395 = scmp.eq.s32.totalorder %s37, 1
      %p396 = scmp.ne.s32.totalorder %s391, %s393
      %p397 = scmp.eq.s32.totalorder %s37, 0
      %p398 = por %p396, %p397
      %p399 = scmp.ne.s32.totalorder %s391, %s393
      %p400 = scmp.eq.s32.totalorder %s42, 1
      %p401 = por %p399, %p400
      %p402 = scmp.ne.s32.totalorder %s393, %s394
      %p403 = scmp.eq.s32.totalorder %s42, 0
      %p404 = por %p402, %p403
      %p405 = scmp.ne.s32.totalorder %s393, %s394
      %p406 = scmp.eq.s32.totalorder %s43, 1
      %p407 = por %p405, %p406
      %p409 = scmp.ne.s32.totalorder %s394, %s408
      %p410 = scmp.eq.s32.totalorder %s43, 0
      %p411 = por %p409, %p410
      %s413 = sadd.s32 %s412, 1
      %p416 = scmp.eq.s32.totalorder %s37, 1
      %p417 = scmp.ne.s32.totalorder %s412, %s414
      %p418 = scmp.eq.s32.totalorder %s37, 0
      %p419 = por %p417, %p418
      %p420 = scmp.ne.s32.totalorder %s412, %s414
      %p421 = scmp.eq.s32.totalorder %s42, 1
      %p422 = por %p420, %p421
      %p423 = scmp.ne.s32.totalorder %s414, %s415
      %p424 = scmp.eq.s32.totalorder %s42, 0
      %p425 = por %p423, %p424
      %p426 = scmp.ne.s32.totalorder %s414, %s415
      %p427 = scmp.eq.s32.totalorder %s43, 1
      %p428 = por %p426, %p427
      %p430 = scmp.ne.s32.totalorder %s415, %s429
      %p431 = scmp.eq.s32.totalorder %s43, 0
      %p432 = por %p430, %p431
      %s433 = ssub.s32 %s37, %s44
      %p434 = scmp.eq.s32.totalorder %s433, 0
      %s436 = sadd.s32 %s435, 1
      %s437 = scalar_select %p434, %s435, %s436
      %p440 = pneg %p434
      %p441 = scmp.eq.s32.totalorder %s37, 1
      %p442 = por %p440, %p441
      %p443 = scmp.ne.s32.totalorder %s435, %s438
      %p444 = scmp.eq.s32.totalorder %s37, 0
      %p445 = por %p443, %p444
      %p446 = scmp.ne.s32.totalorder %s435, %s438
      %p447 = scmp.eq.s32.totalorder %s42, 1
      %p448 = por %p446, %p447
      %p449 = scmp.ne.s32.totalorder %s438, %s439
      %p450 = scmp.eq.s32.totalorder %s42, 0
      %p451 = por %p449, %p450
      %p452 = scmp.ne.s32.totalorder %s438, %s439
      %p453 = scmp.eq.s32.totalorder %s43, 1
      %p454 = por %p452, %p453
      %p456 = scmp.ne.s32.totalorder %s439, %s455
      %p457 = scmp.eq.s32.totalorder %s43, 0
      %p458 = por %p456, %p457
      %p459 = scmp.le.s32.totalorder 1, %s37
      %p460 = scmp.lt.s32.totalorder %s37, 3
      %p461 = pnand %p459, %p460
      %p462 = pneg %p461
      // Predicated region
      $region9: #{tpu_custom_call.1} parent=5 // pred_check
        _
      $region10: #{tpu_custom_call.1} parent=5 // pred_check_branch
        %464 = sbr.rel (%p461) target = $region12
      $region11: #{tpu_custom_call.1} parent=5 // pred_region
        %s465 = ssub.s32 %s37, 1
        // Predicated region
        $region13: #{tpu_custom_call.1} parent=11 // pred_check
          %p466 = pneg %p110
        $region14: #{tpu_custom_call.1} parent=11 // pred_check_branch
          %468 = sbr.rel (%p466) target = $region16
        $region15: #{tpu_custom_call.1} parent=11 // pred_region
          %s470 = ssub.s32 256, 256
          %471 = vsyncadd [#allocation7], %s470
          %s472 = sshll.u32 [#allocation8], 4
          %s473 = int_to_ptr.vmem [resolvable:$true] %s472
          %478 = dma.hbm_to_vmem [thread:$0]  %s2, 256, %s473, [#allocation7], 64, 64, 4
        $region16: #{tpu_custom_call.1} parent=11 // pred_fallthru
          _
        // Predicated region
        $region17: #{tpu_custom_call.1} parent=11 // pred_check
          %p479 = pneg %p131
        $region18: #{tpu_custom_call.1} parent=11 // pred_check_branch
          %481 = sbr.rel (%p479) target = $region20
        $region19: #{tpu_custom_call.1} parent=11 // pred_region
          _
        $region20: #{tpu_custom_call.1} parent=11 // pred_fallthru
          _
        // Predicated region
        $region21: #{tpu_custom_call.1} parent=11 // pred_check
          %p482 = pneg %p152
        $region22: #{tpu_custom_call.1} parent=11 // pred_check_branch
          %484 = sbr.rel (%p482) target = $region24
        $region23: #{tpu_custom_call.1} parent=11 // pred_region
          %s486 = ssub.s32 256, 256
          %487 = vsyncadd [#allocation10], %s486
          %s488 = sshll.u32 [#allocation9], 4
          %s489 = int_to_ptr.vmem [resolvable:$true] %s488
          %494 = dma.hbm_to_vmem [thread:$0]  %s4, 256, %s489, [#allocation10], 64, 64, 4
        $region24: #{tpu_custom_call.1} parent=11 // pred_fallthru
          _
        // Predicated region
        $region25: #{tpu_custom_call.1} parent=11 // pred_check
          %p495 = pneg %p173
        $region26: #{tpu_custom_call.1} parent=11 // pred_check_branch
          %497 = sbr.rel (%p495) target = $region28
        $region27: #{tpu_custom_call.1} parent=11 // pred_region
          %s499 = ssub.s32 16, 16
          %500 = vsyncadd [#allocation10], %s499
          %s502 = sshll.u32 [#allocation11], 4
          %s503 = int_to_ptr.vmem [resolvable:$true] %s502
          %505 = dma.hbm_to_vmem [thread:$0]  %s5, 16, %s503, [#allocation10]
        $region28: #{tpu_custom_call.1} parent=11 // pred_fallthru
          _
        // Predicated region
        $region29: #{tpu_custom_call.1} parent=11 // pred_check
          %p506 = pneg %p194
        $region30: #{tpu_custom_call.1} parent=11 // pred_check_branch
          %508 = sbr.rel (%p506) target = $region32
        $region31: #{tpu_custom_call.1} parent=11 // pred_region
          _
        $region32: #{tpu_custom_call.1} parent=11 // pred_fallthru
          _
        // Predicated region
        $region33: #{tpu_custom_call.1} parent=11 // pred_check
          %p509 = pneg %p215
        $region34: #{tpu_custom_call.1} parent=11 // pred_check_branch
          %511 = sbr.rel (%p509) target = $region36
        $region35: #{tpu_custom_call.1} parent=11 // pred_region
          %s513 = ssub.s32 16, 16
          %514 = vsyncadd [#allocation13], %s513
          %s516 = sshll.u32 [#allocation12], 4
          %s517 = int_to_ptr.vmem [resolvable:$true] %s516
          %519 = dma.hbm_to_vmem [thread:$0]  %s7, 16, %s517, [#allocation13]
        $region36: #{tpu_custom_call.1} parent=11 // pred_fallthru
          _
        // Predicated region
        $region37: #{tpu_custom_call.1} parent=11 // pred_check
          %p520 = pneg %p236
        $region38: #{tpu_custom_call.1} parent=11 // pred_check_branch
          %522 = sbr.rel (%p520) target = $region40
        $region39: #{tpu_custom_call.1} parent=11 // pred_region
          %s524 = ssub.s32 256, 256
          %525 = vsyncadd [#allocation13], %s524
          %s526 = sshll.u32 [#allocation14], 4
          %s527 = int_to_ptr.vmem [resolvable:$true] %s526
          %532 = dma.hbm_to_vmem [thread:$0]  %s8, 256, %s527, [#allocation13], 64, 64, 4
        $region40: #{tpu_custom_call.1} parent=11 // pred_fallthru
          _
        // Predicated region
        $region41: #{tpu_custom_call.1} parent=11 // pred_check
          %p533 = pneg %p257
        $region42: #{tpu_custom_call.1} parent=11 // pred_check_branch
          %535 = sbr.rel (%p533) target = $region44
        $region43: #{tpu_custom_call.1} parent=11 // pred_region
          %s537 = ssub.s32 16, 16
          %538 = vsyncadd [#allocation16], %s537
          %s540 = sshll.u32 [#allocation15], 4
          %s541 = int_to_ptr.vmem [resolvable:$true] %s540
          %543 = dma.hbm_to_vmem [thread:$0]  %s9, 16, %s541, [#allocation16]
        $region44: #{tpu_custom_call.1} parent=11 // pred_fallthru
          _
        // Predicated region
        $region45: #{tpu_custom_call.1} parent=11 // pred_check
          %p544 = pneg %p278
        $region46: #{tpu_custom_call.1} parent=11 // pred_check_branch
          %546 = sbr.rel (%p544) target = $region48
        $region47: #{tpu_custom_call.1} parent=11 // pred_region
          %s548 = ssub.s32 16, 16
          %549 = vsyncadd [#allocation16], %s548
          %s551 = sshll.u32 [#allocation17], 4
          %s552 = int_to_ptr.vmem [resolvable:$true] %s551
          %554 = dma.hbm_to_vmem [thread:$0]  %s10, 16, %s552, [#allocation16]
        $region48: #{tpu_custom_call.1} parent=11 // pred_fallthru
          _
        // Predicated region
        $region49: #{tpu_custom_call.1} parent=11 // pred_check
          %p555 = pneg %p299
        $region50: #{tpu_custom_call.1} parent=11 // pred_check_branch
          %557 = sbr.rel (%p555) target = $region52
        $region51: #{tpu_custom_call.1} parent=11 // pred_region
          %s559 = ssub.s32 16, 16
          %560 = vsyncadd [#allocation19], %s559
          %s562 = sshll.u32 [#allocation18], 4
          %s563 = int_to_ptr.vmem [resolvable:$true] %s562
          %565 = dma.hbm_to_vmem [thread:$0]  %s11, 16, %s563, [#allocation19]
        $region52: #{tpu_custom_call.1} parent=11 // pred_fallthru
          _
        // Predicated region
        $region53: #{tpu_custom_call.1} parent=11 // pred_check
          %p566 = pneg %p320
        $region54: #{tpu_custom_call.1} parent=11 // pred_check_branch
          %568 = sbr.rel (%p566) target = $region56
        $region55: #{tpu_custom_call.1} parent=11 // pred_region
          _
        $region56: #{tpu_custom_call.1} parent=11 // pred_fallthru
          _
        // Predicated region
        $region57: #{tpu_custom_call.1} parent=11 // pred_check
          %p569 = pneg %p341
        $region58: #{tpu_custom_call.1} parent=11 // pred_check_branch
          %571 = sbr.rel (%p569) target = $region60
        $region59: #{tpu_custom_call.1} parent=11 // pred_region
          %s573 = ssub.s32 16, 16
          %574 = vsyncadd [#allocation19], %s573
          %s576 = sshll.u32 [#allocation20], 4
          %s577 = int_to_ptr.vmem [resolvable:$true] %s576
          %579 = dma.hbm_to_vmem [thread:$0]  %s13, 16, %s577, [#allocation19]
        $region60: #{tpu_custom_call.1} parent=11 // pred_fallthru
          _
        // Predicated region
        $region61: #{tpu_custom_call.1} parent=11 // pred_check
          %p580 = pneg %p362
        $region62: #{tpu_custom_call.1} parent=11 // pred_check_branch
          %582 = sbr.rel (%p580) target = $region64
        $region63: #{tpu_custom_call.1} parent=11 // pred_region
          _
        $region64: #{tpu_custom_call.1} parent=11 // pred_fallthru
          _
        // Predicated region
        $region65: #{tpu_custom_call.1} parent=11 // pred_check
          %p583 = pneg %p383
        $region66: #{tpu_custom_call.1} parent=11 // pred_check_branch
          %585 = sbr.rel (%p583) target = $region68
        $region67: #{tpu_custom_call.1} parent=11 // pred_region
          _
        $region68: #{tpu_custom_call.1} parent=11 // pred_fallthru
          _
        // Predicated region
        $region69: #{tpu_custom_call.1} parent=11 // pred_check
          %p586 = pneg %p404
        $region70: #{tpu_custom_call.1} parent=11 // pred_check_branch
          %588 = sbr.rel (%p586) target = $region72
        $region71: #{tpu_custom_call.1} parent=11 // pred_region
          _
        $region72: #{tpu_custom_call.1} parent=11 // pred_fallthru
          _
        // Predicated region
        $region73: #{tpu_custom_call.1} parent=11 // pred_check
          %p589 = pneg %p425
        $region74: #{tpu_custom_call.1} parent=11 // pred_check_branch
          %591 = sbr.rel (%p589) target = $region76
        $region75: #{tpu_custom_call.1} parent=11 // pred_region
          _
        $region76: #{tpu_custom_call.1} parent=11 // pred_fallthru
          _
      $region12: #{tpu_custom_call.1} parent=5 // pred_fallthru
        _
      %p592 = scmp.lt.s32.totalorder %s37, 2
      // Predicated region
      $region77: #{tpu_custom_call.1} parent=5 // pred_check
        %p593 = pneg %p592
      $region78: #{tpu_custom_call.1} parent=5 // pred_check_branch
        %595 = sbr.rel (%p593) target = $region80
      $region79: #{tpu_custom_call.1} parent=5 // pred_region
        // Predicated region
        $region81: #{tpu_custom_call.1} parent=79 // pred_check
          %p596 = pneg %p57
        $region82: #{tpu_custom_call.1} parent=79 // pred_check_branch
          %598 = sbr.rel (%p596) target = $region84
        $region83: #{tpu_custom_call.1} parent=79 // pred_region
          %s599 = sand.u32 %s47, 1
          %s600 = scalar_lea.sflag [#allocation4], %s599
          %s601 = sand.u32 %s47, 1
          %s602 = smul.addr %s601, 8
          %s603 = scalar_lea.vmem [#allocation3], %s602
          %s605 = ssub.s32 128, 128
          %606 = vsyncadd %s600, %s605
          %s607 = smul.addr %s37, 128
          %s608 = scalar_lea.hbm %s0, %s607
          %s610 = sshll.u32 %s603, 4
          %s611 = int_to_ptr.vmem [resolvable:$true] %s610
          %613 = dma.hbm_to_vmem [thread:$0]  %s608, 128, %s611, %s600
        $region84: #{tpu_custom_call.1} parent=79 // pred_fallthru
          _
        // Predicated region
        $region85: #{tpu_custom_call.1} parent=79 // pred_check
          %p614 = pneg %p83
        $region86: #{tpu_custom_call.1} parent=79 // pred_check_branch
          %616 = sbr.rel (%p614) target = $region88
        $region87: #{tpu_custom_call.1} parent=79 // pred_region
          %s617 = sand.u32 %s37, 1
          %s618 = scalar_lea.sflag [#allocation7], %s617
          %s619 = sand.u32 %s73, 1
          %s620 = smul.addr %s619, 8
          %s621 = scalar_lea.vmem [#allocation6], %s620
          %s623 = ssub.s32 128, 128
          %624 = vsyncadd %s618, %s623
          %s625 = smul.addr %s37, 128
          %s626 = scalar_lea.hbm %s1, %s625
          %s628 = sshll.u32 %s621, 4
          %s629 = int_to_ptr.vmem [resolvable:$true] %s628
          %631 = dma.hbm_to_vmem [thread:$0]  %s626, 128, %s629, %s618
        $region88: #{tpu_custom_call.1} parent=79 // pred_fallthru
          _
      $region80: #{tpu_custom_call.1} parent=5 // pred_fallthru
        _
      %p632 = scmp.le.s32.totalorder 1, %s37
      %p633 = scmp.lt.s32.totalorder %s37, 3
      %p634 = pnand %p632, %p633
      %p635 = pneg %p634
      // Predicated region
      $region89: #{tpu_custom_call.1} parent=5 // pred_check
        _
      $region90: #{tpu_custom_call.1} parent=5 // pred_check_branch
        %637 = sbr.rel (%p634) target = $region92
      $region91: #{tpu_custom_call.1} parent=5 // pred_region
        %s638 = ssub.s32 %s37, 1
        %s639 = sand.u32 %s50, 1
        %s640 = scalar_lea.sflag [#allocation4], %s639
        %s641 = sand.u32 %s50, 1
        %s642 = smul.addr %s641, 8
        %s643 = scalar_lea.vmem [#allocation3], %s642
        // Predicated region
        $region93: #{tpu_custom_call.1} parent=91 // pred_check
          %p644 = pneg %p63
        $region94: #{tpu_custom_call.1} parent=91 // pred_check_branch
          %646 = sbr.rel (%p644) target = $region96
        $region95: #{tpu_custom_call.1} parent=91 // pred_region
          %647 = dma.done %s640, 128
        $region96: #{tpu_custom_call.1} parent=91 // pred_fallthru
          _
        %s648 = sand.u32 %s42, 1
        %s649 = scalar_lea.sflag [#allocation7], %s648
        %s650 = sand.u32 %s76, 1
        %s651 = smul.addr %s650, 8
        %s652 = scalar_lea.vmem [#allocation6], %s651
        // Predicated region
        $region97: #{tpu_custom_call.1} parent=91 // pred_check
          %p653 = pneg %p89
        $region98: #{tpu_custom_call.1} parent=91 // pred_check_branch
          %655 = sbr.rel (%p653) target = $region100
        $region99: #{tpu_custom_call.1} parent=91 // pred_region
          %656 = dma.done %s649, 128
        $region100: #{tpu_custom_call.1} parent=91 // pred_fallthru
          _
        // Predicated region
        $region101: #{tpu_custom_call.1} parent=91 // pred_check
          %p657 = pneg %p110
        $region102: #{tpu_custom_call.1} parent=91 // pred_check_branch
          %659 = sbr.rel (%p657) target = $region104
        $region103: #{tpu_custom_call.1} parent=91 // pred_region
          %660 = dma.done [#allocation7], 256
        $region104: #{tpu_custom_call.1} parent=91 // pred_fallthru
          _
        // Predicated region
        $region105: #{tpu_custom_call.1} parent=91 // pred_check
          %p661 = pneg %p152
        $region106: #{tpu_custom_call.1} parent=91 // pred_check_branch
          %663 = sbr.rel (%p661) target = $region108
        $region107: #{tpu_custom_call.1} parent=91 // pred_region
          %664 = dma.done [#allocation10], 256
        $region108: #{tpu_custom_call.1} parent=91 // pred_fallthru
          _
        // Predicated region
        $region109: #{tpu_custom_call.1} parent=91 // pred_check
          %p665 = pneg %p173
        $region110: #{tpu_custom_call.1} parent=91 // pred_check_branch
          %667 = sbr.rel (%p665) target = $region112
        $region111: #{tpu_custom_call.1} parent=91 // pred_region
          %668 = dma.done [#allocation10], 16
        $region112: #{tpu_custom_call.1} parent=91 // pred_fallthru
          _
        // Predicated region
        $region113: #{tpu_custom_call.1} parent=91 // pred_check
          %p669 = pneg %p215
        $region114: #{tpu_custom_call.1} parent=91 // pred_check_branch
          %671 = sbr.rel (%p669) target = $region116
        $region115: #{tpu_custom_call.1} parent=91 // pred_region
          %672 = dma.done [#allocation13], 16
        $region116: #{tpu_custom_call.1} parent=91 // pred_fallthru
          _
        // Predicated region
        $region117: #{tpu_custom_call.1} parent=91 // pred_check
          %p673 = pneg %p236
        $region118: #{tpu_custom_call.1} parent=91 // pred_check_branch
          %675 = sbr.rel (%p673) target = $region120
        $region119: #{tpu_custom_call.1} parent=91 // pred_region
          %676 = dma.done [#allocation13], 256
        $region120: #{tpu_custom_call.1} parent=91 // pred_fallthru
          _
        // Predicated region
        $region121: #{tpu_custom_call.1} parent=91 // pred_check
          %p677 = pneg %p257
        $region122: #{tpu_custom_call.1} parent=91 // pred_check_branch
          %679 = sbr.rel (%p677) target = $region124
        $region123: #{tpu_custom_call.1} parent=91 // pred_region
          %680 = dma.done [#allocation16], 16
        $region124: #{tpu_custom_call.1} parent=91 // pred_fallthru
          _
        // Predicated region
        $region125: #{tpu_custom_call.1} parent=91 // pred_check
          %p681 = pneg %p278
        $region126: #{tpu_custom_call.1} parent=91 // pred_check_branch
          %683 = sbr.rel (%p681) target = $region128
        $region127: #{tpu_custom_call.1} parent=91 // pred_region
          %684 = dma.done [#allocation16], 16
        $region128: #{tpu_custom_call.1} parent=91 // pred_fallthru
          _
        // Predicated region
        $region129: #{tpu_custom_call.1} parent=91 // pred_check
          %p685 = pneg %p299
        $region130: #{tpu_custom_call.1} parent=91 // pred_check_branch
          %687 = sbr.rel (%p685) target = $region132
        $region131: #{tpu_custom_call.1} parent=91 // pred_region
          %688 = dma.done [#allocation19], 16
        $region132: #{tpu_custom_call.1} parent=91 // pred_fallthru
          _
        // Predicated region
        $region133: #{tpu_custom_call.1} parent=91 // pred_check
          %p689 = pneg %p341
        $region134: #{tpu_custom_call.1} parent=91 // pred_check_branch
          %691 = sbr.rel (%p689) target = $region136
        $region135: #{tpu_custom_call.1} parent=91 // pred_region
          %692 = dma.done [#allocation19], 16
        $region136: #{tpu_custom_call.1} parent=91 // pred_fallthru
          _
        %s693 = sand.u32 %s50, 1
        %s694 = scalar_lea.sflag [#allocation4], %s693
        %s695 = sand.u32 %s50, 1
        %s696 = smul.addr %s695, 8
        %s697 = scalar_lea.vmem [#allocation3], %s696
        %p698 = pneg %p63
        %p699 = pneg %p60
        %s700 = sand.u32 %s42, 1
        %s701 = scalar_lea.sflag [#allocation7], %s700
        %s702 = sand.u32 %s76, 1
        %s703 = smul.addr %s702, 8
        %s704 = scalar_lea.vmem [#allocation6], %s703
        %p705 = pneg %p89
        %p706 = pneg %p86
        %p707 = pneg %p110
        %p708 = pneg %p107
        %p709 = pneg %p131
        %p710 = pneg %p128
        %p711 = pneg %p152
        %p712 = pneg %p149
        %p713 = pneg %p173
        %p714 = pneg %p170
        %p715 = pneg %p194
        %p716 = pneg %p191
        %p717 = pneg %p215
        %p718 = pneg %p212
        %p719 = pneg %p236
        %p720 = pneg %p233
        %p721 = pneg %p257
        %p722 = pneg %p254
        %p723 = pneg %p278
        %p724 = pneg %p275
        %p725 = pneg %p299
        %p726 = pneg %p296
        %p727 = pneg %p320
        %p728 = pneg %p317
        %p729 = pneg %p341
        %p730 = pneg %p338
        %p731 = pneg %p362
        %p732 = pneg %p359
        %p733 = pneg %p383
        %p734 = pneg %p380
        %p735 = pneg %p404
        %p736 = pneg %p401
        %p737 = pneg %p425
        %p738 = pneg %p422
        %p739 = pneg %p451
        %p740 = pneg %p448
        %s741 = sand.u32 %s438, 1
        %s742 = scalar_lea.sflag [#allocation5], %s741
        %s743 = sand.u32 %s438, 1
        %s744 = smul.addr %s743, 8
        %s745 = scalar_lea.vmem [#allocation21], %s744
        %v747 = vld [vmem:[%s643] sm:$0xff]
        %v748 = vld [vmem:[%s652] sm:$0xff]
        %v749 = vpack.c.bf16 %v747, %v747
        %v750 = vpack.c.bf16 %v748, %v748
        %v751 = vld [vmem:[#allocation8] sm:$0xf]
        %v752 = vld [vmem:[#allocation8 + $0x4] sm:$0xf]
        %v753 = vld [vmem:[#allocation8 + $0x8] sm:$0xf]
        %v754 = vld [vmem:[#allocation8 + $0xc] sm:$0xf]
        %v755 = vld [vmem:[%s3] sm:$0x1]
        %v757 = vlaneseq
        %v758 = vshrl.u32 %v757, 7
        %v759 = vsub.s32 0, %v758
        %v760 = vrot.slane %v755, %v759
        %v766 = vunpack.c.l.b16 %v751
        %v767 = vunpack.c.l.b16 %v752
        %v768 = vunpack.c.l.b16 %v753
        %v769 = vunpack.c.l.b16 %v754
        %v770 = vpack.c.b16 %v767, %v766
        %v771 = vpack.c.b16 %v769, %v768
        %vm774 = vcmask 261120
        %v776 = vsel %vm774, %v749, 0
        %778 = vmatprep.subr.bf16.mxu0 0
        %779 = vmatpush1.bf16.msra.mxu0 %v770
        %780 = vmatprep.subr.bf16.mxu0 0
        %781 = vmatpush1.bf16.msra.mxu0 %v771
        %782 = vmatprep.subr.bf16.mxu0 0
        %783 = vmatpush1.bf16.msra.mxu0 0
        %784 = vmatprep.subr.bf16.mxu0 0
        %785 = vmatpush1.bf16.msra.mxu0 0
        %786 = vmatprep.subr.bf16.mxu0 0
        %787 = vmatpush1.bf16.msra.mxu0 0
        %788 = vmatprep.subr.bf16.mxu0 0
        %789 = vmatpush1.bf16.msra.mxu0 0
        %790 = vmatprep.subr.bf16.mxu0 0
        %791 = vmatpush1.bf16.msra.mxu0 0
        %792 = vmatprep.subr.bf16.mxu0 0
        %793 = vmatpush1.bf16.msra.mxu0 0
        %794 = vmatprep.subr.bf16.mxu0 0
        %795 = vmatpush1.bf16.msra.mxu0 0
        %796 = vmatprep.subr.bf16.mxu0 0
        %797 = vmatpush1.bf16.msra.mxu0 0
        %798 = vmatprep.subr.bf16.mxu0 0
        %799 = vmatpush1.bf16.msra.mxu0 0
        %800 = vmatprep.subr.bf16.mxu0 0
        %801 = vmatpush1.bf16.msra.mxu0 0
        %802 = vmatprep.subr.bf16.mxu0 0
        %803 = vmatpush1.bf16.msra.mxu0 0
        %804 = vmatprep.subr.bf16.mxu0 0
        %805 = vmatpush1.bf16.msra.mxu0 0
        %806 = vmatprep.subr.bf16.mxu0 0
        %807 = vmatpush1.bf16.msra.mxu0 0
        %808 = vmatprep.subr.bf16.mxu0 0
        %809 = vmatpush1.bf16.msra.mxu0 0
        %810 = vmatprep.mubr.bf16.mxu0 0
        %811 = vmatmul.mubr.bf16.gmra.mrb[0].mxu0 %v776
        %v812 = vpop.f32.mrb[0].mxu0
        %v813 = vadd.f32 %v760, %v812
        %v814 = vpop.f32.mrb[0].mxu0
        %v815 = vpop.f32.mrb[0].mxu0
        %v816 = vpop.f32.mrb[0].mxu0
        %817 = vdwg.mxu0
        %v818 = vmul.f32 %v813, 0.35355338
        %v819 = vpack.c.bf16 %v818, %v818
        %v820 = vld [vmem:[#allocation9] sm:$0xf]
        %v821 = vld [vmem:[#allocation9 + $0x4] sm:$0xf]
        %v822 = vld [vmem:[#allocation9 + $0x8] sm:$0xf]
        %v823 = vld [vmem:[#allocation9 + $0xc] sm:$0xf]
        %v824 = vld [vmem:[#allocation11] sm:$0x1]
        %v826 = vlaneseq
        %v827 = vshrl.u32 %v826, 7
        %v828 = vsub.s32 0, %v827
        %v829 = vrot.slane %v824, %v828
        %v835 = vunpack.c.l.b16 %v820
        %v836 = vunpack.c.l.b16 %v821
        %v837 = vunpack.c.l.b16 %v822
        %v838 = vunpack.c.l.b16 %v823
        %v839 = vpack.c.b16 %v836, %v835
        %v840 = vpack.c.b16 %v838, %v837
        %v844 = vsel %vm774, %v750, 0
        %846 = vmatprep.subr.bf16.mxu0 0
        %847 = vmatpush1.bf16.msra.mxu0 %v839
        %848 = vmatprep.subr.bf16.mxu0 0
        %849 = vmatpush1.bf16.msra.mxu0 %v840
        %850 = vmatprep.subr.bf16.mxu0 0
        %851 = vmatpush1.bf16.msra.mxu0 0
        %852 = vmatprep.subr.bf16.mxu0 0
        %853 = vmatpush1.bf16.msra.mxu0 0
        %854 = vmatprep.subr.bf16.mxu0 0
        %855 = vmatpush1.bf16.msra.mxu0 0
        %856 = vmatprep.subr.bf16.mxu0 0
        %857 = vmatpush1.bf16.msra.mxu0 0
        %858 = vmatprep.subr.bf16.mxu0 0
        %859 = vmatpush1.bf16.msra.mxu0 0
        %860 = vmatprep.subr.bf16.mxu0 0
        %861 = vmatpush1.bf16.msra.mxu0 0
        %862 = vmatprep.subr.bf16.mxu0 0
        %863 = vmatpush1.bf16.msra.mxu0 0
        %864 = vmatprep.subr.bf16.mxu0 0
        %865 = vmatpush1.bf16.msra.mxu0 0
        %866 = vmatprep.subr.bf16.mxu0 0
        %867 = vmatpush1.bf16.msra.mxu0 0
        %868 = vmatprep.subr.bf16.mxu0 0
        %869 = vmatpush1.bf16.msra.mxu0 0
        %870 = vmatprep.subr.bf16.mxu0 0
        %871 = vmatpush1.bf16.msra.mxu0 0
        %872 = vmatprep.subr.bf16.mxu0 0
        %873 = vmatpush1.bf16.msra.mxu0 0
        %874 = vmatprep.subr.bf16.mxu0 0
        %875 = vmatpush1.bf16.msra.mxu0 0
        %876 = vmatprep.subr.bf16.mxu0 0
        %877 = vmatpush1.bf16.msra.mxu0 0
        %878 = vmatprep.mubr.bf16.mxu0 0
        %879 = vmatmul.mubr.bf16.gmra.mrb[0].mxu0 %v844
        %v880 = vpop.f32.mrb[0].mxu0
        %v881 = vadd.f32 %v829, %v880
        %v882 = vpop.f32.mrb[0].mxu0
        %v883 = vpop.f32.mrb[0].mxu0
        %v884 = vpop.f32.mrb[0].mxu0
        %885 = vdwg.mxu0
        %v886 = vpack.c.bf16 %v881, %v881
        %v887 = vld [vmem:[%s6] sm:$0xf]
        %v888 = vld [vmem:[%s6 + $0x4] sm:$0xf]
        %v889 = vld [vmem:[%s6 + $0x8] sm:$0xf]
        %v890 = vld [vmem:[%s6 + $0xc] sm:$0xf]
        %v891 = vld [vmem:[#allocation12] sm:$0x1]
        %v893 = vlaneseq
        %v894 = vshrl.u32 %v893, 7
        %v895 = vsub.s32 0, %v894
        %v896 = vrot.slane %v891, %v895
        %v902 = vunpack.c.l.b16 %v887
        %v903 = vunpack.c.l.b16 %v888
        %v904 = vunpack.c.l.b16 %v889
        %v905 = vunpack.c.l.b16 %v890
        %v906 = vpack.c.b16 %v903, %v902
        %v907 = vpack.c.b16 %v905, %v904
        %910 = vmatprep.subr.bf16.mxu0 0
        %911 = vmatpush1.bf16.msra.mxu0 %v906
        %912 = vmatprep.subr.bf16.mxu0 0
        %913 = vmatpush1.bf16.msra.mxu0 %v907
        %914 = vmatprep.subr.bf16.mxu0 0
        %915 = vmatpush1.bf16.msra.mxu0 0
        %916 = vmatprep.subr.bf16.mxu0 0
        %917 = vmatpush1.bf16.msra.mxu0 0
        %918 = vmatprep.subr.bf16.mxu0 0
        %919 = vmatpush1.bf16.msra.mxu0 0
        %920 = vmatprep.subr.bf16.mxu0 0
        %921 = vmatpush1.bf16.msra.mxu0 0
        %922 = vmatprep.subr.bf16.mxu0 0
        %923 = vmatpush1.bf16.msra.mxu0 0
        %924 = vmatprep.subr.bf16.mxu0 0
        %925 = vmatpush1.bf16.msra.mxu0 0
        %926 = vmatprep.subr.bf16.mxu0 0
        %927 = vmatpush1.bf16.msra.mxu0 0
        %928 = vmatprep.subr.bf16.mxu0 0
        %929 = vmatpush1.bf16.msra.mxu0 0
        %930 = vmatprep.subr.bf16.mxu0 0
        %931 = vmatpush1.bf16.msra.mxu0 0
        %932 = vmatprep.subr.bf16.mxu0 0
        %933 = vmatpush1.bf16.msra.mxu0 0
        %934 = vmatprep.subr.bf16.mxu0 0
        %935 = vmatpush1.bf16.msra.mxu0 0
        %936 = vmatprep.subr.bf16.mxu0 0
        %937 = vmatpush1.bf16.msra.mxu0 0
        %938 = vmatprep.subr.bf16.mxu0 0
        %939 = vmatpush1.bf16.msra.mxu0 0
        %940 = vmatprep.subr.bf16.mxu0 0
        %941 = vmatpush1.bf16.msra.mxu0 0
        %942 = vmatprep.mubr.bf16.mxu0 0
        %943 = vmatmul.mubr.bf16.gmra.mrb[0].mxu0 %v844
        %v944 = vpop.f32.mrb[0].mxu0
        %v945 = vadd.f32 %v896, %v944
        %v946 = vpop.f32.mrb[0].mxu0
        %v947 = vpop.f32.mrb[0].mxu0
        %v948 = vpop.f32.mrb[0].mxu0
        %949 = vdwg.mxu0
        %v950 = vpack.c.bf16 %v945, %v945
        %v951 = vld [vmem:[#allocation14] sm:$0xf]
        %v952 = vld [vmem:[#allocation14 + $0x4] sm:$0xf]
        %v953 = vld [vmem:[#allocation14 + $0x8] sm:$0xf]
        %v954 = vld [vmem:[#allocation14 + $0xc] sm:$0xf]
        %955 = vst.msk [vmem:[#allocation2] sm:$0xff] %vm774, 0.0
        %vm956 = vcmask 64512
        %v958 = vsel %vm956, %v819, 0
        %v961 = vsel %vm956, %v886, 0
        %963 = vmatprep.subr.bf16.mxu0 0
        %964 = vmatpush1.bf16.xpose.msra.mxu0 %v961
        %965 = vmatprep.subr.bf16.mxu0 0
        %966 = vmatpush1.bf16.xpose.msra.mxu0 0
        %967 = vmatprep.subr.bf16.mxu0 0
        %968 = vmatpush1.bf16.xpose.msra.mxu0 0
        %969 = vmatprep.subr.bf16.mxu0 0
        %970 = vmatpush1.bf16.xpose.msra.mxu0 0
        %971 = vmatprep.subr.bf16.mxu0 0
        %972 = vmatpush1.bf16.xpose.msra.mxu0 0
        %973 = vmatprep.subr.bf16.mxu0 0
        %974 = vmatpush1.bf16.xpose.msra.mxu0 0
        %975 = vmatprep.subr.bf16.mxu0 0
        %976 = vmatpush1.bf16.xpose.msra.mxu0 0
        %977 = vmatprep.subr.bf16.mxu0 0
        %978 = vmatpush1.bf16.xpose.msra.mxu0 0
        %979 = vmatprep.subr.bf16.mxu0 0
        %980 = vmatpush1.bf16.xpose.msra.mxu0 0
        %981 = vmatprep.subr.bf16.mxu0 0
        %982 = vmatpush1.bf16.xpose.msra.mxu0 0
        %983 = vmatprep.subr.bf16.mxu0 0
        %984 = vmatpush1.bf16.xpose.msra.mxu0 0
        %985 = vmatprep.subr.bf16.mxu0 0
        %986 = vmatpush1.bf16.xpose.msra.mxu0 0
        %987 = vmatprep.subr.bf16.mxu0 0
        %988 = vmatpush1.bf16.xpose.msra.mxu0 0
        %989 = vmatprep.subr.bf16.mxu0 0
        %990 = vmatpush1.bf16.xpose.msra.mxu0 0
        %991 = vmatprep.subr.bf16.mxu0 0
        %992 = vmatpush1.bf16.xpose.msra.mxu0 0
        %993 = vmatprep.subr.bf16.mxu0 0
        %994 = vmatpush1.bf16.xpose.msra.mxu0 0
        %995 = vmatprep.mubr.bf16.mxu0 0
        %996 = vmatmul.mubr.bf16.gmra.mrb[0].mxu0 %v958
        %v997 = vpop.f32.mrb[0].mxu0
        %v998 = vadd.f32 0.0, %v997
        %v999 = vpop.f32.mrb[0].mxu0
        %v1000 = vpop.f32.mrb[0].mxu0
        %v1001 = vpop.f32.mrb[0].mxu0
        %1002 = vdwg.mxu0
        %v1003 = vsel %vm956, %v998, -inf
        %1004 = vmax.xlane.f32.xlu0 %v1003
        %v1005 = vpop.xlane.xlu0 %1004
        %v1006 = vsub.f32 %v998, %v1005
        %v1007 = vmul.f32 %v1006, 1.442695
        %v1008 = vpow.pop %v1007
        %v1009 = vsel %vm956, %v1008, 0.0
        %1010 = vadd.xlane.f32.xlu0 %v1009
        %v1011 = vpop.xlane.xlu0 %1010
        %v1012 = vrcp.pop %v1011
        %v1013 = vmul.f32 %v1008, %v1012
        %v1014 = vpack.c.bf16 %v1013, %v1013
        %v1016 = vsel %vm956, %v1014, 0
        %vm1018 = vcmask 1043456
        %v1020 = vsel %vm1018, %v950, 0
        %1022 = vmatprep.subr.bf16.mxu0 0
        %1023 = vmatpush1.bf16.msra.mxu0 %v1020
        %1024 = vmatprep.subr.bf16.mxu0 0
        %1025 = vmatpush1.bf16.msra.mxu0 0
        %1026 = vmatprep.subr.bf16.mxu0 0
        %1027 = vmatpush1.bf16.msra.mxu0 0
        %1028 = vmatprep.subr.bf16.mxu0 0
        %1029 = vmatpush1.bf16.msra.mxu0 0
        %1030 = vmatprep.subr.bf16.mxu0 0
        %1031 = vmatpush1.bf16.msra.mxu0 0
        %1032 = vmatprep.subr.bf16.mxu0 0
        %1033 = vmatpush1.bf16.msra.mxu0 0
        %1034 = vmatprep.subr.bf16.mxu0 0
        %1035 = vmatpush1.bf16.msra.mxu0 0
        %1036 = vmatprep.subr.bf16.mxu0 0
        %1037 = vmatpush1.bf16.msra.mxu0 0
        %1038 = vmatprep.subr.bf16.mxu0 0
        %1039 = vmatpush1.bf16.msra.mxu0 0
        %1040 = vmatprep.subr.bf16.mxu0 0
        %1041 = vmatpush1.bf16.msra.mxu0 0
        %1042 = vmatprep.subr.bf16.mxu0 0
        %1043 = vmatpush1.bf16.msra.mxu0 0
        %1044 = vmatprep.subr.bf16.mxu0 0
        %1045 = vmatpush1.bf16.msra.mxu0 0
        %1046 = vmatprep.subr.bf16.mxu0 0
        %1047 = vmatpush1.bf16.msra.mxu0 0
        %1048 = vmatprep.subr.bf16.mxu0 0
        %1049 = vmatpush1.bf16.msra.mxu0 0
        %1050 = vmatprep.subr.bf16.mxu0 0
        %1051 = vmatpush1.bf16.msra.mxu0 0
        %1052 = vmatprep.subr.bf16.mxu0 0
        %1053 = vmatpush1.bf16.msra.mxu0 0
        %1054 = vmatprep.mubr.bf16.mxu0 0
        %1055 = vmatmul.mubr.bf16.gmra.mrb[0].mxu0 %v1016
        %v1056 = vpop.f32.mrb[0].mxu0
        %v1057 = vadd.f32 0.0, %v1056
        %v1058 = vpop.f32.mrb[0].mxu0
        %v1059 = vpop.f32.mrb[0].mxu0
        %v1060 = vpop.f32.mrb[0].mxu0
        %1061 = vdwg.mxu0
        %v1062 = vld [vmem:[#allocation2] sm:$0xff]
        %v1063 = vpack.c.bf16 %v1057, %v1057
        %v1065 = vsel %vm956, %v1063, 0
        %v1068 = vsel %vm1018, %v951, 0
        %1070 = vmatprep.subr.bf16.mxu0 0
        %1071 = vmatpush1.bf16.msra.mxu0 %v1068
        %1072 = vmatprep.subr.bf16.mxu0 0
        %1073 = vmatpush1.bf16.msra.mxu0 0
        %1074 = vmatprep.subr.bf16.mxu0 0
        %1075 = vmatpush1.bf16.msra.mxu0 0
        %1076 = vmatprep.subr.bf16.mxu0 0
        %1077 = vmatpush1.bf16.msra.mxu0 0
        %1078 = vmatprep.subr.bf16.mxu0 0
        %1079 = vmatpush1.bf16.msra.mxu0 0
        %1080 = vmatprep.subr.bf16.mxu0 0
        %1081 = vmatpush1.bf16.msra.mxu0 0
        %1082 = vmatprep.subr.bf16.mxu0 0
        %1083 = vmatpush1.bf16.msra.mxu0 0
        %1084 = vmatprep.subr.bf16.mxu0 0
        %1085 = vmatpush1.bf16.msra.mxu0 0
        %1086 = vmatprep.subr.bf16.mxu0 0
        %1087 = vmatpush1.bf16.msra.mxu0 0
        %1088 = vmatprep.subr.bf16.mxu0 0
        %1089 = vmatpush1.bf16.msra.mxu0 0
        %1090 = vmatprep.subr.bf16.mxu0 0
        %1091 = vmatpush1.bf16.msra.mxu0 0
        %1092 = vmatprep.subr.bf16.mxu0 0
        %1093 = vmatpush1.bf16.msra.mxu0 0
        %1094 = vmatprep.subr.bf16.mxu0 0
        %1095 = vmatpush1.bf16.msra.mxu0 0
        %1096 = vmatprep.subr.bf16.mxu0 0
        %1097 = vmatpush1.bf16.msra.mxu0 0
        %1098 = vmatprep.subr.bf16.mxu0 0
        %1099 = vmatpush1.bf16.msra.mxu0 0
        %1100 = vmatprep.subr.bf16.mxu0 0
        %1101 = vmatpush1.bf16.msra.mxu0 0
        %1102 = vmatprep.mubr.bf16.mxu0 0
        %1103 = vmatmul.mubr.bf16.gmra.mrb[0].mxu0 %v1065
        %v1104 = vpop.f32.mrb[0].mxu0
        %v1105 = vadd.f32 0.0, %v1104
        %v1106 = vpop.f32.mrb[0].mxu0
        %v1107 = vpop.f32.mrb[0].mxu0
        %v1108 = vpop.f32.mrb[0].mxu0
        %1109 = vdwg.mxu0
        %v1110 = vadd.f32 %v1062, %v1105
        %1111 = vst.msk [vmem:[#allocation2] sm:$0xff] %vm774, %v1110
        %1113 = vrot.lane.b32.xlu0 %v819, 120
        %v1114 = vpop.permute.xlu0 %1113
        %1116 = vrot.lane.b32.xlu0 %v886, 120
        %v1117 = vpop.permute.xlu0 %1116
        %v1119 = vsel %vm956, %v1114, 0
        %v1122 = vsel %vm956, %v1117, 0
        %1124 = vmatprep.subr.bf16.mxu0 0
        %1125 = vmatpush1.bf16.xpose.msra.mxu0 %v1122
        %1126 = vmatprep.subr.bf16.mxu0 0
        %1127 = vmatpush1.bf16.xpose.msra.mxu0 0
        %1128 = vmatprep.subr.bf16.mxu0 0
        %1129 = vmatpush1.bf16.xpose.msra.mxu0 0
        %1130 = vmatprep.subr.bf16.mxu0 0
        %1131 = vmatpush1.bf16.xpose.msra.mxu0 0
        %1132 = vmatprep.subr.bf16.mxu0 0
        %1133 = vmatpush1.bf16.xpose.msra.mxu0 0
        %1134 = vmatprep.subr.bf16.mxu0 0
        %1135 = vmatpush1.bf16.xpose.msra.mxu0 0
        %1136 = vmatprep.subr.bf16.mxu0 0
        %1137 = vmatpush1.bf16.xpose.msra.mxu0 0
        %1138 = vmatprep.subr.bf16.mxu0 0
        %1139 = vmatpush1.bf16.xpose.msra.mxu0 0
        %1140 = vmatprep.subr.bf16.mxu0 0
        %1141 = vmatpush1.bf16.xpose.msra.mxu0 0
        %1142 = vmatprep.subr.bf16.mxu0 0
        %1143 = vmatpush1.bf16.xpose.msra.mxu0 0
        %1144 = vmatprep.subr.bf16.mxu0 0
        %1145 = vmatpush1.bf16.xpose.msra.mxu0 0
        %1146 = vmatprep.subr.bf16.mxu0 0
        %1147 = vmatpush1.bf16.xpose.msra.mxu0 0
        %1148 = vmatprep.subr.bf16.mxu0 0
        %1149 = vmatpush1.bf16.xpose.msra.mxu0 0
        %1150 = vmatprep.subr.bf16.mxu0 0
        %1151 = vmatpush1.bf16.xpose.msra.mxu0 0
        %1152 = vmatprep.subr.bf16.mxu0 0
        %1153 = vmatpush1.bf16.xpose.msra.mxu0 0
        %1154 = vmatprep.subr.bf16.mxu0 0
        %1155 = vmatpush1.bf16.xpose.msra.mxu0 0
        %1156 = vmatprep.mubr.bf16.mxu0 0
        %1157 = vmatmul.mubr.bf16.gmra.mrb[0].mxu0 %v1119
        %v1158 = vpop.f32.mrb[0].mxu0
        %v1159 = vadd.f32 0.0, %v1158
        %v1160 = vpop.f32.mrb[0].mxu0
        %v1161 = vpop.f32.mrb[0].mxu0
        %v1162 = vpop.f32.mrb[0].mxu0
        %1163 = vdwg.mxu0
        %v1164 = vsel %vm956, %v1159, -inf
        %1165 = vmax.xlane.f32.xlu0 %v1164
        %v1166 = vpop.xlane.xlu0 %1165
        %v1167 = vsub.f32 %v1159, %v1166
        %v1168 = vmul.f32 %v1167, 1.442695
        %v1169 = vpow.pop %v1168
        %v1170 = vsel %vm956, %v1169, 0.0
        %1171 = vadd.xlane.f32.xlu0 %v1170
        %v1172 = vpop.xlane.xlu0 %1171
        %v1173 = vrcp.pop %v1172
        %v1174 = vmul.f32 %v1169, %v1173
        %v1175 = vpack.c.bf16 %v1174, %v1174
        %1177 = vrot.lane.b32.xlu0 %v950, 120
        %v1178 = vpop.permute.xlu0 %1177
        %v1180 = vsel %vm956, %v1175, 0
        %v1183 = vsel %vm1018, %v1178, 0
        %1185 = vmatprep.subr.bf16.mxu0 0
        %1186 = vmatpush1.bf16.msra.mxu0 %v1183
        %1187 = vmatprep.subr.bf16.mxu0 0
        %1188 = vmatpush1.bf16.msra.mxu0 0
        %1189 = vmatprep.subr.bf16.mxu0 0
        %1190 = vmatpush1.bf16.msra.mxu0 0
        %1191 = vmatprep.subr.bf16.mxu0 0
        %1192 = vmatpush1.bf16.msra.mxu0 0
        %1193 = vmatprep.subr.bf16.mxu0 0
        %1194 = vmatpush1.bf16.msra.mxu0 0
        %1195 = vmatprep.subr.bf16.mxu0 0
        %1196 = vmatpush1.bf16.msra.mxu0 0
        %1197 = vmatprep.subr.bf16.mxu0 0
        %1198 = vmatpush1.bf16.msra.mxu0 0
        %1199 = vmatprep.subr.bf16.mxu0 0
        %1200 = vmatpush1.bf16.msra.mxu0 0
        %1201 = vmatprep.subr.bf16.mxu0 0
        %1202 = vmatpush1.bf16.msra.mxu0 0
        %1203 = vmatprep.subr.bf16.mxu0 0
        %1204 = vmatpush1.bf16.msra.mxu0 0
        %1205 = vmatprep.subr.bf16.mxu0 0
        %1206 = vmatpush1.bf16.msra.mxu0 0
        %1207 = vmatprep.subr.bf16.mxu0 0
        %1208 = vmatpush1.bf16.msra.mxu0 0
        %1209 = vmatprep.subr.bf16.mxu0 0
        %1210 = vmatpush1.bf16.msra.mxu0 0
        %1211 = vmatprep.subr.bf16.mxu0 0
        %1212 = vmatpush1.bf16.msra.mxu0 0
        %1213 = vmatprep.subr.bf16.mxu0 0
        %1214 = vmatpush1.bf16.msra.mxu0 0
        %1215 = vmatprep.subr.bf16.mxu0 0
        %1216 = vmatpush1.bf16.msra.mxu0 0
        %1217 = vmatprep.mubr.bf16.mxu0 0
        %1218 = vmatmul.mubr.bf16.gmra.mrb[0].mxu0 %v1180
        %v1219 = vpop.f32.mrb[0].mxu0
        %v1220 = vadd.f32 0.0, %v1219
        %v1221 = vpop.f32.mrb[0].mxu0
        %v1222 = vpop.f32.mrb[0].mxu0
        %v1223 = vpop.f32.mrb[0].mxu0
        %1224 = vdwg.mxu0
        %v1225 = vld [vmem:[#allocation2] sm:$0xff]
        %v1226 = vpack.c.bf16 %v1220, %v1220
        %v1228 = vsel %vm956, %v1226, 0
        %v1231 = vsel %vm1018, %v952, 0
        %1233 = vmatprep.subr.bf16.mxu0 0
        %1234 = vmatpush1.bf16.msra.mxu0 %v1231
        %1235 = vmatprep.subr.bf16.mxu0 0
        %1236 = vmatpush1.bf16.msra.mxu0 0
        %1237 = vmatprep.subr.bf16.mxu0 0
        %1238 = vmatpush1.bf16.msra.mxu0 0
        %1239 = vmatprep.subr.bf16.mxu0 0
        %1240 = vmatpush1.bf16.msra.mxu0 0
        %1241 = vmatprep.subr.bf16.mxu0 0
        %1242 = vmatpush1.bf16.msra.mxu0 0
        %1243 = vmatprep.subr.bf16.mxu0 0
        %1244 = vmatpush1.bf16.msra.mxu0 0
        %1245 = vmatprep.subr.bf16.mxu0 0
        %1246 = vmatpush1.bf16.msra.mxu0 0
        %1247 = vmatprep.subr.bf16.mxu0 0
        %1248 = vmatpush1.bf16.msra.mxu0 0
        %1249 = vmatprep.subr.bf16.mxu0 0
        %1250 = vmatpush1.bf16.msra.mxu0 0
        %1251 = vmatprep.subr.bf16.mxu0 0
        %1252 = vmatpush1.bf16.msra.mxu0 0
        %1253 = vmatprep.subr.bf16.mxu0 0
        %1254 = vmatpush1.bf16.msra.mxu0 0
        %1255 = vmatprep.subr.bf16.mxu0 0
        %1256 = vmatpush1.bf16.msra.mxu0 0
        %1257 = vmatprep.subr.bf16.mxu0 0
        %1258 = vmatpush1.bf16.msra.mxu0 0
        %1259 = vmatprep.subr.bf16.mxu0 0
        %1260 = vmatpush1.bf16.msra.mxu0 0
        %1261 = vmatprep.subr.bf16.mxu0 0
        %1262 = vmatpush1.bf16.msra.mxu0 0
        %1263 = vmatprep.subr.bf16.mxu0 0
        %1264 = vmatpush1.bf16.msra.mxu0 0
        %1265 = vmatprep.mubr.bf16.mxu0 0
        %1266 = vmatmul.mubr.bf16.gmra.mrb[0].mxu0 %v1228
        %v1267 = vpop.f32.mrb[0].mxu0
        %v1268 = vadd.f32 0.0, %v1267
        %v1269 = vpop.f32.mrb[0].mxu0
        %v1270 = vpop.f32.mrb[0].mxu0
        %v1271 = vpop.f32.mrb[0].mxu0
        %1272 = vdwg.mxu0
        %v1273 = vadd.f32 %v1225, %v1268
        %1274 = vst.msk [vmem:[#allocation2] sm:$0xff] %vm774, %v1273
        %1275 = vrot.lane.b32.xlu0 %v819, 112
        %v1276 = vpop.permute.xlu0 %1275
        %1277 = vrot.lane.b32.xlu0 %v886, 112
        %v1278 = vpop.permute.xlu0 %1277
        %v1280 = vsel %vm956, %v1276, 0
        %v1283 = vsel %vm956, %v1278, 0
        %1285 = vmatprep.subr.bf16.mxu0 0
        %1286 = vmatpush1.bf16.xpose.msra.mxu0 %v1283
        %1287 = vmatprep.subr.bf16.mxu0 0
        %1288 = vmatpush1.bf16.xpose.msra.mxu0 0
        %1289 = vmatprep.subr.bf16.mxu0 0
        %1290 = vmatpush1.bf16.xpose.msra.mxu0 0
        %1291 = vmatprep.subr.bf16.mxu0 0
        %1292 = vmatpush1.bf16.xpose.msra.mxu0 0
        %1293 = vmatprep.subr.bf16.mxu0 0
        %1294 = vmatpush1.bf16.xpose.msra.mxu0 0
        %1295 = vmatprep.subr.bf16.mxu0 0
        %1296 = vmatpush1.bf16.xpose.msra.mxu0 0
        %1297 = vmatprep.subr.bf16.mxu0 0
        %1298 = vmatpush1.bf16.xpose.msra.mxu0 0
        %1299 = vmatprep.subr.bf16.mxu0 0
        %1300 = vmatpush1.bf16.xpose.msra.mxu0 0
        %1301 = vmatprep.subr.bf16.mxu0 0
        %1302 = vmatpush1.bf16.xpose.msra.mxu0 0
        %1303 = vmatprep.subr.bf16.mxu0 0
        %1304 = vmatpush1.bf16.xpose.msra.mxu0 0
        %1305 = vmatprep.subr.bf16.mxu0 0
        %1306 = vmatpush1.bf16.xpose.msra.mxu0 0
        %1307 = vmatprep.subr.bf16.mxu0 0
        %1308 = vmatpush1.bf16.xpose.msra.mxu0 0
        %1309 = vmatprep.subr.bf16.mxu0 0
        %1310 = vmatpush1.bf16.xpose.msra.mxu0 0
        %1311 = vmatprep.subr.bf16.mxu0 0
        %1312 = vmatpush1.bf16.xpose.msra.mxu0 0
        %1313 = vmatprep.subr.bf16.mxu0 0
        %1314 = vmatpush1.bf16.xpose.msra.mxu0 0
        %1315 = vmatprep.subr.bf16.mxu0 0
        %1316 = vmatpush1.bf16.xpose.msra.mxu0 0
        %1317 = vmatprep.mubr.bf16.mxu0 0
        %1318 = vmatmul.mubr.bf16.gmra.mrb[0].mxu0 %v1280
        %v1319 = vpop.f32.mrb[0].mxu0
        %v1320 = vadd.f32 0.0, %v1319
        %v1321 = vpop.f32.mrb[0].mxu0
        %v1322 = vpop.f32.mrb[0].mxu0
        %v1323 = vpop.f32.mrb[0].mxu0
        %1324 = vdwg.mxu0
        %v1325 = vsel %vm956, %v1320, -inf
        %1326 = vmax.xlane.f32.xlu0 %v1325
        %v1327 = vpop.xlane.xlu0 %1326
        %v1328 = vsub.f32 %v1320, %v1327
        %v1329 = vmul.f32 %v1328, 1.442695
        %v1330 = vpow.pop %v1329
        %v1331 = vsel %vm956, %v1330, 0.0
        %1332 = vadd.xlane.f32.xlu0 %v1331
        %v1333 = vpop.xlane.xlu0 %1332
        %v1334 = vrcp.pop %v1333
        %v1335 = vmul.f32 %v1330, %v1334
        %v1336 = vpack.c.bf16 %v1335, %v1335
        %1337 = vrot.lane.b32.xlu0 %v950, 112
        %v1338 = vpop.permute.xlu0 %1337
        %v1340 = vsel %vm956, %v1336, 0
        %v1343 = vsel %vm1018, %v1338, 0
        %1345 = vmatprep.subr.bf16.mxu0 0
        %1346 = vmatpush1.bf16.msra.mxu0 %v1343
        %1347 = vmatprep.subr.bf16.mxu0 0
        %1348 = vmatpush1.bf16.msra.mxu0 0
        %1349 = vmatprep.subr.bf16.mxu0 0
        %1350 = vmatpush1.bf16.msra.mxu0 0
        %1351 = vmatprep.subr.bf16.mxu0 0
        %1352 = vmatpush1.bf16.msra.mxu0 0
        %1353 = vmatprep.subr.bf16.mxu0 0
        %1354 = vmatpush1.bf16.msra.mxu0 0
        %1355 = vmatprep.subr.bf16.mxu0 0
        %1356 = vmatpush1.bf16.msra.mxu0 0
        %1357 = vmatprep.subr.bf16.mxu0 0
        %1358 = vmatpush1.bf16.msra.mxu0 0
        %1359 = vmatprep.subr.bf16.mxu0 0
        %1360 = vmatpush1.bf16.msra.mxu0 0
        %1361 = vmatprep.subr.bf16.mxu0 0
        %1362 = vmatpush1.bf16.msra.mxu0 0
        %1363 = vmatprep.subr.bf16.mxu0 0
        %1364 = vmatpush1.bf16.msra.mxu0 0
        %1365 = vmatprep.subr.bf16.mxu0 0
        %1366 = vmatpush1.bf16.msra.mxu0 0
        %1367 = vmatprep.subr.bf16.mxu0 0
        %1368 = vmatpush1.bf16.msra.mxu0 0
        %1369 = vmatprep.subr.bf16.mxu0 0
        %1370 = vmatpush1.bf16.msra.mxu0 0
        %1371 = vmatprep.subr.bf16.mxu0 0
        %1372 = vmatpush1.bf16.msra.mxu0 0
        %1373 = vmatprep.subr.bf16.mxu0 0
        %1374 = vmatpush1.bf16.msra.mxu0 0
        %1375 = vmatprep.subr.bf16.mxu0 0
        %1376 = vmatpush1.bf16.msra.mxu0 0
        %1377 = vmatprep.mubr.bf16.mxu0 0
        %1378 = vmatmul.mubr.bf16.gmra.mrb[0].mxu0 %v1340
        %v1379 = vpop.f32.mrb[0].mxu0
        %v1380 = vadd.f32 0.0, %v1379
        %v1381 = vpop.f32.mrb[0].mxu0
        %v1382 = vpop.f32.mrb[0].mxu0
        %v1383 = vpop.f32.mrb[0].mxu0
        %1384 = vdwg.mxu0
        %v1385 = vld [vmem:[#allocation2] sm:$0xff]
        %v1386 = vpack.c.bf16 %v1380, %v1380
        %v1388 = vsel %vm956, %v1386, 0
        %v1391 = vsel %vm1018, %v953, 0
        %1393 = vmatprep.subr.bf16.mxu0 0
        %1394 = vmatpush1.bf16.msra.mxu0 %v1391
        %1395 = vmatprep.subr.bf16.mxu0 0
        %1396 = vmatpush1.bf16.msra.mxu0 0
        %1397 = vmatprep.subr.bf16.mxu0 0
        %1398 = vmatpush1.bf16.msra.mxu0 0
        %1399 = vmatprep.subr.bf16.mxu0 0
        %1400 = vmatpush1.bf16.msra.mxu0 0
        %1401 = vmatprep.subr.bf16.mxu0 0
        %1402 = vmatpush1.bf16.msra.mxu0 0
        %1403 = vmatprep.subr.bf16.mxu0 0
        %1404 = vmatpush1.bf16.msra.mxu0 0
        %1405 = vmatprep.subr.bf16.mxu0 0
        %1406 = vmatpush1.bf16.msra.mxu0 0
        %1407 = vmatprep.subr.bf16.mxu0 0
        %1408 = vmatpush1.bf16.msra.mxu0 0
        %1409 = vmatprep.subr.bf16.mxu0 0
        %1410 = vmatpush1.bf16.msra.mxu0 0
        %1411 = vmatprep.subr.bf16.mxu0 0
        %1412 = vmatpush1.bf16.msra.mxu0 0
        %1413 = vmatprep.subr.bf16.mxu0 0
        %1414 = vmatpush1.bf16.msra.mxu0 0
        %1415 = vmatprep.subr.bf16.mxu0 0
        %1416 = vmatpush1.bf16.msra.mxu0 0
        %1417 = vmatprep.subr.bf16.mxu0 0
        %1418 = vmatpush1.bf16.msra.mxu0 0
        %1419 = vmatprep.subr.bf16.mxu0 0
        %1420 = vmatpush1.bf16.msra.mxu0 0
        %1421 = vmatprep.subr.bf16.mxu0 0
        %1422 = vmatpush1.bf16.msra.mxu0 0
        %1423 = vmatprep.subr.bf16.mxu0 0
        %1424 = vmatpush1.bf16.msra.mxu0 0
        %1425 = vmatprep.mubr.bf16.mxu0 0
        %1426 = vmatmul.mubr.bf16.gmra.mrb[0].mxu0 %v1388
        %v1427 = vpop.f32.mrb[0].mxu0
        %v1428 = vadd.f32 0.0, %v1427
        %v1429 = vpop.f32.mrb[0].mxu0
        %v1430 = vpop.f32.mrb[0].mxu0
        %v1431 = vpop.f32.mrb[0].mxu0
        %1432 = vdwg.mxu0
        %v1433 = vadd.f32 %v1385, %v1428
        %1434 = vst.msk [vmem:[#allocation2] sm:$0xff] %vm774, %v1433
        %1435 = vrot.lane.b32.xlu0 %v819, 104
        %v1436 = vpop.permute.xlu0 %1435
        %1437 = vrot.lane.b32.xlu0 %v886, 104
        %v1438 = vpop.permute.xlu0 %1437
        %v1440 = vsel %vm956, %v1436, 0
        %v1443 = vsel %vm956, %v1438, 0
        %1445 = vmatprep.subr.bf16.mxu0 0
        %1446 = vmatpush1.bf16.xpose.msra.mxu0 %v1443
        %1447 = vmatprep.subr.bf16.mxu0 0
        %1448 = vmatpush1.bf16.xpose.msra.mxu0 0
        %1449 = vmatprep.subr.bf16.mxu0 0
        %1450 = vmatpush1.bf16.xpose.msra.mxu0 0
        %1451 = vmatprep.subr.bf16.mxu0 0
        %1452 = vmatpush1.bf16.xpose.msra.mxu0 0
        %1453 = vmatprep.subr.bf16.mxu0 0
        %1454 = vmatpush1.bf16.xpose.msra.mxu0 0
        %1455 = vmatprep.subr.bf16.mxu0 0
        %1456 = vmatpush1.bf16.xpose.msra.mxu0 0
        %1457 = vmatprep.subr.bf16.mxu0 0
        %1458 = vmatpush1.bf16.xpose.msra.mxu0 0
        %1459 = vmatprep.subr.bf16.mxu0 0
        %1460 = vmatpush1.bf16.xpose.msra.mxu0 0
        %1461 = vmatprep.subr.bf16.mxu0 0
        %1462 = vmatpush1.bf16.xpose.msra.mxu0 0
        %1463 = vmatprep.subr.bf16.mxu0 0
        %1464 = vmatpush1.bf16.xpose.msra.mxu0 0
        %1465 = vmatprep.subr.bf16.mxu0 0
        %1466 = vmatpush1.bf16.xpose.msra.mxu0 0
        %1467 = vmatprep.subr.bf16.mxu0 0
        %1468 = vmatpush1.bf16.xpose.msra.mxu0 0
        %1469 = vmatprep.subr.bf16.mxu0 0
        %1470 = vmatpush1.bf16.xpose.msra.mxu0 0
        %1471 = vmatprep.subr.bf16.mxu0 0
        %1472 = vmatpush1.bf16.xpose.msra.mxu0 0
        %1473 = vmatprep.subr.bf16.mxu0 0
        %1474 = vmatpush1.bf16.xpose.msra.mxu0 0
        %1475 = vmatprep.subr.bf16.mxu0 0
        %1476 = vmatpush1.bf16.xpose.msra.mxu0 0
        %1477 = vmatprep.mubr.bf16.mxu0 0
        %1478 = vmatmul.mubr.bf16.gmra.mrb[0].mxu0 %v1440
        %v1479 = vpop.f32.mrb[0].mxu0
        %v1480 = vadd.f32 0.0, %v1479
        %v1481 = vpop.f32.mrb[0].mxu0
        %v1482 = vpop.f32.mrb[0].mxu0
        %v1483 = vpop.f32.mrb[0].mxu0
        %1484 = vdwg.mxu0
        %v1485 = vsel %vm956, %v1480, -inf
        %1486 = vmax.xlane.f32.xlu0 %v1485
        %v1487 = vpop.xlane.xlu0 %1486
        %v1488 = vsub.f32 %v1480, %v1487
        %v1489 = vmul.f32 %v1488, 1.442695
        %v1490 = vpow.pop %v1489
        %v1491 = vsel %vm956, %v1490, 0.0
        %1492 = vadd.xlane.f32.xlu0 %v1491
        %v1493 = vpop.xlane.xlu0 %1492
        %v1494 = vrcp.pop %v1493
        %v1495 = vmul.f32 %v1490, %v1494
        %v1496 = vpack.c.bf16 %v1495, %v1495
        %1497 = vrot.lane.b32.xlu0 %v950, 104
        %v1498 = vpop.permute.xlu0 %1497
        %v1500 = vsel %vm956, %v1496, 0
        %v1503 = vsel %vm1018, %v1498, 0
        %1505 = vmatprep.subr.bf16.mxu0 0
        %1506 = vmatpush1.bf16.msra.mxu0 %v1503
        %1507 = vmatprep.subr.bf16.mxu0 0
        %1508 = vmatpush1.bf16.msra.mxu0 0
        %1509 = vmatprep.subr.bf16.mxu0 0
        %1510 = vmatpush1.bf16.msra.mxu0 0
        %1511 = vmatprep.subr.bf16.mxu0 0
        %1512 = vmatpush1.bf16.msra.mxu0 0
        %1513 = vmatprep.subr.bf16.mxu0 0
        %1514 = vmatpush1.bf16.msra.mxu0 0
        %1515 = vmatprep.subr.bf16.mxu0 0
        %1516 = vmatpush1.bf16.msra.mxu0 0
        %1517 = vmatprep.subr.bf16.mxu0 0
        %1518 = vmatpush1.bf16.msra.mxu0 0
        %1519 = vmatprep.subr.bf16.mxu0 0
        %1520 = vmatpush1.bf16.msra.mxu0 0
        %1521 = vmatprep.subr.bf16.mxu0 0
        %1522 = vmatpush1.bf16.msra.mxu0 0
        %1523 = vmatprep.subr.bf16.mxu0 0
        %1524 = vmatpush1.bf16.msra.mxu0 0
        %1525 = vmatprep.subr.bf16.mxu0 0
        %1526 = vmatpush1.bf16.msra.mxu0 0
        %1527 = vmatprep.subr.bf16.mxu0 0
        %1528 = vmatpush1.bf16.msra.mxu0 0
        %1529 = vmatprep.subr.bf16.mxu0 0
        %1530 = vmatpush1.bf16.msra.mxu0 0
        %1531 = vmatprep.subr.bf16.mxu0 0
        %1532 = vmatpush1.bf16.msra.mxu0 0
        %1533 = vmatprep.subr.bf16.mxu0 0
        %1534 = vmatpush1.bf16.msra.mxu0 0
        %1535 = vmatprep.subr.bf16.mxu0 0
        %1536 = vmatpush1.bf16.msra.mxu0 0
        %1537 = vmatprep.mubr.bf16.mxu0 0
        %1538 = vmatmul.mubr.bf16.gmra.mrb[0].mxu0 %v1500
        %v1539 = vpop.f32.mrb[0].mxu0
        %v1540 = vadd.f32 0.0, %v1539
        %v1541 = vpop.f32.mrb[0].mxu0
        %v1542 = vpop.f32.mrb[0].mxu0
        %v1543 = vpop.f32.mrb[0].mxu0
        %1544 = vdwg.mxu0
        %v1545 = vld [vmem:[#allocation2] sm:$0xff]
        %v1546 = vpack.c.bf16 %v1540, %v1540
        %v1548 = vsel %vm956, %v1546, 0
        %v1551 = vsel %vm1018, %v954, 0
        %1553 = vmatprep.subr.bf16.mxu0 0
        %1554 = vmatpush1.bf16.msra.mxu0 %v1551
        %1555 = vmatprep.subr.bf16.mxu0 0
        %1556 = vmatpush1.bf16.msra.mxu0 0
        %1557 = vmatprep.subr.bf16.mxu0 0
        %1558 = vmatpush1.bf16.msra.mxu0 0
        %1559 = vmatprep.subr.bf16.mxu0 0
        %1560 = vmatpush1.bf16.msra.mxu0 0
        %1561 = vmatprep.subr.bf16.mxu0 0
        %1562 = vmatpush1.bf16.msra.mxu0 0
        %1563 = vmatprep.subr.bf16.mxu0 0
        %1564 = vmatpush1.bf16.msra.mxu0 0
        %1565 = vmatprep.subr.bf16.mxu0 0
        %1566 = vmatpush1.bf16.msra.mxu0 0
        %1567 = vmatprep.subr.bf16.mxu0 0
        %1568 = vmatpush1.bf16.msra.mxu0 0
        %1569 = vmatprep.subr.bf16.mxu0 0
        %1570 = vmatpush1.bf16.msra.mxu0 0
        %1571 = vmatprep.subr.bf16.mxu0 0
        %1572 = vmatpush1.bf16.msra.mxu0 0
        %1573 = vmatprep.subr.bf16.mxu0 0
        %1574 = vmatpush1.bf16.msra.mxu0 0
        %1575 = vmatprep.subr.bf16.mxu0 0
        %1576 = vmatpush1.bf16.msra.mxu0 0
        %1577 = vmatprep.subr.bf16.mxu0 0
        %1578 = vmatpush1.bf16.msra.mxu0 0
        %1579 = vmatprep.subr.bf16.mxu0 0
        %1580 = vmatpush1.bf16.msra.mxu0 0
        %1581 = vmatprep.subr.bf16.mxu0 0
        %1582 = vmatpush1.bf16.msra.mxu0 0
        %1583 = vmatprep.subr.bf16.mxu0 0
        %1584 = vmatpush1.bf16.msra.mxu0 0
        %1585 = vmatprep.mubr.bf16.mxu0 0
        %1586 = vmatmul.mubr.bf16.gmra.mrb[0].mxu0 %v1548
        %v1587 = vpop.f32.mrb[0].mxu0
        %v1588 = vadd.f32 0.0, %v1587
        %v1589 = vpop.f32.mrb[0].mxu0
        %v1590 = vpop.f32.mrb[0].mxu0
        %v1591 = vpop.f32.mrb[0].mxu0
        %1592 = vdwg.mxu0
        %v1593 = vadd.f32 %v1545, %v1588
        %1594 = vst.msk [vmem:[#allocation2] sm:$0xff] %vm774, %v1593
        %v1595 = vld [vmem:[#allocation2] sm:$0xff]
        %v1596 = vld [vmem:[#allocation15] sm:$0x1]
        %v1598 = vlaneseq
        %v1599 = vshrl.u32 %v1598, 7
        %v1600 = vsub.s32 0, %v1599
        %v1601 = vrot.slane %v1596, %v1600
        %v1603 = vadd.f32 %v1595, %v1601
        %v1604 = vadd.f32 %v747, %v1603
        %v1605 = vld [vmem:[#allocation17] sm:$0x1]
        %v1606 = vld [vmem:[#allocation18] sm:$0x1]
        %v1607 = vsel %vm774, %v1604, 0.0
        %1608 = vadd.xlane.f32.xlu0 %v1607
        %v1609 = vpop.xlane.xlu0 %1608
        %v1610 = vrcp.pop 32.0
        %v1611 = vmul.f32 %v1609, %v1610
        %v1612 = vsub.f32 %v1604, %v1611
        %v1613 = vmul.f32 %v1612, %v1612
        %v1614 = vsel %vm774, %v1613, 0.0
        %1615 = vadd.xlane.f32.xlu0 %v1614
        %v1616 = vpop.xlane.xlu0 %1615
        %v1617 = vmul.f32 %v1616, %v1610
        %v1618 = vadd.f32 %v1617, 1e-05
        %v1619 = vrsqrt.pop %v1618
        %v1620 = vmul.f32 %v1612, %v1619
        %v1622 = vlaneseq
        %v1623 = vshrl.u32 %v1622, 7
        %v1624 = vsub.s32 0, %v1623
        %v1625 = vrot.slane %v1605, %v1624
        %v1627 = vmul.f32 %v1620, %v1625
        %v1629 = vlaneseq
        %v1630 = vshrl.u32 %v1629, 7
        %v1631 = vsub.s32 0, %v1630
        %v1632 = vrot.slane %v1606, %v1631
        %v1634 = vadd.f32 %v1627, %v1632
        %v1635 = vpack.c.bf16 %v1634, %v1634
        %v1636 = vld [vmem:[%s12] sm:$0xf]
        %v1637 = vld [vmem:[%s12 + $0x4] sm:$0xf]
        %v1638 = vld [vmem:[%s12 + $0x8] sm:$0xf]
        %v1639 = vld [vmem:[%s12 + $0xc] sm:$0xf]
        %v1640 = vld [vmem:[#allocation20] sm:$0x1]
        %v1642 = vlaneseq
        %v1643 = vshrl.u32 %v1642, 7
        %v1644 = vsub.s32 0, %v1643
        %v1645 = vrot.slane %v1640, %v1644
        %v1651 = vunpack.c.l.b16 %v1636
        %v1652 = vunpack.c.l.b16 %v1637
        %v1653 = vunpack.c.l.b16 %v1638
        %v1654 = vunpack.c.l.b16 %v1639
        %v1655 = vpack.c.b16 %v1652, %v1651
        %v1656 = vpack.c.b16 %v1654, %v1653
        %v1660 = vsel %vm774, %v1635, 0
        %1662 = vmatprep.subr.bf16.mxu0 0
        %1663 = vmatpush1.bf16.msra.mxu0 %v1655
        %1664 = vmatprep.subr.bf16.mxu0 0
        %1665 = vmatpush1.bf16.msra.mxu0 %v1656
        %1666 = vmatprep.subr.bf16.mxu0 0
        %1667 = vmatpush1.bf16.msra.mxu0 0
        %1668 = vmatprep.subr.bf16.mxu0 0
        %1669 = vmatpush1.bf16.msra.mxu0 0
        %1670 = vmatprep.subr.bf16.mxu0 0
        %1671 = vmatpush1.bf16.msra.mxu0 0
        %1672 = vmatprep.subr.bf16.mxu0 0
        %1673 = vmatpush1.bf16.msra.mxu0 0
        %1674 = vmatprep.subr.bf16.mxu0 0
        %1675 = vmatpush1.bf16.msra.mxu0 0
        %1676 = vmatprep.subr.bf16.mxu0 0
        %1677 = vmatpush1.bf16.msra.mxu0 0
        %1678 = vmatprep.subr.bf16.mxu0 0
        %1679 = vmatpush1.bf16.msra.mxu0 0
        %1680 = vmatprep.subr.bf16.mxu0 0
        %1681 = vmatpush1.bf16.msra.mxu0 0
        %1682 = vmatprep.subr.bf16.mxu0 0
        %1683 = vmatpush1.bf16.msra.mxu0 0
        %1684 = vmatprep.subr.bf16.mxu0 0
        %1685 = vmatpush1.bf16.msra.mxu0 0
        %1686 = vmatprep.subr.bf16.mxu0 0
        %1687 = vmatpush1.bf16.msra.mxu0 0
        %1688 = vmatprep.subr.bf16.mxu0 0
        %1689 = vmatpush1.bf16.msra.mxu0 0
        %1690 = vmatprep.subr.bf16.mxu0 0
        %1691 = vmatpush1.bf16.msra.mxu0 0
        %1692 = vmatprep.subr.bf16.mxu0 0
        %1693 = vmatpush1.bf16.msra.mxu0 0
        %1694 = vmatprep.mubr.bf16.mxu0 0
        %1695 = vmatmul.mubr.bf16.gmra.mrb[0].mxu0 %v1660
        %v1696 = vpop.f32.mrb[0].mxu0
        %v1697 = vadd.f32 %v1645, %v1696
        %v1698 = vpop.f32.mrb[0].mxu0
        %v1699 = vpop.f32.mrb[0].mxu0
        %v1700 = vpop.f32.mrb[0].mxu0
        %1701 = vdwg.mxu0
        %v1702 = vmul.f32 %v1697, 0.5
        %v1703 = vmul.f32 %v1697, 0.70710677
        %v1704 = verf.f32.pop %v1703
        %v1705 = vadd.f32 %v1704, 1.0
        %v1706 = vmul.f32 %v1702, %v1705
        %v1707 = vpack.c.bf16 %v1706, %v1706
        %v1708 = vld [vmem:[%s14] sm:$0xf]
        %v1709 = vld [vmem:[%s14 + $0x4] sm:$0xf]
        %v1710 = vld [vmem:[%s14 + $0x8] sm:$0xf]
        %v1711 = vld [vmem:[%s14 + $0xc] sm:$0xf]
        %v1712 = vld [vmem:[%s15] sm:$0x1]
        %v1714 = vlaneseq
        %v1715 = vshrl.u32 %v1714, 7
        %v1716 = vsub.s32 0, %v1715
        %v1717 = vrot.slane %v1712, %v1716
        %v1723 = vunpack.c.l.b16 %v1708
        %v1724 = vunpack.c.l.b16 %v1709
        %v1725 = vunpack.c.l.b16 %v1710
        %v1726 = vunpack.c.l.b16 %v1711
        %v1727 = vpack.c.b16 %v1724, %v1723
        %v1728 = vpack.c.b16 %v1726, %v1725
        %v1732 = vsel %vm774, %v1707, 0
        %1734 = vmatprep.subr.bf16.mxu0 0
        %1735 = vmatpush1.bf16.msra.mxu0 %v1727
        %1736 = vmatprep.subr.bf16.mxu0 0
        %1737 = vmatpush1.bf16.msra.mxu0 %v1728
        %1738 = vmatprep.subr.bf16.mxu0 0
        %1739 = vmatpush1.bf16.msra.mxu0 0
        %1740 = vmatprep.subr.bf16.mxu0 0
        %1741 = vmatpush1.bf16.msra.mxu0 0
        %1742 = vmatprep.subr.bf16.mxu0 0
        %1743 = vmatpush1.bf16.msra.mxu0 0
        %1744 = vmatprep.subr.bf16.mxu0 0
        %1745 = vmatpush1.bf16.msra.mxu0 0
        %1746 = vmatprep.subr.bf16.mxu0 0
        %1747 = vmatpush1.bf16.msra.mxu0 0
        %1748 = vmatprep.subr.bf16.mxu0 0
        %1749 = vmatpush1.bf16.msra.mxu0 0
        %1750 = vmatprep.subr.bf16.mxu0 0
        %1751 = vmatpush1.bf16.msra.mxu0 0
        %1752 = vmatprep.subr.bf16.mxu0 0
        %1753 = vmatpush1.bf16.msra.mxu0 0
        %1754 = vmatprep.subr.bf16.mxu0 0
        %1755 = vmatpush1.bf16.msra.mxu0 0
        %1756 = vmatprep.subr.bf16.mxu0 0
        %1757 = vmatpush1.bf16.msra.mxu0 0
        %1758 = vmatprep.subr.bf16.mxu0 0
        %1759 = vmatpush1.bf16.msra.mxu0 0
        %1760 = vmatprep.subr.bf16.mxu0 0
        %1761 = vmatpush1.bf16.msra.mxu0 0
        %1762 = vmatprep.subr.bf16.mxu0 0
        %1763 = vmatpush1.bf16.msra.mxu0 0
        %1764 = vmatprep.subr.bf16.mxu0 0
        %1765 = vmatpush1.bf16.msra.mxu0 0
        %1766 = vmatprep.mubr.bf16.mxu0 0
        %1767 = vmatmul.mubr.bf16.gmra.mrb[0].mxu0 %v1732
        %v1768 = vpop.f32.mrb[0].mxu0
        %v1769 = vadd.f32 %v1717, %v1768
        %v1770 = vpop.f32.mrb[0].mxu0
        %v1771 = vpop.f32.mrb[0].mxu0
        %v1772 = vpop.f32.mrb[0].mxu0
        %1773 = vdwg.mxu0
        %v1774 = vadd.f32 %v1634, %v1769
        %v1775 = vld [vmem:[%s16] sm:$0x1]
        %v1776 = vld [vmem:[%s17] sm:$0x1]
        %v1777 = vsel %vm774, %v1774, 0.0
        %1778 = vadd.xlane.f32.xlu0 %v1777
        %v1779 = vpop.xlane.xlu0 %1778
        %v1780 = vmul.f32 %v1779, %v1610
        %v1781 = vsub.f32 %v1774, %v1780
        %v1782 = vmul.f32 %v1781, %v1781
        %v1783 = vsel %vm774, %v1782, 0.0
        %1784 = vadd.xlane.f32.xlu0 %v1783
        %v1785 = vpop.xlane.xlu0 %1784
        %v1786 = vmul.f32 %v1785, %v1610
        %v1787 = vadd.f32 %v1786, 1e-05
        %v1788 = vrsqrt.pop %v1787
        %v1789 = vmul.f32 %v1781, %v1788
        %v1791 = vlaneseq
        %v1792 = vshrl.u32 %v1791, 7
        %v1793 = vsub.s32 0, %v1792
        %v1794 = vrot.slane %v1775, %v1793
        %v1796 = vmul.f32 %v1789, %v1794
        %v1798 = vlaneseq
        %v1799 = vshrl.u32 %v1798, 7
        %v1800 = vsub.s32 0, %v1799
        %v1801 = vrot.slane %v1776, %v1800
        %v1803 = vadd.f32 %v1796, %v1801
        %1804 = vst.msk [vmem:[%s745] sm:$0xff] %vm774, %v1803
        %s1805 = sand.u32 %s438, 1
        %s1806 = scalar_lea.sflag [#allocation5], %s1805
        %s1807 = sand.u32 %s438, 1
        %s1808 = smul.addr %s1807, 8
        %s1809 = scalar_lea.vmem [#allocation21], %s1808
        // Predicated region
        $region137: #{tpu_custom_call.1} parent=91 // pred_check
          %p1810 = pneg %p448
        $region138: #{tpu_custom_call.1} parent=91 // pred_check_branch
          %1812 = sbr.rel (%p1810) target = $region140
        $region139: #{tpu_custom_call.1} parent=91 // pred_region
          %s1814 = ssub.s32 128, 128
          %1815 = vsyncadd %s1806, %s1814
          %s1816 = smul.addr %s42, 128
          %s1817 = scalar_lea.hbm %s18, %s1816
          %s1819 = sshll.u32 %s1809, 4
          %s1820 = int_to_ptr.vmem [resolvable:$true] %s1819
          %1822 = dma.vmem_to_hbm [thread:$0]  %s1820, 128, %s1817, %s1806
        $region140: #{tpu_custom_call.1} parent=91 // pred_fallthru
          _
      $region92: #{tpu_custom_call.1} parent=5 // pred_fallthru
        _
      %p1823 = scmp.le.s32.totalorder 2, %s37
      // Predicated region
      $region141: #{tpu_custom_call.1} parent=5 // pred_check
        %p1824 = pneg %p1823
      $region142: #{tpu_custom_call.1} parent=5 // pred_check_branch
        %1826 = sbr.rel (%p1824) target = $region144
      $region143: #{tpu_custom_call.1} parent=5 // pred_region
        %s1827 = ssub.s32 %s37, 2
        // Predicated region
        $region145: #{tpu_custom_call.1} parent=143 // pred_check
          %p1828 = pneg %p454
        $region146: #{tpu_custom_call.1} parent=143 // pred_check_branch
          %1830 = sbr.rel (%p1828) target = $region148
        $region147: #{tpu_custom_call.1} parent=143 // pred_region
          %s1831 = sand.u32 %s439, 1
          %s1832 = scalar_lea.sflag [#allocation5], %s1831
          %s1833 = sand.u32 %s439, 1
          %s1834 = smul.addr %s1833, 8
          %s1835 = scalar_lea.vmem [#allocation21], %s1834
          %1836 = dma.done %s1832, 128
        $region148: #{tpu_custom_call.1} parent=143 // pred_fallthru
          _
      $region144: #{tpu_custom_call.1} parent=5 // pred_fallthru
        _
    $region6: #{tpu_custom_call.1} parent=1 // loop_footer
      %s41 = sadd.s32 1, %s37
    $region7: #{tpu_custom_call.1} parent=1 // loop_footer_branch
      %36 = sbr.rel target = $region3
    $region8: #{tpu_custom_call.1} parent=1 // loop_exit
      _
    %1837 = vsyncpa [#allocation4], 1
    %s1838 = scalar_lea.sflag [#allocation4], 1
    %1839 = vsyncpa %s1838, 1
    %1840 = vsyncpa [#allocation7], 1
    %s1841 = scalar_lea.sflag [#allocation7], 1
    %1842 = vsyncpa %s1841, 1
    %1843 = vsyncpa [#allocation10], 1
    %1844 = vsyncpa [#allocation13], 1
    %1845 = vsyncpa [#allocation16], 1
    %1846 = vsyncpa [#allocation19], 1
    %1847 = vsyncpa [#allocation5], 1
    %s1848 = scalar_lea.sflag [#allocation5], 1
    %1849 = vsyncpa %s1848, 1

</llo_original>
